<compile_context>
chip_gen: v6e
topology: v6e:2x2x1
jax: 0.10.0
libtpu: 0.0.40
codegen_flags: <defaults>
</compile_context>

<pallas_src>
import functools

import jax
import jax.numpy as jnp
import numpy as np
from jax import lax
from jax.experimental import pallas as pl
from jax.experimental.pallas import tpu as pltpu

_TOPK_BISECT_ITERS = 24   # interval shrinks to ~6e-8 of the initial range: below score gaps
_LN_EPS = 1e-5


def _layer_norm(x, g, b):
    mu = jnp.mean(x, axis=-1, keepdims=True)
    var = jnp.mean(jnp.square(x - mu), axis=-1, keepdims=True)
    return (x - mu) * lax.rsqrt(var + _LN_EPS) * g + b


# ----------------------------------------------------------------------------
# Fused kernel: grid = (batch, depth); one grid step = one full layer for one batch elem.
# The output block (resident across the depth axis) carries the residual stream x.
# ----------------------------------------------------------------------------
def transformer_kernel(
    x_ref,
    ln1_g_ref, ln1_b_ref, wqkv_ref, wo_ref, bo_ref,
    ln2_g_ref, ln2_b_ref, w1_ref, b1_ref, w2_ref, b2_ref,
    out_ref, cls_ref,
    *, heads, dim_head, knn_k, seq_len,
):
    inner = heads * dim_head
    layer = pl.program_id(1)

    # depth axis is the inner "arbitrary" axis; initialize the resident residual stream.
    @pl.when(layer == 0)
    def _():
        out_ref[...] = x_ref[...]

    x = out_ref[0]                                               # (N, D) f32

    # ---- PreNorm 1 + Attention ----
    xn = _layer_norm(x, ln1_g_ref[0], ln1_b_ref[0])

    # Single packed QKV matmul (dim_head**-0.5 folded into the q columns in the wrapper).
    qkv = jnp.dot(xn.astype(jnp.bfloat16), wqkv_ref[0],
                  preferred_element_type=jnp.float32)            # (N, 3*inner) f32
    qkv16 = qkv.astype(jnp.bfloat16).reshape(seq_len, 3 * heads, dim_head)
    qkv16 = jnp.transpose(qkv16, (1, 0, 2))                      # (3H, N, Dh) bf16
    q = qkv16[:heads]
    k = qkv16[heads:2 * heads]
    v = qkv16[2 * heads:]

    s = jnp.einsum("hqe,hke->hqk", q, k,
                   preferred_element_type=jnp.float32)           # (H, N, N) f32

    # Pre-mask row max: serves both as the bisection upper bound and (since the row max is
    # always inside the top-k) as the softmax max.
    row_max = jnp.max(s, axis=-1, keepdims=True)                 # (H, N, 1)

    if knn_k < seq_len:
        # Count-based bisection on the per-row k-th-largest threshold.  Invariant:
        # count(s > lo) >= k and count(s > hi) < k, so after the iterations "s > lo"
        # keeps exactly the top-k entries (torch.topk scatter-mask semantics).
        def bisect(_, carry):
            lo, hi = carry
            mid = 0.5 * (lo + hi)
            cnt = jnp.sum((s > mid).astype(jnp.float32), axis=-1, keepdims=True)
            ge = cnt >= knn_k
            return jnp.where(ge, mid, lo), jnp.where(ge, hi, mid)

        lo0 = jnp.min(s, axis=-1, keepdims=True) - 1.0
        lo, _ = lax.fori_loop(0, _TOPK_BISECT_ITERS, bisect, (lo0, row_max),
                              unroll=True)
        p = jnp.where(s > lo, jnp.exp(s - row_max), 0.0)         # mask folded into exp
    else:
        p = jnp.exp(s - row_max)

    denom = jnp.sum(p, axis=-1, keepdims=True)                   # (H, N, 1)
    ctx = jnp.einsum("hqk,hke->hqe", p.astype(jnp.bfloat16), v,
                     preferred_element_type=jnp.float32)         # (H, N, Dh)
    ctx = ctx * pl.reciprocal(denom, approx=True)                # EUP reciprocal

    # Output projection: one contraction over the full H*Dh axis (no per-head sum).
    ctx2 = jnp.transpose(ctx, (1, 0, 2)).reshape(seq_len, inner)  # (N, H*Dh)
    attn_out = jnp.dot(ctx2.astype(jnp.bfloat16), wo_ref[0],
                       preferred_element_type=jnp.float32) + bo_ref[0]
    x = x + attn_out                                              # residual 1

    # ---- PreNorm 2 + FeedForward ----
    xn2 = _layer_norm(x, ln2_g_ref[0], ln2_b_ref[0])
    h1 = jnp.dot(xn2.astype(jnp.bfloat16), w1_ref[0],
                 preferred_element_type=jnp.float32) + b1_ref[0]
    h1 = jax.nn.gelu(h1, approximate=True)
    h2 = jnp.dot(h1.astype(jnp.bfloat16), w2_ref[0],
                 preferred_element_type=jnp.float32) + b2_ref[0]

    y = x + h2                                                    # residual 2
    out_ref[0] = y
    cls_ref[0, 0] = y[0:1]                                        # per-layer CLS row


# ----------------------------------------------------------------------------
# Wrapper: single pallas_call over (batch, depth)
# ----------------------------------------------------------------------------
def transformer_forward(x, stacked, *, heads, dim_head, knn_attention):
    B, N, D = x.shape
    depth = stacked["wqkv"].shape[0]
    knn_k = int(N * knn_attention) if knn_attention else N

    kernel = functools.partial(transformer_kernel, heads=heads, dim_head=dim_head,
                               knn_k=knn_k, seq_len=N)

    def x_map(b, l):            # batch-resident blocks (input x and carried output)
        return (b, 0, 0)

    def w_map(b, l):            # per-layer stacked weights
        return (l, 0, 0)

    def cls_map(b, l):
        return (b, l, 0, 0)

    names = ("ln1_g", "ln1_b", "wqkv", "wo", "bo",
             "ln2_g", "ln2_b", "w1", "b1", "w2", "b2")
    params = [stacked[n] for n in names]
    # All stacked params are 3-D (depth, rows, cols); block = one layer, full last 2 dims.
    param_specs = [pl.BlockSpec((1,) + a.shape[1:], w_map) for a in params]

    out, cls = pl.pallas_call(
        kernel,
        out_shape=(jax.ShapeDtypeStruct((B, N, D), jnp.float32),
                   jax.ShapeDtypeStruct((B, depth, 1, D), jnp.float32)),
        grid=(B, depth),
        in_specs=[pl.BlockSpec((1, N, D), x_map)] + param_specs,
        out_specs=(pl.BlockSpec((1, N, D), x_map),          # resident across depth
                   pl.BlockSpec((1, 1, 1, D), cls_map)),
        compiler_params=pltpu.CompilerParams(
            dimension_semantics=("parallel", "arbitrary"),
            # Toy shapes; for production-N flash tiling raise toward ~96 MiB on v6e and
            # keep the working set under ~48 MiB on v7x (64 MiB physical VMEM).
            vmem_limit_bytes=32 * 1024 * 1024,
        ),
    )(x, *params)
    return out, cls.reshape(B, depth, D)


# ----------------------------------------------------------------------------
# Parameter preparation: pack QKV (scale folded into q), bf16 matmul weights, stack on depth
# ----------------------------------------------------------------------------
def prepare_stacked_params(raw_params, *, heads, dim_head):
    inner = heads * dim_head
    scale = dim_head ** -0.5

    def one(p):
        wqkv = p["wqkv"]
        wqkv_packed = jnp.concatenate(
            [wqkv[:, :inner] * scale, wqkv[:, inner:]], axis=-1).astype(jnp.bfloat16)
        return {
            "ln1_g": p["ln1_g"], "ln1_b": p["ln1_b"],
            "wqkv": wqkv_packed,
            "wo": p["wo"].astype(jnp.bfloat16),
            "bo": p["bo"],
            "ln2_g": p["ln2_g"], "ln2_b": p["ln2_b"],
            "w1": p["w1"].astype(jnp.bfloat16), "b1": p["b1"],
            "w2": p["w2"].astype(jnp.bfloat16), "b2": p["b2"],
        }

    prepared = [one(p) for p in raw_params]
    return {k: jnp.stack([pp[k] for pp in prepared], axis=0) for k in prepared[0]}


# ----------------------------------------------------------------------------
# Plain-JAX reference with the same dtype policy (for validation)
# ----------------------------------------------------------------------------
def ref_forward(x, stacked, *, heads, dim_head, knn_k):
    depth = stacked["wqkv"].shape[0]
    B, N, D = x.shape
    inner = heads * dim_head
    cls_list = []
    for l in range(depth):
        xn = _layer_norm(x, stacked["ln1_g"][l], stacked["ln1_b"][l])
        qkv = jnp.einsum("bnd,de->bne", xn.astype(jnp.bfloat16), stacked["wqkv"][l],
                         preferred_element_type=jnp.float32)
        qkv16 = qkv.astype(jnp.bfloat16).reshape(B, N, 3 * heads, dim_head)
        q = qkv16[:, :, :heads]
        k = qkv16[:, :, heads:2 * heads]
        v = qkv16[:, :, 2 * heads:]
        s = jnp.einsum("bqhe,bkhe->bhqk", q, k, preferred_element_type=jnp.float32)
        m = s.max(-1, keepdims=True)
        if knn_k < N:
            kth = lax.top_k(s, knn_k)[0][..., -1:]
            p = jnp.where(s >= kth, jnp.exp(s - m), 0.0)
        else:
            p = jnp.exp(s - m)
        denom = p.sum(-1, keepdims=True)
        ctx = jnp.einsum("bhqk,bkhe->bhqe", p.astype(jnp.bfloat16), v,
                         preferred_element_type=jnp.float32) / denom
        ctx2 = jnp.transpose(ctx, (0, 2, 1, 3)).reshape(B, N, inner)
        attn = jnp.einsum("bne,ed->bnd", ctx2.astype(jnp.bfloat16), stacked["wo"][l],
                          preferred_element_type=jnp.float32) + stacked["bo"][l]
        x = x + attn
        xn2 = _layer_norm(x, stacked["ln2_g"][l], stacked["ln2_b"][l])
        h1 = jnp.einsum("bnd,dm->bnm", xn2.astype(jnp.bfloat16), stacked["w1"][l],
                        preferred_element_type=jnp.float32) + stacked["b1"][l]
        h1 = jax.nn.gelu(h1, approximate=True)
        h2 = jnp.einsum("bnm,md->bnd", h1.astype(jnp.bfloat16), stacked["w2"][l],
                        preferred_element_type=jnp.float32) + stacked["b2"][l]
        x = x + h2
        cls_list.append(x[:, 0])
    return x, jnp.stack(cls_list, axis=1)     # (B, depth, D)


# ----------------------------------------------------------------------------
# Deterministic parameter init (raw, PyTorch-style layout)
# ----------------------------------------------------------------------------
def init_layer_params(key, dim, heads, dim_head, mlp_dim):
    inner = heads * dim_head
    k1, k2, k3, k4 = jax.random.split(key, 4)
    s = 0.02
    return {
        "ln1_g": jnp.ones((1, dim), jnp.float32),
        "ln1_b": jnp.zeros((1, dim), jnp.float32),
        "wqkv": s * jax.random.normal(k1, (dim, 3 * inner), jnp.float32),
        "wo": s * jax.random.normal(k2, (inner, dim), jnp.float32),
        "bo": jnp.zeros((1, dim), jnp.float32),
        "ln2_g": jnp.ones((1, dim), jnp.float32),
        "ln2_b": jnp.zeros((1, dim), jnp.float32),
        "w1": s * jax.random.normal(k3, (dim, mlp_dim), jnp.float32),
        "b1": jnp.zeros((1, mlp_dim), jnp.float32),
        "w2": s * jax.random.normal(k4, (mlp_dim, dim), jnp.float32),
        "b2": jnp.zeros((1, dim), jnp.float32),
    }


if __name__ == "__main__":
    # Small shapes consistent with Transformer(dim, depth, heads, dim_head, mlp_dim)
    B, N = 2, 8
    dim, depth, heads, dim_head, mlp_dim = 32, 2, 4, 8, 64
    knn_attention = 0.7

    key = jax.random.PRNGKey(0)
    kx, *layer_keys = jax.random.split(key, depth + 1)
    x = jax.random.normal(kx, (B, N, dim), jnp.float32)
    raw_params = [init_layer_params(lk, dim, heads, dim_head, mlp_dim)
                  for lk in layer_keys]
    stacked = prepare_stacked_params(raw_params, heads=heads, dim_head=dim_head)

    out, cls = transformer_forward(x, stacked, heads=heads, dim_head=dim_head,
                                   knn_attention=knn_attention)
    out = jax.block_until_ready(out)

    # validate against plain-JAX reference with the same dtype policy
    knn_k = int(N * knn_attention)
    ref_out, ref_cls = ref_forward(x, stacked, heads=heads, dim_head=dim_head, knn_k=knn_k)
    np.testing.assert_allclose(np.asarray(out), np.asarray(ref_out), atol=1e-2, rtol=1e-2)
    np.testing.assert_allclose(np.asarray(cls), np.asarray(ref_cls), atol=1e-2, rtol=1e-2)
    # the last-layer CLS output must match row 0 of the final sequence
    np.testing.assert_allclose(np.asarray(cls[:, -1]), np.asarray(out[:, 0]), atol=1e-6)

    print("KERNEL_OK")
</pallas_src>

<mosaic_0001>
module attributes {stable_mosaic.version = 11 : i64} {
  func.func @transformer_kernel(%arg0: i32, %arg1: i32, %arg2: memref<1x8x32xf32, #tpu.memory_space<vmem>>, %arg3: memref<1x1x32xf32, #tpu.memory_space<vmem>>, %arg4: memref<1x1x32xf32, #tpu.memory_space<vmem>>, %arg5: memref<1x32x96xbf16, #tpu.memory_space<vmem>>, %arg6: memref<1x32x32xbf16, #tpu.memory_space<vmem>>, %arg7: memref<1x1x32xf32, #tpu.memory_space<vmem>>, %arg8: memref<1x1x32xf32, #tpu.memory_space<vmem>>, %arg9: memref<1x1x32xf32, #tpu.memory_space<vmem>>, %arg10: memref<1x32x64xbf16, #tpu.memory_space<vmem>>, %arg11: memref<1x1x64xf32, #tpu.memory_space<vmem>>, %arg12: memref<1x64x32xbf16, #tpu.memory_space<vmem>>, %arg13: memref<1x1x32xf32, #tpu.memory_space<vmem>>, %arg14: memref<1x8x32xf32, #tpu.memory_space<vmem>>, %arg15: memref<1x1x1x32xf32, #tpu.memory_space<vmem>>) attributes {dimension_semantics = [#tpu.dimension_semantics<parallel>, #tpu.dimension_semantics<arbitrary>], iteration_bounds = array<i64: 2, 2>, scalar_prefetch = 0 : i64, scratch_operands = 0 : i64, tpu.core_type = #tpu.core_type<tc>, window_params = [{transform_indices = @transform_0, window_bounds = array<i64: 1, 8, 32>}, {transform_indices = @transform_1, window_bounds = array<i64: 1, 1, 32>}, {transform_indices = @transform_2, window_bounds = array<i64: 1, 1, 32>}, {transform_indices = @transform_3, window_bounds = array<i64: 1, 32, 96>}, {transform_indices = @transform_4, window_bounds = array<i64: 1, 32, 32>}, {transform_indices = @transform_5, window_bounds = array<i64: 1, 1, 32>}, {transform_indices = @transform_6, window_bounds = array<i64: 1, 1, 32>}, {transform_indices = @transform_7, window_bounds = array<i64: 1, 1, 32>}, {transform_indices = @transform_8, window_bounds = array<i64: 1, 32, 64>}, {transform_indices = @transform_9, window_bounds = array<i64: 1, 1, 64>}, {transform_indices = @transform_10, window_bounds = array<i64: 1, 64, 32>}, {transform_indices = @transform_11, window_bounds = array<i64: 1, 1, 32>}, {transform_indices = @transform_12, window_bounds = array<i64: 1, 8, 32>}, {transform_indices = @transform_13, window_bounds = array<i64: 1, 1, 1, 32>}]} {
    %c0_i32 = arith.constant 0 : i32
    %0 = arith.cmpi eq, %arg1, %c0_i32 : i32
    %1 = arith.extui %0 : i1 to i32
    %c0_i32_0 = arith.constant 0 : i32
    %2 = arith.cmpi ne, %1, %c0_i32_0 : i32
    scf.if %2 {
      %c0_140 = arith.constant 0 : index
      %c0_141 = arith.constant 0 : index
      %c0_142 = arith.constant 0 : index
      %448 = vector.load %arg2[%c0_140, %c0_141, %c0_142] : memref<1x8x32xf32, #tpu.memory_space<vmem>>, vector<1x8x32xf32>
      %c0_143 = arith.constant 0 : index
      %c0_144 = arith.constant 0 : index
      %c0_145 = arith.constant 0 : index
      %449 = vector.load %arg14[%c0_143, %c0_144, %c0_145] : memref<1x8x32xf32, #tpu.memory_space<vmem>>, vector<1x8x32xf32>
      tpu.vector_store %arg14[%c0_143, %c0_144, %c0_145], %448 {strides = array<i32>} : memref<1x8x32xf32, #tpu.memory_space<vmem>>, vector<1x8x32xf32>,
    } else {
    }
    %c0 = arith.constant 0 : index
    %c0_1 = arith.constant 0 : index
    %c0_2 = arith.constant 0 : index
    %3 = vector.load %arg14[%c0, %c0_1, %c0_2] : memref<1x8x32xf32, #tpu.memory_space<vmem>>, vector<1x8x32xf32>
    %4 = vector.shape_cast %3 : vector<1x8x32xf32> to vector<8x32xf32>
    %c0_3 = arith.constant 0 : index
    %c0_4 = arith.constant 0 : index
    %c0_5 = arith.constant 0 : index
    %5 = vector.load %arg3[%c0_3, %c0_4, %c0_5] : memref<1x1x32xf32, #tpu.memory_space<vmem>>, vector<1x1x32xf32>
    %6 = vector.shape_cast %5 : vector<1x1x32xf32> to vector<1x32xf32>
    %c0_6 = arith.constant 0 : index
    %c0_7 = arith.constant 0 : index
    %c0_8 = arith.constant 0 : index
    %7 = vector.load %arg4[%c0_6, %c0_7, %c0_8] : memref<1x1x32xf32, #tpu.memory_space<vmem>>, vector<1x1x32xf32>
    %8 = vector.shape_cast %7 : vector<1x1x32xf32> to vector<1x32xf32>
    %cst = arith.constant dense<0.000000e+00> : vector<8xf32>
    %9 = vector.multi_reduction <add>, %4, %cst [1] : vector<8x32xf32> to vector<8xf32>
    %10 = vector.shape_cast %9 : vector<8xf32> to vector<8x1xf32>
    %cst_9 = arith.constant 3.200000e+01 : f32
    %11 = vector.broadcast %cst_9 : f32 to vector<8x1xf32>
    %12 = arith.divf %10, %11 : vector<8x1xf32>
    %13 = vector.broadcast %12 : vector<8x1xf32> to vector<8x32xf32>
    %14 = arith.subf %4, %13 : vector<8x32xf32>
    %15 = arith.mulf %14, %14 : vector<8x32xf32>
    %cst_10 = arith.constant dense<0.000000e+00> : vector<8xf32>
    %16 = vector.multi_reduction <add>, %15, %cst_10 [1] : vector<8x32xf32> to vector<8xf32>
    %17 = vector.shape_cast %16 : vector<8xf32> to vector<8x1xf32>
    %cst_11 = arith.constant 3.200000e+01 : f32
    %18 = vector.broadcast %cst_11 : f32 to vector<8x1xf32>
    %19 = arith.divf %17, %18 : vector<8x1xf32>
    %20 = vector.broadcast %12 : vector<8x1xf32> to vector<8x32xf32>
    %21 = arith.subf %4, %20 : vector<8x32xf32>
    %cst_12 = arith.constant 9.99999974E-6 : f32
    %22 = vector.broadcast %cst_12 : f32 to vector<8x1xf32>
    %23 = arith.addf %19, %22 : vector<8x1xf32>
    %24 = math.rsqrt %23 : vector<8x1xf32>
    %25 = vector.broadcast %24 : vector<8x1xf32> to vector<8x32xf32>
    %26 = arith.mulf %21, %25 : vector<8x32xf32>
    %27 = vector.broadcast %6 : vector<1x32xf32> to vector<8x32xf32>
    %28 = arith.mulf %26, %27 : vector<8x32xf32>
    %29 = vector.broadcast %8 : vector<1x32xf32> to vector<8x32xf32>
    %30 = arith.addf %28, %29 : vector<8x32xf32>
    %31 = arith.truncf %30 : vector<8x32xf32> to vector<8x32xbf16>
    %c0_13 = arith.constant 0 : index
    %c0_14 = arith.constant 0 : index
    %c0_15 = arith.constant 0 : index
    %32 = vector.load %arg5[%c0_13, %c0_14, %c0_15] : memref<1x32x96xbf16, #tpu.memory_space<vmem>>, vector<1x32x96xbf16>
    %33 = vector.shape_cast %32 : vector<1x32x96xbf16> to vector<32x96xbf16>
    %cst_16 = arith.constant dense<0.000000e+00> : vector<8x96xf32>
    %34 = tpu.matmul %31, %33, %cst_16 {dimension_numbers = #tpu.dot_dimension_numbers<[1], [0], [0], [1], [0, 0, 1, 1], [], []>} : vector<8x32xbf16>, vector<32x96xbf16>, vector<8x96xf32> -> vector<8x96xf32>
    %35 = arith.truncf %34 : vector<8x96xf32> to vector<8x96xbf16>
    %36 = vector.shape_cast %35 : vector<8x96xbf16> to vector<8x12x8xbf16>
    %37 = tpu.transpose %36, [1, 0, 2] : vector<8x12x8xbf16> -> vector<12x8x8xbf16>
    %38 = vector.extract_strided_slice %37 {offsets = [0, 0, 0], sizes = [4, 8, 8], strides = [1, 1, 1]} : vector<12x8x8xbf16> to vector<4x8x8xbf16>
    %39 = vector.extract_strided_slice %37 {offsets = [4, 0, 0], sizes = [4, 8, 8], strides = [1, 1, 1]} : vector<12x8x8xbf16> to vector<4x8x8xbf16>
    %40 = vector.extract_strided_slice %37 {offsets = [8, 0, 0], sizes = [4, 8, 8], strides = [1, 1, 1]} : vector<12x8x8xbf16> to vector<4x8x8xbf16>
    "tpu.trace_start"() <{level = 10 : i32, message = "hqe,hke->hqk"}> : () -> ()
    %cst_17 = arith.constant dense<0.000000e+00> : vector<4x8x8xf32>
    %41 = tpu.matmul %38, %39, %cst_17 {dimension_numbers = #tpu.dot_dimension_numbers<[2], [2], [1], [1], [0, 0, 0, 1, 1, 1], [0], [0]>} : vector<4x8x8xbf16>, vector<4x8x8xbf16>, vector<4x8x8xf32> -> vector<4x8x8xf32>
    "tpu.trace_stop"() : () -> ()
    %cst_18 = arith.constant dense<0xFF800000> : vector<4x8xf32>
    %42 = vector.multi_reduction <maximumf>, %41, %cst_18 [2] : vector<4x8x8xf32> to vector<4x8xf32>
    %43 = vector.shape_cast %42 : vector<4x8xf32> to vector<4x8x1xf32>
    %cst_19 = arith.constant dense<0x7F800000> : vector<4x8xf32>
    %44 = vector.multi_reduction <minimumf>, %41, %cst_19 [2] : vector<4x8x8xf32> to vector<4x8xf32>
    %45 = vector.shape_cast %44 : vector<4x8xf32> to vector<4x8x1xf32>
    %cst_20 = arith.constant 1.000000e+00 : f32
    %46 = vector.broadcast %cst_20 : f32 to vector<4x8x1xf32>
    %47 = arith.subf %45, %46 : vector<4x8x1xf32>
    %c0_i32_21 = arith.constant 0 : i32
    %48 = arith.addf %47, %43 : vector<4x8x1xf32>
    %cst_22 = arith.constant 5.000000e-01 : f32
    %49 = vector.broadcast %cst_22 : f32 to vector<4x8x1xf32>
    %50 = arith.mulf %49, %48 : vector<4x8x1xf32>
    %51 = vector.broadcast %50 : vector<4x8x1xf32> to vector<4x8x8xf32>
    %52 = arith.cmpf ogt, %41, %51 : vector<4x8x8xf32>
    %53 = arith.extui %52 : vector<4x8x8xi1> to vector<4x8x8xi32>
    %54 = arith.sitofp %53 : vector<4x8x8xi32> to vector<4x8x8xf32>
    %cst_23 = arith.constant dense<0.000000e+00> : vector<4x8xf32>
    %55 = vector.multi_reduction <add>, %54, %cst_23 [2] : vector<4x8x8xf32> to vector<4x8xf32>
    %56 = vector.shape_cast %55 : vector<4x8xf32> to vector<4x8x1xf32>
    %cst_24 = arith.constant 5.000000e+00 : f32
    %57 = vector.broadcast %cst_24 : f32 to vector<4x8x1xf32>
    %58 = arith.cmpf oge, %56, %57 : vector<4x8x1xf32>
    %59 = arith.select %58, %50, %47 : vector<4x8x1xi1>, vector<4x8x1xf32>
    %60 = arith.select %58, %43, %50 : vector<4x8x1xi1>, vector<4x8x1xf32>
    %c1_i32 = arith.constant 1 : i32
    %61 = arith.addf %59, %60 : vector<4x8x1xf32>
    %cst_25 = arith.constant 5.000000e-01 : f32
    %62 = vector.broadcast %cst_25 : f32 to vector<4x8x1xf32>
    %63 = arith.mulf %62, %61 : vector<4x8x1xf32>
    %64 = vector.broadcast %63 : vector<4x8x1xf32> to vector<4x8x8xf32>
    %65 = arith.cmpf ogt, %41, %64 : vector<4x8x8xf32>
    %66 = arith.extui %65 : vector<4x8x8xi1> to vector<4x8x8xi32>
    %67 = arith.sitofp %66 : vector<4x8x8xi32> to vector<4x8x8xf32>
    %cst_26 = arith.constant dense<0.000000e+00> : vector<4x8xf32>
    %68 = vector.multi_reduction <add>, %67, %cst_26 [2] : vector<4x8x8xf32> to vector<4x8xf32>
    %69 = vector.shape_cast %68 : vector<4x8xf32> to vector<4x8x1xf32>
    %cst_27 = arith.constant 5.000000e+00 : f32
    %70 = vector.broadcast %cst_27 : f32 to vector<4x8x1xf32>
    %71 = arith.cmpf oge, %69, %70 : vector<4x8x1xf32>
    %72 = arith.select %71, %63, %59 : vector<4x8x1xi1>, vector<4x8x1xf32>
    %73 = arith.select %71, %60, %63 : vector<4x8x1xi1>, vector<4x8x1xf32>
    %c2_i32 = arith.constant 2 : i32
    %74 = arith.addf %72, %73 : vector<4x8x1xf32>
    %cst_28 = arith.constant 5.000000e-01 : f32
    %75 = vector.broadcast %cst_28 : f32 to vector<4x8x1xf32>
    %76 = arith.mulf %75, %74 : vector<4x8x1xf32>
    %77 = vector.broadcast %76 : vector<4x8x1xf32> to vector<4x8x8xf32>
    %78 = arith.cmpf ogt, %41, %77 : vector<4x8x8xf32>
    %79 = arith.extui %78 : vector<4x8x8xi1> to vector<4x8x8xi32>
    %80 = arith.sitofp %79 : vector<4x8x8xi32> to vector<4x8x8xf32>
    %cst_29 = arith.constant dense<0.000000e+00> : vector<4x8xf32>
    %81 = vector.multi_reduction <add>, %80, %cst_29 [2] : vector<4x8x8xf32> to vector<4x8xf32>
    %82 = vector.shape_cast %81 : vector<4x8xf32> to vector<4x8x1xf32>
    %cst_30 = arith.constant 5.000000e+00 : f32
    %83 = vector.broadcast %cst_30 : f32 to vector<4x8x1xf32>
    %84 = arith.cmpf oge, %82, %83 : vector<4x8x1xf32>
    %85 = arith.select %84, %76, %72 : vector<4x8x1xi1>, vector<4x8x1xf32>
    %86 = arith.select %84, %73, %76 : vector<4x8x1xi1>, vector<4x8x1xf32>
    %c3_i32 = arith.constant 3 : i32
    %87 = arith.addf %85, %86 : vector<4x8x1xf32>
    %cst_31 = arith.constant 5.000000e-01 : f32
    %88 = vector.broadcast %cst_31 : f32 to vector<4x8x1xf32>
    %89 = arith.mulf %88, %87 : vector<4x8x1xf32>
    %90 = vector.broadcast %89 : vector<4x8x1xf32> to vector<4x8x8xf32>
    %91 = arith.cmpf ogt, %41, %90 : vector<4x8x8xf32>
    %92 = arith.extui %91 : vector<4x8x8xi1> to vector<4x8x8xi32>
    %93 = arith.sitofp %92 : vector<4x8x8xi32> to vector<4x8x8xf32>
    %cst_32 = arith.constant dense<0.000000e+00> : vector<4x8xf32>
    %94 = vector.multi_reduction <add>, %93, %cst_32 [2] : vector<4x8x8xf32> to vector<4x8xf32>
    %95 = vector.shape_cast %94 : vector<4x8xf32> to vector<4x8x1xf32>
    %cst_33 = arith.constant 5.000000e+00 : f32
    %96 = vector.broadcast %cst_33 : f32 to vector<4x8x1xf32>
    %97 = arith.cmpf oge, %95, %96 : vector<4x8x1xf32>
    %98 = arith.select %97, %89, %85 : vector<4x8x1xi1>, vector<4x8x1xf32>
    %99 = arith.select %97, %86, %89 : vector<4x8x1xi1>, vector<4x8x1xf32>
    %c4_i32 = arith.constant 4 : i32
    %100 = arith.addf %98, %99 : vector<4x8x1xf32>
    %cst_34 = arith.constant 5.000000e-01 : f32
    %101 = vector.broadcast %cst_34 : f32 to vector<4x8x1xf32>
    %102 = arith.mulf %101, %100 : vector<4x8x1xf32>
    %103 = vector.broadcast %102 : vector<4x8x1xf32> to vector<4x8x8xf32>
    %104 = arith.cmpf ogt, %41, %103 : vector<4x8x8xf32>
    %105 = arith.extui %104 : vector<4x8x8xi1> to vector<4x8x8xi32>
    %106 = arith.sitofp %105 : vector<4x8x8xi32> to vector<4x8x8xf32>
    %cst_35 = arith.constant dense<0.000000e+00> : vector<4x8xf32>
    %107 = vector.multi_reduction <add>, %106, %cst_35 [2] : vector<4x8x8xf32> to vector<4x8xf32>
    %108 = vector.shape_cast %107 : vector<4x8xf32> to vector<4x8x1xf32>
    %cst_36 = arith.constant 5.000000e+00 : f32
    %109 = vector.broadcast %cst_36 : f32 to vector<4x8x1xf32>
    %110 = arith.cmpf oge, %108, %109 : vector<4x8x1xf32>
    %111 = arith.select %110, %102, %98 : vector<4x8x1xi1>, vector<4x8x1xf32>
    %112 = arith.select %110, %99, %102 : vector<4x8x1xi1>, vector<4x8x1xf32>
    %c5_i32 = arith.constant 5 : i32
    %113 = arith.addf %111, %112 : vector<4x8x1xf32>
    %cst_37 = arith.constant 5.000000e-01 : f32
    %114 = vector.broadcast %cst_37 : f32 to vector<4x8x1xf32>
    %115 = arith.mulf %114, %113 : vector<4x8x1xf32>
    %116 = vector.broadcast %115 : vector<4x8x1xf32> to vector<4x8x8xf32>
    %117 = arith.cmpf ogt, %41, %116 : vector<4x8x8xf32>
    %118 = arith.extui %117 : vector<4x8x8xi1> to vector<4x8x8xi32>
    %119 = arith.sitofp %118 : vector<4x8x8xi32> to vector<4x8x8xf32>
    %cst_38 = arith.constant dense<0.000000e+00> : vector<4x8xf32>
    %120 = vector.multi_reduction <add>, %119, %cst_38 [2] : vector<4x8x8xf32> to vector<4x8xf32>
    %121 = vector.shape_cast %120 : vector<4x8xf32> to vector<4x8x1xf32>
    %cst_39 = arith.constant 5.000000e+00 : f32
    %122 = vector.broadcast %cst_39 : f32 to vector<4x8x1xf32>
    %123 = arith.cmpf oge, %121, %122 : vector<4x8x1xf32>
    %124 = arith.select %123, %115, %111 : vector<4x8x1xi1>, vector<4x8x1xf32>
    %125 = arith.select %123, %112, %115 : vector<4x8x1xi1>, vector<4x8x1xf32>
    %c6_i32 = arith.constant 6 : i32
    %126 = arith.addf %124, %125 : vector<4x8x1xf32>
    %cst_40 = arith.constant 5.000000e-01 : f32
    %127 = vector.broadcast %cst_40 : f32 to vector<4x8x1xf32>
    %128 = arith.mulf %127, %126 : vector<4x8x1xf32>
    %129 = vector.broadcast %128 : vector<4x8x1xf32> to vector<4x8x8xf32>
    %130 = arith.cmpf ogt, %41, %129 : vector<4x8x8xf32>
    %131 = arith.extui %130 : vector<4x8x8xi1> to vector<4x8x8xi32>
    %132 = arith.sitofp %131 : vector<4x8x8xi32> to vector<4x8x8xf32>
    %cst_41 = arith.constant dense<0.000000e+00> : vector<4x8xf32>
    %133 = vector.multi_reduction <add>, %132, %cst_41 [2] : vector<4x8x8xf32> to vector<4x8xf32>
    %134 = vector.shape_cast %133 : vector<4x8xf32> to vector<4x8x1xf32>
    %cst_42 = arith.constant 5.000000e+00 : f32
    %135 = vector.broadcast %cst_42 : f32 to vector<4x8x1xf32>
    %136 = arith.cmpf oge, %134, %135 : vector<4x8x1xf32>
    %137 = arith.select %136, %128, %124 : vector<4x8x1xi1>, vector<4x8x1xf32>
    %138 = arith.select %136, %125, %128 : vector<4x8x1xi1>, vector<4x8x1xf32>
    %c7_i32 = arith.constant 7 : i32
    %139 = arith.addf %137, %138 : vector<4x8x1xf32>
    %cst_43 = arith.constant 5.000000e-01 : f32
    %140 = vector.broadcast %cst_43 : f32 to vector<4x8x1xf32>
    %141 = arith.mulf %140, %139 : vector<4x8x1xf32>
    %142 = vector.broadcast %141 : vector<4x8x1xf32> to vector<4x8x8xf32>
    %143 = arith.cmpf ogt, %41, %142 : vector<4x8x8xf32>
    %144 = arith.extui %143 : vector<4x8x8xi1> to vector<4x8x8xi32>
    %145 = arith.sitofp %144 : vector<4x8x8xi32> to vector<4x8x8xf32>
    %cst_44 = arith.constant dense<0.000000e+00> : vector<4x8xf32>
    %146 = vector.multi_reduction <add>, %145, %cst_44 [2] : vector<4x8x8xf32> to vector<4x8xf32>
    %147 = vector.shape_cast %146 : vector<4x8xf32> to vector<4x8x1xf32>
    %cst_45 = arith.constant 5.000000e+00 : f32
    %148 = vector.broadcast %cst_45 : f32 to vector<4x8x1xf32>
    %149 = arith.cmpf oge, %147, %148 : vector<4x8x1xf32>
    %150 = arith.select %149, %141, %137 : vector<4x8x1xi1>, vector<4x8x1xf32>
    %151 = arith.select %149, %138, %141 : vector<4x8x1xi1>, vector<4x8x1xf32>
    %c8_i32 = arith.constant 8 : i32
    %152 = arith.addf %150, %151 : vector<4x8x1xf32>
    %cst_46 = arith.constant 5.000000e-01 : f32
    %153 = vector.broadcast %cst_46 : f32 to vector<4x8x1xf32>
    %154 = arith.mulf %153, %152 : vector<4x8x1xf32>
    %155 = vector.broadcast %154 : vector<4x8x1xf32> to vector<4x8x8xf32>
    %156 = arith.cmpf ogt, %41, %155 : vector<4x8x8xf32>
    %157 = arith.extui %156 : vector<4x8x8xi1> to vector<4x8x8xi32>
    %158 = arith.sitofp %157 : vector<4x8x8xi32> to vector<4x8x8xf32>
    %cst_47 = arith.constant dense<0.000000e+00> : vector<4x8xf32>
    %159 = vector.multi_reduction <add>, %158, %cst_47 [2] : vector<4x8x8xf32> to vector<4x8xf32>
    %160 = vector.shape_cast %159 : vector<4x8xf32> to vector<4x8x1xf32>
    %cst_48 = arith.constant 5.000000e+00 : f32
    %161 = vector.broadcast %cst_48 : f32 to vector<4x8x1xf32>
    %162 = arith.cmpf oge, %160, %161 : vector<4x8x1xf32>
    %163 = arith.select %162, %154, %150 : vector<4x8x1xi1>, vector<4x8x1xf32>
    %164 = arith.select %162, %151, %154 : vector<4x8x1xi1>, vector<4x8x1xf32>
    %c9_i32 = arith.constant 9 : i32
    %165 = arith.addf %163, %164 : vector<4x8x1xf32>
    %cst_49 = arith.constant 5.000000e-01 : f32
    %166 = vector.broadcast %cst_49 : f32 to vector<4x8x1xf32>
    %167 = arith.mulf %166, %165 : vector<4x8x1xf32>
    %168 = vector.broadcast %167 : vector<4x8x1xf32> to vector<4x8x8xf32>
    %169 = arith.cmpf ogt, %41, %168 : vector<4x8x8xf32>
    %170 = arith.extui %169 : vector<4x8x8xi1> to vector<4x8x8xi32>
    %171 = arith.sitofp %170 : vector<4x8x8xi32> to vector<4x8x8xf32>
    %cst_50 = arith.constant dense<0.000000e+00> : vector<4x8xf32>
    %172 = vector.multi_reduction <add>, %171, %cst_50 [2] : vector<4x8x8xf32> to vector<4x8xf32>
    %173 = vector.shape_cast %172 : vector<4x8xf32> to vector<4x8x1xf32>
    %cst_51 = arith.constant 5.000000e+00 : f32
    %174 = vector.broadcast %cst_51 : f32 to vector<4x8x1xf32>
    %175 = arith.cmpf oge, %173, %174 : vector<4x8x1xf32>
    %176 = arith.select %175, %167, %163 : vector<4x8x1xi1>, vector<4x8x1xf32>
    %177 = arith.select %175, %164, %167 : vector<4x8x1xi1>, vector<4x8x1xf32>
    %c10_i32 = arith.constant 10 : i32
    %178 = arith.addf %176, %177 : vector<4x8x1xf32>
    %cst_52 = arith.constant 5.000000e-01 : f32
    %179 = vector.broadcast %cst_52 : f32 to vector<4x8x1xf32>
    %180 = arith.mulf %179, %178 : vector<4x8x1xf32>
    %181 = vector.broadcast %180 : vector<4x8x1xf32> to vector<4x8x8xf32>
    %182 = arith.cmpf ogt, %41, %181 : vector<4x8x8xf32>
    %183 = arith.extui %182 : vector<4x8x8xi1> to vector<4x8x8xi32>
    %184 = arith.sitofp %183 : vector<4x8x8xi32> to vector<4x8x8xf32>
    %cst_53 = arith.constant dense<0.000000e+00> : vector<4x8xf32>
    %185 = vector.multi_reduction <add>, %184, %cst_53 [2] : vector<4x8x8xf32> to vector<4x8xf32>
    %186 = vector.shape_cast %185 : vector<4x8xf32> to vector<4x8x1xf32>
    %cst_54 = arith.constant 5.000000e+00 : f32
    %187 = vector.broadcast %cst_54 : f32 to vector<4x8x1xf32>
    %188 = arith.cmpf oge, %186, %187 : vector<4x8x1xf32>
    %189 = arith.select %188, %180, %176 : vector<4x8x1xi1>, vector<4x8x1xf32>
    %190 = arith.select %188, %177, %180 : vector<4x8x1xi1>, vector<4x8x1xf32>
    %c11_i32 = arith.constant 11 : i32
    %191 = arith.addf %189, %190 : vector<4x8x1xf32>
    %cst_55 = arith.constant 5.000000e-01 : f32
    %192 = vector.broadcast %cst_55 : f32 to vector<4x8x1xf32>
    %193 = arith.mulf %192, %191 : vector<4x8x1xf32>
    %194 = vector.broadcast %193 : vector<4x8x1xf32> to vector<4x8x8xf32>
    %195 = arith.cmpf ogt, %41, %194 : vector<4x8x8xf32>
    %196 = arith.extui %195 : vector<4x8x8xi1> to vector<4x8x8xi32>
    %197 = arith.sitofp %196 : vector<4x8x8xi32> to vector<4x8x8xf32>
    %cst_56 = arith.constant dense<0.000000e+00> : vector<4x8xf32>
    %198 = vector.multi_reduction <add>, %197, %cst_56 [2] : vector<4x8x8xf32> to vector<4x8xf32>
    %199 = vector.shape_cast %198 : vector<4x8xf32> to vector<4x8x1xf32>
    %cst_57 = arith.constant 5.000000e+00 : f32
    %200 = vector.broadcast %cst_57 : f32 to vector<4x8x1xf32>
    %201 = arith.cmpf oge, %199, %200 : vector<4x8x1xf32>
    %202 = arith.select %201, %193, %189 : vector<4x8x1xi1>, vector<4x8x1xf32>
    %203 = arith.select %201, %190, %193 : vector<4x8x1xi1>, vector<4x8x1xf32>
    %c12_i32 = arith.constant 12 : i32
    %204 = arith.addf %202, %203 : vector<4x8x1xf32>
    %cst_58 = arith.constant 5.000000e-01 : f32
    %205 = vector.broadcast %cst_58 : f32 to vector<4x8x1xf32>
    %206 = arith.mulf %205, %204 : vector<4x8x1xf32>
    %207 = vector.broadcast %206 : vector<4x8x1xf32> to vector<4x8x8xf32>
    %208 = arith.cmpf ogt, %41, %207 : vector<4x8x8xf32>
    %209 = arith.extui %208 : vector<4x8x8xi1> to vector<4x8x8xi32>
    %210 = arith.sitofp %209 : vector<4x8x8xi32> to vector<4x8x8xf32>
    %cst_59 = arith.constant dense<0.000000e+00> : vector<4x8xf32>
    %211 = vector.multi_reduction <add>, %210, %cst_59 [2] : vector<4x8x8xf32> to vector<4x8xf32>
    %212 = vector.shape_cast %211 : vector<4x8xf32> to vector<4x8x1xf32>
    %cst_60 = arith.constant 5.000000e+00 : f32
    %213 = vector.broadcast %cst_60 : f32 to vector<4x8x1xf32>
    %214 = arith.cmpf oge, %212, %213 : vector<4x8x1xf32>
    %215 = arith.select %214, %206, %202 : vector<4x8x1xi1>, vector<4x8x1xf32>
    %216 = arith.select %214, %203, %206 : vector<4x8x1xi1>, vector<4x8x1xf32>
    %c13_i32 = arith.constant 13 : i32
    %217 = arith.addf %215, %216 : vector<4x8x1xf32>
    %cst_61 = arith.constant 5.000000e-01 : f32
    %218 = vector.broadcast %cst_61 : f32 to vector<4x8x1xf32>
    %219 = arith.mulf %218, %217 : vector<4x8x1xf32>
    %220 = vector.broadcast %219 : vector<4x8x1xf32> to vector<4x8x8xf32>
    %221 = arith.cmpf ogt, %41, %220 : vector<4x8x8xf32>
    %222 = arith.extui %221 : vector<4x8x8xi1> to vector<4x8x8xi32>
    %223 = arith.sitofp %222 : vector<4x8x8xi32> to vector<4x8x8xf32>
    %cst_62 = arith.constant dense<0.000000e+00> : vector<4x8xf32>
    %224 = vector.multi_reduction <add>, %223, %cst_62 [2] : vector<4x8x8xf32> to vector<4x8xf32>
    %225 = vector.shape_cast %224 : vector<4x8xf32> to vector<4x8x1xf32>
    %cst_63 = arith.constant 5.000000e+00 : f32
    %226 = vector.broadcast %cst_63 : f32 to vector<4x8x1xf32>
    %227 = arith.cmpf oge, %225, %226 : vector<4x8x1xf32>
    %228 = arith.select %227, %219, %215 : vector<4x8x1xi1>, vector<4x8x1xf32>
    %229 = arith.select %227, %216, %219 : vector<4x8x1xi1>, vector<4x8x1xf32>
    %c14_i32 = arith.constant 14 : i32
    %230 = arith.addf %228, %229 : vector<4x8x1xf32>
    %cst_64 = arith.constant 5.000000e-01 : f32
    %231 = vector.broadcast %cst_64 : f32 to vector<4x8x1xf32>
    %232 = arith.mulf %231, %230 : vector<4x8x1xf32>
    %233 = vector.broadcast %232 : vector<4x8x1xf32> to vector<4x8x8xf32>
    %234 = arith.cmpf ogt, %41, %233 : vector<4x8x8xf32>
    %235 = arith.extui %234 : vector<4x8x8xi1> to vector<4x8x8xi32>
    %236 = arith.sitofp %235 : vector<4x8x8xi32> to vector<4x8x8xf32>
    %cst_65 = arith.constant dense<0.000000e+00> : vector<4x8xf32>
    %237 = vector.multi_reduction <add>, %236, %cst_65 [2] : vector<4x8x8xf32> to vector<4x8xf32>
    %238 = vector.shape_cast %237 : vector<4x8xf32> to vector<4x8x1xf32>
    %cst_66 = arith.constant 5.000000e+00 : f32
    %239 = vector.broadcast %cst_66 : f32 to vector<4x8x1xf32>
    %240 = arith.cmpf oge, %238, %239 : vector<4x8x1xf32>
    %241 = arith.select %240, %232, %228 : vector<4x8x1xi1>, vector<4x8x1xf32>
    %242 = arith.select %240, %229, %232 : vector<4x8x1xi1>, vector<4x8x1xf32>
    %c15_i32 = arith.constant 15 : i32
    %243 = arith.addf %241, %242 : vector<4x8x1xf32>
    %cst_67 = arith.constant 5.000000e-01 : f32
    %244 = vector.broadcast %cst_67 : f32 to vector<4x8x1xf32>
    %245 = arith.mulf %244, %243 : vector<4x8x1xf32>
    %246 = vector.broadcast %245 : vector<4x8x1xf32> to vector<4x8x8xf32>
    %247 = arith.cmpf ogt, %41, %246 : vector<4x8x8xf32>
    %248 = arith.extui %247 : vector<4x8x8xi1> to vector<4x8x8xi32>
    %249 = arith.sitofp %248 : vector<4x8x8xi32> to vector<4x8x8xf32>
    %cst_68 = arith.constant dense<0.000000e+00> : vector<4x8xf32>
    %250 = vector.multi_reduction <add>, %249, %cst_68 [2] : vector<4x8x8xf32> to vector<4x8xf32>
    %251 = vector.shape_cast %250 : vector<4x8xf32> to vector<4x8x1xf32>
    %cst_69 = arith.constant 5.000000e+00 : f32
    %252 = vector.broadcast %cst_69 : f32 to vector<4x8x1xf32>
    %253 = arith.cmpf oge, %251, %252 : vector<4x8x1xf32>
    %254 = arith.select %253, %245, %241 : vector<4x8x1xi1>, vector<4x8x1xf32>
    %255 = arith.select %253, %242, %245 : vector<4x8x1xi1>, vector<4x8x1xf32>
    %c16_i32 = arith.constant 16 : i32
    %256 = arith.addf %254, %255 : vector<4x8x1xf32>
    %cst_70 = arith.constant 5.000000e-01 : f32
    %257 = vector.broadcast %cst_70 : f32 to vector<4x8x1xf32>
    %258 = arith.mulf %257, %256 : vector<4x8x1xf32>
    %259 = vector.broadcast %258 : vector<4x8x1xf32> to vector<4x8x8xf32>
    %260 = arith.cmpf ogt, %41, %259 : vector<4x8x8xf32>
    %261 = arith.extui %260 : vector<4x8x8xi1> to vector<4x8x8xi32>
    %262 = arith.sitofp %261 : vector<4x8x8xi32> to vector<4x8x8xf32>
    %cst_71 = arith.constant dense<0.000000e+00> : vector<4x8xf32>
    %263 = vector.multi_reduction <add>, %262, %cst_71 [2] : vector<4x8x8xf32> to vector<4x8xf32>
    %264 = vector.shape_cast %263 : vector<4x8xf32> to vector<4x8x1xf32>
    %cst_72 = arith.constant 5.000000e+00 : f32
    %265 = vector.broadcast %cst_72 : f32 to vector<4x8x1xf32>
    %266 = arith.cmpf oge, %264, %265 : vector<4x8x1xf32>
    %267 = arith.select %266, %258, %254 : vector<4x8x1xi1>, vector<4x8x1xf32>
    %268 = arith.select %266, %255, %258 : vector<4x8x1xi1>, vector<4x8x1xf32>
    %c17_i32 = arith.constant 17 : i32
    %269 = arith.addf %267, %268 : vector<4x8x1xf32>
    %cst_73 = arith.constant 5.000000e-01 : f32
    %270 = vector.broadcast %cst_73 : f32 to vector<4x8x1xf32>
    %271 = arith.mulf %270, %269 : vector<4x8x1xf32>
    %272 = vector.broadcast %271 : vector<4x8x1xf32> to vector<4x8x8xf32>
    %273 = arith.cmpf ogt, %41, %272 : vector<4x8x8xf32>
    %274 = arith.extui %273 : vector<4x8x8xi1> to vector<4x8x8xi32>
    %275 = arith.sitofp %274 : vector<4x8x8xi32> to vector<4x8x8xf32>
    %cst_74 = arith.constant dense<0.000000e+00> : vector<4x8xf32>
    %276 = vector.multi_reduction <add>, %275, %cst_74 [2] : vector<4x8x8xf32> to vector<4x8xf32>
    %277 = vector.shape_cast %276 : vector<4x8xf32> to vector<4x8x1xf32>
    %cst_75 = arith.constant 5.000000e+00 : f32
    %278 = vector.broadcast %cst_75 : f32 to vector<4x8x1xf32>
    %279 = arith.cmpf oge, %277, %278 : vector<4x8x1xf32>
    %280 = arith.select %279, %271, %267 : vector<4x8x1xi1>, vector<4x8x1xf32>
    %281 = arith.select %279, %268, %271 : vector<4x8x1xi1>, vector<4x8x1xf32>
    %c18_i32 = arith.constant 18 : i32
    %282 = arith.addf %280, %281 : vector<4x8x1xf32>
    %cst_76 = arith.constant 5.000000e-01 : f32
    %283 = vector.broadcast %cst_76 : f32 to vector<4x8x1xf32>
    %284 = arith.mulf %283, %282 : vector<4x8x1xf32>
    %285 = vector.broadcast %284 : vector<4x8x1xf32> to vector<4x8x8xf32>
    %286 = arith.cmpf ogt, %41, %285 : vector<4x8x8xf32>
    %287 = arith.extui %286 : vector<4x8x8xi1> to vector<4x8x8xi32>
    %288 = arith.sitofp %287 : vector<4x8x8xi32> to vector<4x8x8xf32>
    %cst_77 = arith.constant dense<0.000000e+00> : vector<4x8xf32>
    %289 = vector.multi_reduction <add>, %288, %cst_77 [2] : vector<4x8x8xf32> to vector<4x8xf32>
    %290 = vector.shape_cast %289 : vector<4x8xf32> to vector<4x8x1xf32>
    %cst_78 = arith.constant 5.000000e+00 : f32
    %291 = vector.broadcast %cst_78 : f32 to vector<4x8x1xf32>
    %292 = arith.cmpf oge, %290, %291 : vector<4x8x1xf32>
    %293 = arith.select %292, %284, %280 : vector<4x8x1xi1>, vector<4x8x1xf32>
    %294 = arith.select %292, %281, %284 : vector<4x8x1xi1>, vector<4x8x1xf32>
    %c19_i32 = arith.constant 19 : i32
    %295 = arith.addf %293, %294 : vector<4x8x1xf32>
    %cst_79 = arith.constant 5.000000e-01 : f32
    %296 = vector.broadcast %cst_79 : f32 to vector<4x8x1xf32>
    %297 = arith.mulf %296, %295 : vector<4x8x1xf32>
    %298 = vector.broadcast %297 : vector<4x8x1xf32> to vector<4x8x8xf32>
    %299 = arith.cmpf ogt, %41, %298 : vector<4x8x8xf32>
    %300 = arith.extui %299 : vector<4x8x8xi1> to vector<4x8x8xi32>
    %301 = arith.sitofp %300 : vector<4x8x8xi32> to vector<4x8x8xf32>
    %cst_80 = arith.constant dense<0.000000e+00> : vector<4x8xf32>
    %302 = vector.multi_reduction <add>, %301, %cst_80 [2] : vector<4x8x8xf32> to vector<4x8xf32>
    %303 = vector.shape_cast %302 : vector<4x8xf32> to vector<4x8x1xf32>
    %cst_81 = arith.constant 5.000000e+00 : f32
    %304 = vector.broadcast %cst_81 : f32 to vector<4x8x1xf32>
    %305 = arith.cmpf oge, %303, %304 : vector<4x8x1xf32>
    %306 = arith.select %305, %297, %293 : vector<4x8x1xi1>, vector<4x8x1xf32>
    %307 = arith.select %305, %294, %297 : vector<4x8x1xi1>, vector<4x8x1xf32>
    %c20_i32 = arith.constant 20 : i32
    %308 = arith.addf %306, %307 : vector<4x8x1xf32>
    %cst_82 = arith.constant 5.000000e-01 : f32
    %309 = vector.broadcast %cst_82 : f32 to vector<4x8x1xf32>
    %310 = arith.mulf %309, %308 : vector<4x8x1xf32>
    %311 = vector.broadcast %310 : vector<4x8x1xf32> to vector<4x8x8xf32>
    %312 = arith.cmpf ogt, %41, %311 : vector<4x8x8xf32>
    %313 = arith.extui %312 : vector<4x8x8xi1> to vector<4x8x8xi32>
    %314 = arith.sitofp %313 : vector<4x8x8xi32> to vector<4x8x8xf32>
    %cst_83 = arith.constant dense<0.000000e+00> : vector<4x8xf32>
    %315 = vector.multi_reduction <add>, %314, %cst_83 [2] : vector<4x8x8xf32> to vector<4x8xf32>
    %316 = vector.shape_cast %315 : vector<4x8xf32> to vector<4x8x1xf32>
    %cst_84 = arith.constant 5.000000e+00 : f32
    %317 = vector.broadcast %cst_84 : f32 to vector<4x8x1xf32>
    %318 = arith.cmpf oge, %316, %317 : vector<4x8x1xf32>
    %319 = arith.select %318, %310, %306 : vector<4x8x1xi1>, vector<4x8x1xf32>
    %320 = arith.select %318, %307, %310 : vector<4x8x1xi1>, vector<4x8x1xf32>
    %c21_i32 = arith.constant 21 : i32
    %321 = arith.addf %319, %320 : vector<4x8x1xf32>
    %cst_85 = arith.constant 5.000000e-01 : f32
    %322 = vector.broadcast %cst_85 : f32 to vector<4x8x1xf32>
    %323 = arith.mulf %322, %321 : vector<4x8x1xf32>
    %324 = vector.broadcast %323 : vector<4x8x1xf32> to vector<4x8x8xf32>
    %325 = arith.cmpf ogt, %41, %324 : vector<4x8x8xf32>
    %326 = arith.extui %325 : vector<4x8x8xi1> to vector<4x8x8xi32>
    %327 = arith.sitofp %326 : vector<4x8x8xi32> to vector<4x8x8xf32>
    %cst_86 = arith.constant dense<0.000000e+00> : vector<4x8xf32>
    %328 = vector.multi_reduction <add>, %327, %cst_86 [2] : vector<4x8x8xf32> to vector<4x8xf32>
    %329 = vector.shape_cast %328 : vector<4x8xf32> to vector<4x8x1xf32>
    %cst_87 = arith.constant 5.000000e+00 : f32
    %330 = vector.broadcast %cst_87 : f32 to vector<4x8x1xf32>
    %331 = arith.cmpf oge, %329, %330 : vector<4x8x1xf32>
    %332 = arith.select %331, %323, %319 : vector<4x8x1xi1>, vector<4x8x1xf32>
    %333 = arith.select %331, %320, %323 : vector<4x8x1xi1>, vector<4x8x1xf32>
    %c22_i32 = arith.constant 22 : i32
    %334 = arith.addf %332, %333 : vector<4x8x1xf32>
    %cst_88 = arith.constant 5.000000e-01 : f32
    %335 = vector.broadcast %cst_88 : f32 to vector<4x8x1xf32>
    %336 = arith.mulf %335, %334 : vector<4x8x1xf32>
    %337 = vector.broadcast %336 : vector<4x8x1xf32> to vector<4x8x8xf32>
    %338 = arith.cmpf ogt, %41, %337 : vector<4x8x8xf32>
    %339 = arith.extui %338 : vector<4x8x8xi1> to vector<4x8x8xi32>
    %340 = arith.sitofp %339 : vector<4x8x8xi32> to vector<4x8x8xf32>
    %cst_89 = arith.constant dense<0.000000e+00> : vector<4x8xf32>
    %341 = vector.multi_reduction <add>, %340, %cst_89 [2] : vector<4x8x8xf32> to vector<4x8xf32>
    %342 = vector.shape_cast %341 : vector<4x8xf32> to vector<4x8x1xf32>
    %cst_90 = arith.constant 5.000000e+00 : f32
    %343 = vector.broadcast %cst_90 : f32 to vector<4x8x1xf32>
    %344 = arith.cmpf oge, %342, %343 : vector<4x8x1xf32>
    %345 = arith.select %344, %336, %332 : vector<4x8x1xi1>, vector<4x8x1xf32>
    %346 = arith.select %344, %333, %336 : vector<4x8x1xi1>, vector<4x8x1xf32>
    %c23_i32 = arith.constant 23 : i32
    %347 = arith.addf %345, %346 : vector<4x8x1xf32>
    %cst_91 = arith.constant 5.000000e-01 : f32
    %348 = vector.broadcast %cst_91 : f32 to vector<4x8x1xf32>
    %349 = arith.mulf %348, %347 : vector<4x8x1xf32>
    %350 = vector.broadcast %349 : vector<4x8x1xf32> to vector<4x8x8xf32>
    %351 = arith.cmpf ogt, %41, %350 : vector<4x8x8xf32>
    %352 = arith.extui %351 : vector<4x8x8xi1> to vector<4x8x8xi32>
    %353 = arith.sitofp %352 : vector<4x8x8xi32> to vector<4x8x8xf32>
    %cst_92 = arith.constant dense<0.000000e+00> : vector<4x8xf32>
    %354 = vector.multi_reduction <add>, %353, %cst_92 [2] : vector<4x8x8xf32> to vector<4x8xf32>
    %355 = vector.shape_cast %354 : vector<4x8xf32> to vector<4x8x1xf32>
    %cst_93 = arith.constant 5.000000e+00 : f32
    %356 = vector.broadcast %cst_93 : f32 to vector<4x8x1xf32>
    %357 = arith.cmpf oge, %355, %356 : vector<4x8x1xf32>
    %358 = arith.select %357, %349, %345 : vector<4x8x1xi1>, vector<4x8x1xf32>
    %359 = arith.select %357, %346, %349 : vector<4x8x1xi1>, vector<4x8x1xf32>
    %360 = vector.broadcast %358 : vector<4x8x1xf32> to vector<4x8x8xf32>
    %361 = arith.cmpf ogt, %41, %360 : vector<4x8x8xf32>
    %362 = vector.broadcast %43 : vector<4x8x1xf32> to vector<4x8x8xf32>
    %363 = arith.subf %41, %362 : vector<4x8x8xf32>
    %364 = math.exp %363 : vector<4x8x8xf32>
    %cst_94 = arith.constant 0.000000e+00 : f32
    %365 = vector.broadcast %cst_94 : f32 to vector<4x8x8xf32>
    %366 = arith.select %361, %364, %365 : vector<4x8x8xi1>, vector<4x8x8xf32>
    %cst_95 = arith.constant dense<0.000000e+00> : vector<4x8xf32>
    %367 = vector.multi_reduction <add>, %366, %cst_95 [2] : vector<4x8x8xf32> to vector<4x8xf32>
    %368 = vector.shape_cast %367 : vector<4x8xf32> to vector<4x8x1xf32>
    %369 = arith.truncf %366 : vector<4x8x8xf32> to vector<4x8x8xbf16>
    "tpu.trace_start"() <{level = 10 : i32, message = "hqk,hke->hqe"}> : () -> ()
    %cst_96 = arith.constant dense<0.000000e+00> : vector<4x8x8xf32>
    %370 = tpu.matmul %369, %40, %cst_96 {dimension_numbers = #tpu.dot_dimension_numbers<[2], [1], [1], [2], [0, 0, 0, 1, 1, 2], [0], [0]>} : vector<4x8x8xbf16>, vector<4x8x8xbf16>, vector<4x8x8xf32> -> vector<4x8x8xf32>
    "tpu.trace_stop"() : () -> ()
    %371 = tpu.reciprocal %368 {approx = true} : vector<4x8x1xf32> -> vector<4x8x1xf32>
    %372 = vector.broadcast %371 : vector<4x8x1xf32> to vector<4x8x8xf32>
    %373 = arith.mulf %370, %372 : vector<4x8x8xf32>
    %374 = tpu.transpose %373, [1, 0, 2] : vector<4x8x8xf32> -> vector<8x4x8xf32>
    %375 = vector.shape_cast %374 : vector<8x4x8xf32> to vector<8x32xf32>
    %376 = arith.truncf %375 : vector<8x32xf32> to vector<8x32xbf16>
    %c0_97 = arith.constant 0 : index
    %c0_98 = arith.constant 0 : index
    %c0_99 = arith.constant 0 : index
    %377 = vector.load %arg6[%c0_97, %c0_98, %c0_99] : memref<1x32x32xbf16, #tpu.memory_space<vmem>>, vector<1x32x32xbf16>
    %378 = vector.shape_cast %377 : vector<1x32x32xbf16> to vector<32x32xbf16>
    %cst_100 = arith.constant dense<0.000000e+00> : vector<8x32xf32>
    %379 = tpu.matmul %376, %378, %cst_100 {dimension_numbers = #tpu.dot_dimension_numbers<[1], [0], [0], [1], [0, 0, 1, 1], [], []>} : vector<8x32xbf16>, vector<32x32xbf16>, vector<8x32xf32> -> vector<8x32xf32>
    %c0_101 = arith.constant 0 : index
    %c0_102 = arith.constant 0 : index
    %c0_103 = arith.constant 0 : index
    %380 = vector.load %arg7[%c0_101, %c0_102, %c0_103] : memref<1x1x32xf32, #tpu.memory_space<vmem>>, vector<1x1x32xf32>
    %381 = vector.shape_cast %380 : vector<1x1x32xf32> to vector<1x32xf32>
    %382 = vector.broadcast %381 : vector<1x32xf32> to vector<8x32xf32>
    %383 = arith.addf %379, %382 : vector<8x32xf32>
    %384 = arith.addf %4, %383 : vector<8x32xf32>
    %c0_104 = arith.constant 0 : index
    %c0_105 = arith.constant 0 : index
    %c0_106 = arith.constant 0 : index
    %385 = vector.load %arg8[%c0_104, %c0_105, %c0_106] : memref<1x1x32xf32, #tpu.memory_space<vmem>>, vector<1x1x32xf32>
    %386 = vector.shape_cast %385 : vector<1x1x32xf32> to vector<1x32xf32>
    %c0_107 = arith.constant 0 : index
    %c0_108 = arith.constant 0 : index
    %c0_109 = arith.constant 0 : index
    %387 = vector.load %arg9[%c0_107, %c0_108, %c0_109] : memref<1x1x32xf32, #tpu.memory_space<vmem>>, vector<1x1x32xf32>
    %388 = vector.shape_cast %387 : vector<1x1x32xf32> to vector<1x32xf32>
    %cst_110 = arith.constant dense<0.000000e+00> : vector<8xf32>
    %389 = vector.multi_reduction <add>, %384, %cst_110 [1] : vector<8x32xf32> to vector<8xf32>
    %390 = vector.shape_cast %389 : vector<8xf32> to vector<8x1xf32>
    %cst_111 = arith.constant 3.200000e+01 : f32
    %391 = vector.broadcast %cst_111 : f32 to vector<8x1xf32>
    %392 = arith.divf %390, %391 : vector<8x1xf32>
    %393 = vector.broadcast %392 : vector<8x1xf32> to vector<8x32xf32>
    %394 = arith.subf %384, %393 : vector<8x32xf32>
    %395 = arith.mulf %394, %394 : vector<8x32xf32>
    %cst_112 = arith.constant dense<0.000000e+00> : vector<8xf32>
    %396 = vector.multi_reduction <add>, %395, %cst_112 [1] : vector<8x32xf32> to vector<8xf32>
    %397 = vector.shape_cast %396 : vector<8xf32> to vector<8x1xf32>
    %cst_113 = arith.constant 3.200000e+01 : f32
    %398 = vector.broadcast %cst_113 : f32 to vector<8x1xf32>
    %399 = arith.divf %397, %398 : vector<8x1xf32>
    %400 = vector.broadcast %392 : vector<8x1xf32> to vector<8x32xf32>
    %401 = arith.subf %384, %400 : vector<8x32xf32>
    %cst_114 = arith.constant 9.99999974E-6 : f32
    %402 = vector.broadcast %cst_114 : f32 to vector<8x1xf32>
    %403 = arith.addf %399, %402 : vector<8x1xf32>
    %404 = math.rsqrt %403 : vector<8x1xf32>
    %405 = vector.broadcast %404 : vector<8x1xf32> to vector<8x32xf32>
    %406 = arith.mulf %401, %405 : vector<8x32xf32>
    %407 = vector.broadcast %386 : vector<1x32xf32> to vector<8x32xf32>
    %408 = arith.mulf %406, %407 : vector<8x32xf32>
    %409 = vector.broadcast %388 : vector<1x32xf32> to vector<8x32xf32>
    %410 = arith.addf %408, %409 : vector<8x32xf32>
    %411 = arith.truncf %410 : vector<8x32xf32> to vector<8x32xbf16>
    %c0_115 = arith.constant 0 : index
    %c0_116 = arith.constant 0 : index
    %c0_117 = arith.constant 0 : index
    %412 = vector.load %arg10[%c0_115, %c0_116, %c0_117] : memref<1x32x64xbf16, #tpu.memory_space<vmem>>, vector<1x32x64xbf16>
    %413 = vector.shape_cast %412 : vector<1x32x64xbf16> to vector<32x64xbf16>
    %cst_118 = arith.constant dense<0.000000e+00> : vector<8x64xf32>
    %414 = tpu.matmul %411, %413, %cst_118 {dimension_numbers = #tpu.dot_dimension_numbers<[1], [0], [0], [1], [0, 0, 1, 1], [], []>} : vector<8x32xbf16>, vector<32x64xbf16>, vector<8x64xf32> -> vector<8x64xf32>
    %c0_119 = arith.constant 0 : index
    %c0_120 = arith.constant 0 : index
    %c0_121 = arith.constant 0 : index
    %415 = vector.load %arg11[%c0_119, %c0_120, %c0_121] : memref<1x1x64xf32, #tpu.memory_space<vmem>>, vector<1x1x64xf32>
    %416 = vector.shape_cast %415 : vector<1x1x64xf32> to vector<1x64xf32>
    %417 = vector.broadcast %416 : vector<1x64xf32> to vector<8x64xf32>
    %418 = arith.addf %414, %417 : vector<8x64xf32>
    %419 = arith.mulf %418, %418 : vector<8x64xf32>
    %420 = arith.mulf %418, %419 : vector<8x64xf32>
    %cst_122 = arith.constant 4.471500e-02 : f32
    %421 = vector.broadcast %cst_122 : f32 to vector<8x64xf32>
    %422 = arith.mulf %421, %420 : vector<8x64xf32>
    %423 = arith.addf %418, %422 : vector<8x64xf32>
    %cst_123 = arith.constant 0.797884583 : f32
    %424 = vector.broadcast %cst_123 : f32 to vector<8x64xf32>
    %425 = arith.mulf %424, %423 : vector<8x64xf32>
    %426 = math.tanh %425 : vector<8x64xf32>
    %cst_124 = arith.constant 1.000000e+00 : f32
    %427 = vector.broadcast %cst_124 : f32 to vector<8x64xf32>
    %428 = arith.addf %427, %426 : vector<8x64xf32>
    %cst_125 = arith.constant 5.000000e-01 : f32
    %429 = vector.broadcast %cst_125 : f32 to vector<8x64xf32>
    %430 = arith.mulf %429, %428 : vector<8x64xf32>
    %431 = arith.mulf %418, %430 : vector<8x64xf32>
    %432 = arith.truncf %431 : vector<8x64xf32> to vector<8x64xbf16>
    %c0_126 = arith.constant 0 : index
    %c0_127 = arith.constant 0 : index
    %c0_128 = arith.constant 0 : index
    %433 = vector.load %arg12[%c0_126, %c0_127, %c0_128] : memref<1x64x32xbf16, #tpu.memory_space<vmem>>, vector<1x64x32xbf16>
    %434 = vector.shape_cast %433 : vector<1x64x32xbf16> to vector<64x32xbf16>
    %cst_129 = arith.constant dense<0.000000e+00> : vector<8x32xf32>
    %435 = tpu.matmul %432, %434, %cst_129 {dimension_numbers = #tpu.dot_dimension_numbers<[1], [0], [0], [1], [0, 0, 1, 1], [], []>} : vector<8x64xbf16>, vector<64x32xbf16>, vector<8x32xf32> -> vector<8x32xf32>
    %c0_130 = arith.constant 0 : index
    %c0_131 = arith.constant 0 : index
    %c0_132 = arith.constant 0 : index
    %436 = vector.load %arg13[%c0_130, %c0_131, %c0_132] : memref<1x1x32xf32, #tpu.memory_space<vmem>>, vector<1x1x32xf32>
    %437 = vector.shape_cast %436 : vector<1x1x32xf32> to vector<1x32xf32>
    %438 = vector.broadcast %437 : vector<1x32xf32> to vector<8x32xf32>
    %439 = arith.addf %435, %438 : vector<8x32xf32>
    %440 = arith.addf %384, %439 : vector<8x32xf32>
    %c0_133 = arith.constant 0 : index
    %c0_134 = arith.constant 0 : index
    %c0_135 = arith.constant 0 : index
    %441 = vector.load %arg14[%c0_133, %c0_134, %c0_135] : memref<1x8x32xf32, #tpu.memory_space<vmem>>, vector<1x8x32xf32>
    %442 = vector.shape_cast %441 : vector<1x8x32xf32> to vector<8x32xf32>
    %443 = vector.shape_cast %440 : vector<8x32xf32> to vector<1x8x32xf32>
    tpu.vector_store %arg14[%c0_133, %c0_134, %c0_135], %443 {strides = array<i32>} : memref<1x8x32xf32, #tpu.memory_space<vmem>>, vector<1x8x32xf32>,
    %444 = vector.extract_strided_slice %440 {offsets = [0, 0], sizes = [1, 32], strides = [1, 1]} : vector<8x32xf32> to vector<1x32xf32>
    %c0_136 = arith.constant 0 : index
    %c0_137 = arith.constant 0 : index
    %c0_138 = arith.constant 0 : index
    %c0_139 = arith.constant 0 : index
    %445 = vector.load %arg15[%c0_136, %c0_137, %c0_138, %c0_139] : memref<1x1x1x32xf32, #tpu.memory_space<vmem>>, vector<1x1x1x32xf32>
    %446 = vector.shape_cast %445 : vector<1x1x1x32xf32> to vector<1x32xf32>
    %447 = vector.shape_cast %444 : vector<1x32xf32> to vector<1x1x1x32xf32>
    tpu.vector_store %arg15[%c0_136, %c0_137, %c0_138, %c0_139], %447 {strides = array<i32>} : memref<1x1x1x32xf32, #tpu.memory_space<vmem>>, vector<1x1x1x32xf32>,
    return
  }
  func.func @transform_0(%arg0: i32, %arg1: i32) -> (i32, i32, i32) {
    %c0_i32 = arith.constant 0 : i32
    %c0_i32_0 = arith.constant 0 : i32
    %c0_i32_1 = arith.constant 0 : i32
    return %arg0, %c0_i32, %c0_i32_0 : i32, i32, i32
  }
  func.func @transform_1(%arg0: i32, %arg1: i32) -> (i32, i32, i32) {
    %c0_i32 = arith.constant 0 : i32
    %c0_i32_0 = arith.constant 0 : i32
    %c0_i32_1 = arith.constant 0 : i32
    return %arg1, %c0_i32, %c0_i32_0 : i32, i32, i32
  }
  func.func @transform_2(%arg0: i32, %arg1: i32) -> (i32, i32, i32) {
    %c0_i32 = arith.constant 0 : i32
    %c0_i32_0 = arith.constant 0 : i32
    %c0_i32_1 = arith.constant 0 : i32
    return %arg1, %c0_i32, %c0_i32_0 : i32, i32, i32
  }
  func.func @transform_3(%arg0: i32, %arg1: i32) -> (i32, i32, i32) {
    %c0_i32 = arith.constant 0 : i32
    %c0_i32_0 = arith.constant 0 : i32
    %c0_i32_1 = arith.constant 0 : i32
    return %arg1, %c0_i32, %c0_i32_0 : i32, i32, i32
  }
  func.func @transform_4(%arg0: i32, %arg1: i32) -> (i32, i32, i32) {
    %c0_i32 = arith.constant 0 : i32
    %c0_i32_0 = arith.constant 0 : i32
    %c0_i32_1 = arith.constant 0 : i32
    return %arg1, %c0_i32, %c0_i32_0 : i32, i32, i32
  }
  func.func @transform_5(%arg0: i32, %arg1: i32) -> (i32, i32, i32) {
    %c0_i32 = arith.constant 0 : i32
    %c0_i32_0 = arith.constant 0 : i32
    %c0_i32_1 = arith.constant 0 : i32
    return %arg1, %c0_i32, %c0_i32_0 : i32, i32, i32
  }
  func.func @transform_6(%arg0: i32, %arg1: i32) -> (i32, i32, i32) {
    %c0_i32 = arith.constant 0 : i32
    %c0_i32_0 = arith.constant 0 : i32
    %c0_i32_1 = arith.constant 0 : i32
    return %arg1, %c0_i32, %c0_i32_0 : i32, i32, i32
  }
  func.func @transform_7(%arg0: i32, %arg1: i32) -> (i32, i32, i32) {
    %c0_i32 = arith.constant 0 : i32
    %c0_i32_0 = arith.constant 0 : i32
    %c0_i32_1 = arith.constant 0 : i32
    return %arg1, %c0_i32, %c0_i32_0 : i32, i32, i32
  }
  func.func @transform_8(%arg0: i32, %arg1: i32) -> (i32, i32, i32) {
    %c0_i32 = arith.constant 0 : i32
    %c0_i32_0 = arith.constant 0 : i32
    %c0_i32_1 = arith.constant 0 : i32
    return %arg1, %c0_i32, %c0_i32_0 : i32, i32, i32
  }
  func.func @transform_9(%arg0: i32, %arg1: i32) -> (i32, i32, i32) {
    %c0_i32 = arith.constant 0 : i32
    %c0_i32_0 = arith.constant 0 : i32
    %c0_i32_1 = arith.constant 0 : i32
    return %arg1, %c0_i32, %c0_i32_0 : i32, i32, i32
  }
  func.func @transform_10(%arg0: i32, %arg1: i32) -> (i32, i32, i32) {
    %c0_i32 = arith.constant 0 : i32
    %c0_i32_0 = arith.constant 0 : i32
    %c0_i32_1 = arith.constant 0 : i32
    return %arg1, %c0_i32, %c0_i32_0 : i32, i32, i32
  }
  func.func @transform_11(%arg0: i32, %arg1: i32) -> (i32, i32, i32) {
    %c0_i32 = arith.constant 0 : i32
    %c0_i32_0 = arith.constant 0 : i32
    %c0_i32_1 = arith.constant 0 : i32
    return %arg1, %c0_i32, %c0_i32_0 : i32, i32, i32
  }
  func.func @transform_12(%arg0: i32, %arg1: i32) -> (i32, i32, i32) {
    %c0_i32 = arith.constant 0 : i32
    %c0_i32_0 = arith.constant 0 : i32
    %c0_i32_1 = arith.constant 0 : i32
    return %arg0, %c0_i32, %c0_i32_0 : i32, i32, i32
  }
  func.func @transform_13(%arg0: i32, %arg1: i32) -> (i32, i32, i32, i32) {
    %c0_i32 = arith.constant 0 : i32
    %c0_i32_0 = arith.constant 0 : i32
    %c0_i32_1 = arith.constant 0 : i32
    return %arg0, %arg1, %c0_i32, %c0_i32_0 : i32, i32, i32, i32
  }
}

</mosaic_0001>

<llo_original>
// kernel: tpu_custom_call.1
$region0: #{tpu_custom_call.1}
  #allocation0 [shape = 'u32[]', space=smem, size = 0x4, offset = 0x4, fixed_abs, tag = 'smem constant byte address 0x4 - core index']
  #allocation1 [shape = 'u32[144,128]{1,0:T(1,128)}', space=vmem, size = 0x12000, scoped, tag = 'internal scratch']
  %s0 = inlined_call_operand.hbm [shape: f32[2,8,32], index: 0, kind: input, shape index: {}]
  %s1 = inlined_call_operand.hbm [shape: f32[2,1,32], index: 1, kind: input, shape index: {}]
  %s2 = inlined_call_operand.vmem [shape: f32[2,1,32], index: 2, kind: input, shape index: {}]
  %s3 = inlined_call_operand.vmem [shape: bf16[2,32,96], index: 3, kind: input, shape index: {}]
  %s4 = inlined_call_operand.vmem [shape: bf16[2,32,32], index: 4, kind: input, shape index: {}]
  %s5 = inlined_call_operand.vmem [shape: f32[2,1,32], index: 5, kind: input, shape index: {}]
  %s6 = inlined_call_operand.vmem [shape: f32[2,1,32], index: 6, kind: input, shape index: {}]
  %s7 = inlined_call_operand.vmem [shape: f32[2,1,32], index: 7, kind: input, shape index: {}]
  %s8 = inlined_call_operand.vmem [shape: bf16[2,32,64], index: 8, kind: input, shape index: {}]
  %s9 = inlined_call_operand.vmem [shape: f32[2,1,64], index: 9, kind: input, shape index: {}]
  %s10 = inlined_call_operand.vmem [shape: bf16[2,64,32], index: 10, kind: input, shape index: {}]
  %s11 = inlined_call_operand.vmem [shape: f32[2,1,32], index: 11, kind: input, shape index: {}]
  %s12 = inlined_call_operand.hbm [shape: f32[2,8,32], index: 12, kind: output, shape index: {0}]
  %s13 = inlined_call_operand.hbm [shape: f32[2,2,1,32], index: 13, kind: output, shape index: {1}]
  %14 = xla_tuple %s12, %s13
  %s15 = sld [smem:[#allocation0]]
  $region101: #{tpu_custom_call.1} parent=0
    _
  %s17 = ssub.s32 1, %s15
  %s18 = scalar_select 0, %s17, %s15
  $region1: #{tpu_custom_call.1} parent=0
    #allocation2 [shape = 'u8[8192]{0}', space=vmem, size = 0x2000, scoped, tag = 'input window, operand 0']
    #allocation3 [shape = 's32[2]{0}', space=sflag, size = 0x8, scoped, tag = 'scoped memory for tpu_custom_call.1']
    #allocation4 [shape = 's32[2]{0}', space=sflag, size = 0x8, scoped, tag = 'scoped memory for tpu_custom_call.1']
    #allocation5 [shape = 'u8[1024]{0}', space=vmem, size = 0x400, scoped, tag = 'input window, operand 1']
    #allocation6 [shape = 's32[2]{0}', space=sflag, size = 0x8, scoped, tag = 'scoped memory for tpu_custom_call.1']
    #allocation7 [shape = 'u8[8192]{0}', space=vmem, size = 0x2000, scoped, tag = 'output window, operand 0']
    #allocation8 [shape = 'u8[1024]{0}', space=vmem, size = 0x400, scoped, tag = 'output window, operand 1']
    #allocation9 [shape = 's32[2]{0}', space=sflag, size = 0x8, scoped, tag = 'scoped memory for tpu_custom_call.1']
    %19 = vsyncpa [#allocation3], 0
    %s20 = scalar_lea.sflag [#allocation3], 1
    %21 = vsyncpa %s20, 0
    %22 = vsyncpa [#allocation6], 0
    %s23 = scalar_lea.sflag [#allocation6], 1
    %24 = vsyncpa %s23, 0
    %25 = vsyncpa [#allocation4], 0
    %s26 = scalar_lea.sflag [#allocation4], 1
    %27 = vsyncpa %s26, 0
    %28 = vsyncpa [#allocation9], 0
    %s29 = scalar_lea.sflag [#allocation9], 1
    %30 = vsyncpa %s29, 0
    loop: start=0, step=1, limit=6
    $region2: #{tpu_custom_call.1} parent=1 // loop_pre_header
      _
    $region3: #{tpu_custom_call.1} parent=1 // loop_header
      %s32 = sphi 0, %s36
      %p33 = scmp.ge.s32.totalorder %s32, 6
      %s39 = sphi 0, %s51
      %s40 = sphi 0, %s47
      %s41 = sphi 0, %s39
      %s42 = sphi 0, %s40
      %s43 = sphi 0, %s41
      %s44 = sphi 0, %s42
      %s54 = sphi 0, %s56
      %s57 = sphi 0, %s54
      %s58 = sphi 0, %s57
      %s74 = sphi 0, %s58
      %s80 = sphi 0, %s82
      %s83 = sphi 0, %s80
      %s84 = sphi 0, %s83
      %s100 = sphi 0, %s84
      %s106 = sphi 0, %s108
      %s109 = sphi 0, %s106
      %s110 = sphi 0, %s109
      %s126 = sphi 0, %s110
      %s132 = sphi 0, %s134
      %s135 = sphi 0, %s132
      %s136 = sphi 0, %s135
      %s152 = sphi 0, %s136
      %s158 = sphi 0, %s160
      %s161 = sphi 0, %s158
      %s162 = sphi 0, %s161
      %s178 = sphi 0, %s162
      %s184 = sphi 0, %s186
      %s187 = sphi 0, %s184
      %s188 = sphi 0, %s187
      %s204 = sphi 0, %s188
      %s210 = sphi 0, %s212
      %s213 = sphi 0, %s210
      %s214 = sphi 0, %s213
      %s230 = sphi 0, %s214
      %s236 = sphi 0, %s238
      %s239 = sphi 0, %s236
      %s240 = sphi 0, %s239
      %s256 = sphi 0, %s240
      %s262 = sphi 0, %s264
      %s265 = sphi 0, %s262
      %s266 = sphi 0, %s265
      %s282 = sphi 0, %s266
      %s288 = sphi 0, %s290
      %s291 = sphi 0, %s288
      %s292 = sphi 0, %s291
      %s308 = sphi 0, %s292
      %s314 = sphi 0, %s316
      %s317 = sphi 0, %s314
      %s318 = sphi 0, %s317
      %s334 = sphi 0, %s318
      %s340 = sphi 0, %s342
      %s343 = sphi 0, %s340
      %s344 = sphi 0, %s343
      %s360 = sphi 0, %s344
      %s366 = sphi 0, %s368
      %s369 = sphi 0, %s366
      %s370 = sphi 0, %s369
      %s386 = sphi 0, %s370
      %s394 = sphi 0, %s396
      %s397 = sphi 0, %s394
      %s398 = sphi 0, %s397
      %s414 = sphi 0, %s398
    $region4: #{tpu_custom_call.1} parent=1 // loop_header_branch
      %35 = sbr.rel (%p33) target = $region8
    $region5: #{tpu_custom_call.1} parent=1 // loop_body
      %s37 = ssub.s32 %s32, 1
      %s38 = ssub.s32 %s32, 2
      %s45 = sadd.s32 1, %s40
      %p46 = scmp.ge.s32.totalorder %s45, 2
      %s47 = scalar_select %p46, 0, %s45
      %s48 = sadd.s32 1, %s39
      %s49 = scalar_select %p46, %s48, %s39
      %p50 = scmp.ge.s32.totalorder %s49, 2
      %s51 = scalar_select %p50, 0, %s49
      %s52 = ssub.s32 %s39, %s51
      %p53 = scmp.eq.s32.totalorder %s52, 0
      %s55 = sadd.s32 %s54, 1
      %s56 = scalar_select %p53, %s54, %s55
      %p59 = pneg %p53
      %p60 = scmp.eq.s32.totalorder %s32, 3
      %p61 = por %p59, %p60
      %p62 = scmp.ne.s32.totalorder %s54, %s57
      %p63 = scmp.eq.s32.totalorder %s32, 0
      %p64 = por %p62, %p63
      %p65 = scmp.ne.s32.totalorder %s54, %s57
      %p66 = scmp.eq.s32.totalorder %s37, 3
      %p67 = por %p65, %p66
      %p68 = scmp.ne.s32.totalorder %s57, %s58
      %p69 = scmp.eq.s32.totalorder %s37, 0
      %p70 = por %p68, %p69
      %p71 = scmp.ne.s32.totalorder %s57, %s58
      %p72 = scmp.eq.s32.totalorder %s38, 3
      %p73 = por %p71, %p72
      %p75 = scmp.ne.s32.totalorder %s58, %s74
      %p76 = scmp.eq.s32.totalorder %s38, 0
      %p77 = por %p75, %p76
      %s78 = ssub.s32 %s40, %s47
      %p79 = scmp.eq.s32.totalorder %s78, 0
      %s81 = sadd.s32 %s80, 1
      %s82 = scalar_select %p79, %s80, %s81
      %p85 = pneg %p79
      %p86 = scmp.eq.s32.totalorder %s32, 3
      %p87 = por %p85, %p86
      %p88 = scmp.ne.s32.totalorder %s80, %s83
      %p89 = scmp.eq.s32.totalorder %s32, 0
      %p90 = por %p88, %p89
      %p91 = scmp.ne.s32.totalorder %s80, %s83
      %p92 = scmp.eq.s32.totalorder %s37, 3
      %p93 = por %p91, %p92
      %p94 = scmp.ne.s32.totalorder %s83, %s84
      %p95 = scmp.eq.s32.totalorder %s37, 0
      %p96 = por %p94, %p95
      %p97 = scmp.ne.s32.totalorder %s83, %s84
      %p98 = scmp.eq.s32.totalorder %s38, 3
      %p99 = por %p97, %p98
      %p101 = scmp.ne.s32.totalorder %s84, %s100
      %p102 = scmp.eq.s32.totalorder %s38, 0
      %p103 = por %p101, %p102
      %s104 = ssub.s32 %s40, %s47
      %p105 = scmp.eq.s32.totalorder %s104, 0
      %s107 = sadd.s32 %s106, 1
      %s108 = scalar_select %p105, %s106, %s107
      %p111 = pneg %p105
      %p112 = scmp.eq.s32.totalorder %s32, 3
      %p113 = por %p111, %p112
      %p114 = scmp.ne.s32.totalorder %s106, %s109
      %p115 = scmp.eq.s32.totalorder %s32, 0
      %p116 = por %p114, %p115
      %p117 = scmp.ne.s32.totalorder %s106, %s109
      %p118 = scmp.eq.s32.totalorder %s37, 3
      %p119 = por %p117, %p118
      %p120 = scmp.ne.s32.totalorder %s109, %s110
      %p121 = scmp.eq.s32.totalorder %s37, 0
      %p122 = por %p120, %p121
      %p123 = scmp.ne.s32.totalorder %s109, %s110
      %p124 = scmp.eq.s32.totalorder %s38, 3
      %p125 = por %p123, %p124
      %p127 = scmp.ne.s32.totalorder %s110, %s126
      %p128 = scmp.eq.s32.totalorder %s38, 0
      %p129 = por %p127, %p128
      %s130 = ssub.s32 %s40, %s47
      %p131 = scmp.eq.s32.totalorder %s130, 0
      %s133 = sadd.s32 %s132, 1
      %s134 = scalar_select %p131, %s132, %s133
      %p137 = pneg %p131
      %p138 = scmp.eq.s32.totalorder %s32, 3
      %p139 = por %p137, %p138
      %p140 = scmp.ne.s32.totalorder %s132, %s135
      %p141 = scmp.eq.s32.totalorder %s32, 0
      %p142 = por %p140, %p141
      %p143 = scmp.ne.s32.totalorder %s132, %s135
      %p144 = scmp.eq.s32.totalorder %s37, 3
      %p145 = por %p143, %p144
      %p146 = scmp.ne.s32.totalorder %s135, %s136
      %p147 = scmp.eq.s32.totalorder %s37, 0
      %p148 = por %p146, %p147
      %p149 = scmp.ne.s32.totalorder %s135, %s136
      %p150 = scmp.eq.s32.totalorder %s38, 3
      %p151 = por %p149, %p150
      %p153 = scmp.ne.s32.totalorder %s136, %s152
      %p154 = scmp.eq.s32.totalorder %s38, 0
      %p155 = por %p153, %p154
      %s156 = ssub.s32 %s40, %s47
      %p157 = scmp.eq.s32.totalorder %s156, 0
      %s159 = sadd.s32 %s158, 1
      %s160 = scalar_select %p157, %s158, %s159
      %p163 = pneg %p157
      %p164 = scmp.eq.s32.totalorder %s32, 3
      %p165 = por %p163, %p164
      %p166 = scmp.ne.s32.totalorder %s158, %s161
      %p167 = scmp.eq.s32.totalorder %s32, 0
      %p168 = por %p166, %p167
      %p169 = scmp.ne.s32.totalorder %s158, %s161
      %p170 = scmp.eq.s32.totalorder %s37, 3
      %p171 = por %p169, %p170
      %p172 = scmp.ne.s32.totalorder %s161, %s162
      %p173 = scmp.eq.s32.totalorder %s37, 0
      %p174 = por %p172, %p173
      %p175 = scmp.ne.s32.totalorder %s161, %s162
      %p176 = scmp.eq.s32.totalorder %s38, 3
      %p177 = por %p175, %p176
      %p179 = scmp.ne.s32.totalorder %s162, %s178
      %p180 = scmp.eq.s32.totalorder %s38, 0
      %p181 = por %p179, %p180
      %s182 = ssub.s32 %s40, %s47
      %p183 = scmp.eq.s32.totalorder %s182, 0
      %s185 = sadd.s32 %s184, 1
      %s186 = scalar_select %p183, %s184, %s185
      %p189 = pneg %p183
      %p190 = scmp.eq.s32.totalorder %s32, 3
      %p191 = por %p189, %p190
      %p192 = scmp.ne.s32.totalorder %s184, %s187
      %p193 = scmp.eq.s32.totalorder %s32, 0
      %p194 = por %p192, %p193
      %p195 = scmp.ne.s32.totalorder %s184, %s187
      %p196 = scmp.eq.s32.totalorder %s37, 3
      %p197 = por %p195, %p196
      %p198 = scmp.ne.s32.totalorder %s187, %s188
      %p199 = scmp.eq.s32.totalorder %s37, 0
      %p200 = por %p198, %p199
      %p201 = scmp.ne.s32.totalorder %s187, %s188
      %p202 = scmp.eq.s32.totalorder %s38, 3
      %p203 = por %p201, %p202
      %p205 = scmp.ne.s32.totalorder %s188, %s204
      %p206 = scmp.eq.s32.totalorder %s38, 0
      %p207 = por %p205, %p206
      %s208 = ssub.s32 %s40, %s47
      %p209 = scmp.eq.s32.totalorder %s208, 0
      %s211 = sadd.s32 %s210, 1
      %s212 = scalar_select %p209, %s210, %s211
      %p215 = pneg %p209
      %p216 = scmp.eq.s32.totalorder %s32, 3
      %p217 = por %p215, %p216
      %p218 = scmp.ne.s32.totalorder %s210, %s213
      %p219 = scmp.eq.s32.totalorder %s32, 0
      %p220 = por %p218, %p219
      %p221 = scmp.ne.s32.totalorder %s210, %s213
      %p222 = scmp.eq.s32.totalorder %s37, 3
      %p223 = por %p221, %p222
      %p224 = scmp.ne.s32.totalorder %s213, %s214
      %p225 = scmp.eq.s32.totalorder %s37, 0
      %p226 = por %p224, %p225
      %p227 = scmp.ne.s32.totalorder %s213, %s214
      %p228 = scmp.eq.s32.totalorder %s38, 3
      %p229 = por %p227, %p228
      %p231 = scmp.ne.s32.totalorder %s214, %s230
      %p232 = scmp.eq.s32.totalorder %s38, 0
      %p233 = por %p231, %p232
      %s234 = ssub.s32 %s40, %s47
      %p235 = scmp.eq.s32.totalorder %s234, 0
      %s237 = sadd.s32 %s236, 1
      %s238 = scalar_select %p235, %s236, %s237
      %p241 = pneg %p235
      %p242 = scmp.eq.s32.totalorder %s32, 3
      %p243 = por %p241, %p242
      %p244 = scmp.ne.s32.totalorder %s236, %s239
      %p245 = scmp.eq.s32.totalorder %s32, 0
      %p246 = por %p244, %p245
      %p247 = scmp.ne.s32.totalorder %s236, %s239
      %p248 = scmp.eq.s32.totalorder %s37, 3
      %p249 = por %p247, %p248
      %p250 = scmp.ne.s32.totalorder %s239, %s240
      %p251 = scmp.eq.s32.totalorder %s37, 0
      %p252 = por %p250, %p251
      %p253 = scmp.ne.s32.totalorder %s239, %s240
      %p254 = scmp.eq.s32.totalorder %s38, 3
      %p255 = por %p253, %p254
      %p257 = scmp.ne.s32.totalorder %s240, %s256
      %p258 = scmp.eq.s32.totalorder %s38, 0
      %p259 = por %p257, %p258
      %s260 = ssub.s32 %s40, %s47
      %p261 = scmp.eq.s32.totalorder %s260, 0
      %s263 = sadd.s32 %s262, 1
      %s264 = scalar_select %p261, %s262, %s263
      %p267 = pneg %p261
      %p268 = scmp.eq.s32.totalorder %s32, 3
      %p269 = por %p267, %p268
      %p270 = scmp.ne.s32.totalorder %s262, %s265
      %p271 = scmp.eq.s32.totalorder %s32, 0
      %p272 = por %p270, %p271
      %p273 = scmp.ne.s32.totalorder %s262, %s265
      %p274 = scmp.eq.s32.totalorder %s37, 3
      %p275 = por %p273, %p274
      %p276 = scmp.ne.s32.totalorder %s265, %s266
      %p277 = scmp.eq.s32.totalorder %s37, 0
      %p278 = por %p276, %p277
      %p279 = scmp.ne.s32.totalorder %s265, %s266
      %p280 = scmp.eq.s32.totalorder %s38, 3
      %p281 = por %p279, %p280
      %p283 = scmp.ne.s32.totalorder %s266, %s282
      %p284 = scmp.eq.s32.totalorder %s38, 0
      %p285 = por %p283, %p284
      %s286 = ssub.s32 %s40, %s47
      %p287 = scmp.eq.s32.totalorder %s286, 0
      %s289 = sadd.s32 %s288, 1
      %s290 = scalar_select %p287, %s288, %s289
      %p293 = pneg %p287
      %p294 = scmp.eq.s32.totalorder %s32, 3
      %p295 = por %p293, %p294
      %p296 = scmp.ne.s32.totalorder %s288, %s291
      %p297 = scmp.eq.s32.totalorder %s32, 0
      %p298 = por %p296, %p297
      %p299 = scmp.ne.s32.totalorder %s288, %s291
      %p300 = scmp.eq.s32.totalorder %s37, 3
      %p301 = por %p299, %p300
      %p302 = scmp.ne.s32.totalorder %s291, %s292
      %p303 = scmp.eq.s32.totalorder %s37, 0
      %p304 = por %p302, %p303
      %p305 = scmp.ne.s32.totalorder %s291, %s292
      %p306 = scmp.eq.s32.totalorder %s38, 3
      %p307 = por %p305, %p306
      %p309 = scmp.ne.s32.totalorder %s292, %s308
      %p310 = scmp.eq.s32.totalorder %s38, 0
      %p311 = por %p309, %p310
      %s312 = ssub.s32 %s40, %s47
      %p313 = scmp.eq.s32.totalorder %s312, 0
      %s315 = sadd.s32 %s314, 1
      %s316 = scalar_select %p313, %s314, %s315
      %p319 = pneg %p313
      %p320 = scmp.eq.s32.totalorder %s32, 3
      %p321 = por %p319, %p320
      %p322 = scmp.ne.s32.totalorder %s314, %s317
      %p323 = scmp.eq.s32.totalorder %s32, 0
      %p324 = por %p322, %p323
      %p325 = scmp.ne.s32.totalorder %s314, %s317
      %p326 = scmp.eq.s32.totalorder %s37, 3
      %p327 = por %p325, %p326
      %p328 = scmp.ne.s32.totalorder %s317, %s318
      %p329 = scmp.eq.s32.totalorder %s37, 0
      %p330 = por %p328, %p329
      %p331 = scmp.ne.s32.totalorder %s317, %s318
      %p332 = scmp.eq.s32.totalorder %s38, 3
      %p333 = por %p331, %p332
      %p335 = scmp.ne.s32.totalorder %s318, %s334
      %p336 = scmp.eq.s32.totalorder %s38, 0
      %p337 = por %p335, %p336
      %s338 = ssub.s32 %s40, %s47
      %p339 = scmp.eq.s32.totalorder %s338, 0
      %s341 = sadd.s32 %s340, 1
      %s342 = scalar_select %p339, %s340, %s341
      %p345 = pneg %p339
      %p346 = scmp.eq.s32.totalorder %s32, 3
      %p347 = por %p345, %p346
      %p348 = scmp.ne.s32.totalorder %s340, %s343
      %p349 = scmp.eq.s32.totalorder %s32, 0
      %p350 = por %p348, %p349
      %p351 = scmp.ne.s32.totalorder %s340, %s343
      %p352 = scmp.eq.s32.totalorder %s37, 3
      %p353 = por %p351, %p352
      %p354 = scmp.ne.s32.totalorder %s343, %s344
      %p355 = scmp.eq.s32.totalorder %s37, 0
      %p356 = por %p354, %p355
      %p357 = scmp.ne.s32.totalorder %s343, %s344
      %p358 = scmp.eq.s32.totalorder %s38, 3
      %p359 = por %p357, %p358
      %p361 = scmp.ne.s32.totalorder %s344, %s360
      %p362 = scmp.eq.s32.totalorder %s38, 0
      %p363 = por %p361, %p362
      %s364 = ssub.s32 %s39, %s51
      %p365 = scmp.eq.s32.totalorder %s364, 0
      %s367 = sadd.s32 %s366, 1
      %s368 = scalar_select %p365, %s366, %s367
      %p371 = pneg %p365
      %p372 = scmp.eq.s32.totalorder %s32, 3
      %p373 = por %p371, %p372
      %p374 = scmp.ne.s32.totalorder %s366, %s369
      %p375 = scmp.eq.s32.totalorder %s32, 0
      %p376 = por %p374, %p375
      %p377 = scmp.ne.s32.totalorder %s366, %s369
      %p378 = scmp.eq.s32.totalorder %s37, 3
      %p379 = por %p377, %p378
      %p380 = scmp.ne.s32.totalorder %s369, %s370
      %p381 = scmp.eq.s32.totalorder %s37, 0
      %p382 = por %p380, %p381
      %p383 = scmp.ne.s32.totalorder %s369, %s370
      %p384 = scmp.eq.s32.totalorder %s38, 3
      %p385 = por %p383, %p384
      %p387 = scmp.ne.s32.totalorder %s370, %s386
      %p388 = scmp.eq.s32.totalorder %s38, 0
      %p389 = por %p387, %p388
      %s390 = ssub.s32 %s39, %s51
      %s391 = ssub.s32 %s40, %s47
      %s392 = sor.u32 %s390, %s391
      %p393 = scmp.eq.s32.totalorder %s392, 0
      %s395 = sadd.s32 %s394, 1
      %s396 = scalar_select %p393, %s394, %s395
      %p399 = pneg %p393
      %p400 = scmp.eq.s32.totalorder %s32, 3
      %p401 = por %p399, %p400
      %p402 = scmp.ne.s32.totalorder %s394, %s397
      %p403 = scmp.eq.s32.totalorder %s32, 0
      %p404 = por %p402, %p403
      %p405 = scmp.ne.s32.totalorder %s394, %s397
      %p406 = scmp.eq.s32.totalorder %s37, 3
      %p407 = por %p405, %p406
      %p408 = scmp.ne.s32.totalorder %s397, %s398
      %p409 = scmp.eq.s32.totalorder %s37, 0
      %p410 = por %p408, %p409
      %p411 = scmp.ne.s32.totalorder %s397, %s398
      %p412 = scmp.eq.s32.totalorder %s38, 3
      %p413 = por %p411, %p412
      %p415 = scmp.ne.s32.totalorder %s398, %s414
      %p416 = scmp.eq.s32.totalorder %s38, 0
      %p417 = por %p415, %p416
      %p418 = scmp.le.s32.totalorder 1, %s32
      %p419 = scmp.lt.s32.totalorder %s32, 5
      %p420 = pnand %p418, %p419
      %p421 = pneg %p420
      // Predicated region
      $region9: #{tpu_custom_call.1} parent=5 // pred_check
        _
      $region10: #{tpu_custom_call.1} parent=5 // pred_check_branch
        %423 = sbr.rel (%p420) target = $region12
      $region11: #{tpu_custom_call.1} parent=5 // pred_region
        %s424 = ssub.s32 %s32, 1
      $region12: #{tpu_custom_call.1} parent=5 // pred_fallthru
        _
      %p425 = scmp.lt.s32.totalorder %s32, 4
      // Predicated region
      $region13: #{tpu_custom_call.1} parent=5 // pred_check
        %p426 = pneg %p425
      $region14: #{tpu_custom_call.1} parent=5 // pred_check_branch
        %428 = sbr.rel (%p426) target = $region16
      $region15: #{tpu_custom_call.1} parent=5 // pred_region
        // Predicated region
        $region17: #{tpu_custom_call.1} parent=15 // pred_check
          %p429 = pneg %p64
        $region18: #{tpu_custom_call.1} parent=15 // pred_check_branch
          %431 = sbr.rel (%p429) target = $region20
        $region19: #{tpu_custom_call.1} parent=15 // pred_region
          %s432 = sand.u32 %s54, 1
          %s433 = scalar_lea.sflag [#allocation3], %s432
          %s434 = sand.u32 %s54, 1
          %s435 = smul.addr %s434, 8
          %s436 = scalar_lea.vmem [#allocation2], %s435
          %s438 = ssub.s32 128, 128
          %439 = vsyncadd %s433, %s438
          %s440 = smul.addr %s39, 128
          %s441 = scalar_lea.hbm %s0, %s440
          %s443 = sshll.u32 %s436, 4
          %s444 = int_to_ptr.vmem [resolvable:$true] %s443
          %446 = dma.hbm_to_vmem [thread:$0]  %s441, 128, %s444, %s433
        $region20: #{tpu_custom_call.1} parent=15 // pred_fallthru
          _
        // Predicated region
        $region21: #{tpu_custom_call.1} parent=15 // pred_check
          %p447 = pneg %p90
        $region22: #{tpu_custom_call.1} parent=15 // pred_check_branch
          %449 = sbr.rel (%p447) target = $region24
        $region23: #{tpu_custom_call.1} parent=15 // pred_region
          %s450 = sand.u32 %s80, 1
          %s451 = scalar_lea.sflag [#allocation6], %s450
          %s452 = sand.u32 %s80, 1
          %s453 = scalar_lea.vmem [#allocation5], %s452
          %s455 = ssub.s32 16, 16
          %456 = vsyncadd %s451, %s455
          %s457 = smul.addr %s40, 16
          %s458 = scalar_lea.hbm %s1, %s457
          %s460 = sshll.u32 %s453, 4
          %s461 = int_to_ptr.vmem [resolvable:$true] %s460
          %463 = dma.hbm_to_vmem [thread:$0]  %s458, 16, %s461, %s451
        $region24: #{tpu_custom_call.1} parent=15 // pred_fallthru
          _
        // Predicated region
        $region25: #{tpu_custom_call.1} parent=15 // pred_check
          %p464 = pneg %p116
        $region26: #{tpu_custom_call.1} parent=15 // pred_check_branch
          %466 = sbr.rel (%p464) target = $region28
        $region27: #{tpu_custom_call.1} parent=15 // pred_region
          %p467 = scmp.lt.s32.totalorder %s40, 1
          %s468 = scalar_select %p467, %s40, 1
          %s469 = scalar_lea.vmem %s2, %s468
        $region28: #{tpu_custom_call.1} parent=15 // pred_fallthru
          _
        // Predicated region
        $region29: #{tpu_custom_call.1} parent=15 // pred_check
          %p470 = pneg %p142
        $region30: #{tpu_custom_call.1} parent=15 // pred_check_branch
          %472 = sbr.rel (%p470) target = $region32
        $region31: #{tpu_custom_call.1} parent=15 // pred_region
          %p473 = scmp.lt.s32.totalorder %s40, 1
          %s474 = scalar_select %p473, %s40, 1
          %s475 = smul.addr %s474, 4
          %s476 = smul.addr %s475, 4
          %s477 = scalar_lea.vmem %s3, %s476
        $region32: #{tpu_custom_call.1} parent=15 // pred_fallthru
          _
        // Predicated region
        $region33: #{tpu_custom_call.1} parent=15 // pred_check
          %p478 = pneg %p168
        $region34: #{tpu_custom_call.1} parent=15 // pred_check_branch
          %480 = sbr.rel (%p478) target = $region36
        $region35: #{tpu_custom_call.1} parent=15 // pred_region
          %p481 = scmp.lt.s32.totalorder %s40, 1
          %s482 = scalar_select %p481, %s40, 1
          %s483 = smul.addr %s482, 4
          %s484 = smul.addr %s483, 4
          %s485 = scalar_lea.vmem %s4, %s484
        $region36: #{tpu_custom_call.1} parent=15 // pred_fallthru
          _
        // Predicated region
        $region37: #{tpu_custom_call.1} parent=15 // pred_check
          %p486 = pneg %p194
        $region38: #{tpu_custom_call.1} parent=15 // pred_check_branch
          %488 = sbr.rel (%p486) target = $region40
        $region39: #{tpu_custom_call.1} parent=15 // pred_region
          %p489 = scmp.lt.s32.totalorder %s40, 1
          %s490 = scalar_select %p489, %s40, 1
          %s491 = scalar_lea.vmem %s5, %s490
        $region40: #{tpu_custom_call.1} parent=15 // pred_fallthru
          _
        // Predicated region
        $region41: #{tpu_custom_call.1} parent=15 // pred_check
          %p492 = pneg %p220
        $region42: #{tpu_custom_call.1} parent=15 // pred_check_branch
          %494 = sbr.rel (%p492) target = $region44
        $region43: #{tpu_custom_call.1} parent=15 // pred_region
          %p495 = scmp.lt.s32.totalorder %s40, 1
          %s496 = scalar_select %p495, %s40, 1
          %s497 = scalar_lea.vmem %s6, %s496
        $region44: #{tpu_custom_call.1} parent=15 // pred_fallthru
          _
        // Predicated region
        $region45: #{tpu_custom_call.1} parent=15 // pred_check
          %p498 = pneg %p246
        $region46: #{tpu_custom_call.1} parent=15 // pred_check_branch
          %500 = sbr.rel (%p498) target = $region48
        $region47: #{tpu_custom_call.1} parent=15 // pred_region
          %p501 = scmp.lt.s32.totalorder %s40, 1
          %s502 = scalar_select %p501, %s40, 1
          %s503 = scalar_lea.vmem %s7, %s502
        $region48: #{tpu_custom_call.1} parent=15 // pred_fallthru
          _
        // Predicated region
        $region49: #{tpu_custom_call.1} parent=15 // pred_check
          %p504 = pneg %p272
        $region50: #{tpu_custom_call.1} parent=15 // pred_check_branch
          %506 = sbr.rel (%p504) target = $region52
        $region51: #{tpu_custom_call.1} parent=15 // pred_region
          %p507 = scmp.lt.s32.totalorder %s40, 1
          %s508 = scalar_select %p507, %s40, 1
          %s509 = smul.addr %s508, 4
          %s510 = smul.addr %s509, 4
          %s511 = scalar_lea.vmem %s8, %s510
        $region52: #{tpu_custom_call.1} parent=15 // pred_fallthru
          _
        // Predicated region
        $region53: #{tpu_custom_call.1} parent=15 // pred_check
          %p512 = pneg %p298
        $region54: #{tpu_custom_call.1} parent=15 // pred_check_branch
          %514 = sbr.rel (%p512) target = $region56
        $region55: #{tpu_custom_call.1} parent=15 // pred_region
          %p515 = scmp.lt.s32.totalorder %s40, 1
          %s516 = scalar_select %p515, %s40, 1
          %s517 = scalar_lea.vmem %s9, %s516
        $region56: #{tpu_custom_call.1} parent=15 // pred_fallthru
          _
        // Predicated region
        $region57: #{tpu_custom_call.1} parent=15 // pred_check
          %p518 = pneg %p324
        $region58: #{tpu_custom_call.1} parent=15 // pred_check_branch
          %520 = sbr.rel (%p518) target = $region60
        $region59: #{tpu_custom_call.1} parent=15 // pred_region
          %p521 = scmp.lt.s32.totalorder %s40, 1
          %s522 = scalar_select %p521, %s40, 1
          %s523 = smul.addr %s522, 8
          %s524 = smul.addr %s523, 4
          %s525 = scalar_lea.vmem %s10, %s524
        $region60: #{tpu_custom_call.1} parent=15 // pred_fallthru
          _
        // Predicated region
        $region61: #{tpu_custom_call.1} parent=15 // pred_check
          %p526 = pneg %p350
        $region62: #{tpu_custom_call.1} parent=15 // pred_check_branch
          %528 = sbr.rel (%p526) target = $region64
        $region63: #{tpu_custom_call.1} parent=15 // pred_region
          %p529 = scmp.lt.s32.totalorder %s40, 1
          %s530 = scalar_select %p529, %s40, 1
          %s531 = scalar_lea.vmem %s11, %s530
        $region64: #{tpu_custom_call.1} parent=15 // pred_fallthru
          _
      $region16: #{tpu_custom_call.1} parent=5 // pred_fallthru
        _
      %p532 = scmp.le.s32.totalorder 1, %s32
      %p533 = scmp.lt.s32.totalorder %s32, 5
      %p534 = pnand %p532, %p533
      %p535 = pneg %p534
      // Predicated region
      $region65: #{tpu_custom_call.1} parent=5 // pred_check
        _
      $region66: #{tpu_custom_call.1} parent=5 // pred_check_branch
        %537 = sbr.rel (%p534) target = $region68
      $region67: #{tpu_custom_call.1} parent=5 // pred_region
        %s538 = ssub.s32 %s32, 1
        %s539 = sand.u32 %s57, 1
        %s540 = scalar_lea.sflag [#allocation3], %s539
        %s541 = sand.u32 %s57, 1
        %s542 = smul.addr %s541, 8
        %s543 = scalar_lea.vmem [#allocation2], %s542
        // Predicated region
        $region69: #{tpu_custom_call.1} parent=67 // pred_check
          %p544 = pneg %p70
        $region70: #{tpu_custom_call.1} parent=67 // pred_check_branch
          %546 = sbr.rel (%p544) target = $region72
        $region71: #{tpu_custom_call.1} parent=67 // pred_region
          %547 = dma.done %s540, 128
        $region72: #{tpu_custom_call.1} parent=67 // pred_fallthru
          _
        %s548 = sand.u32 %s83, 1
        %s549 = scalar_lea.sflag [#allocation6], %s548
        %s550 = sand.u32 %s83, 1
        %s551 = scalar_lea.vmem [#allocation5], %s550
        // Predicated region
        $region73: #{tpu_custom_call.1} parent=67 // pred_check
          %p552 = pneg %p96
        $region74: #{tpu_custom_call.1} parent=67 // pred_check_branch
          %554 = sbr.rel (%p552) target = $region76
        $region75: #{tpu_custom_call.1} parent=67 // pred_region
          %555 = dma.done %s549, 16
        $region76: #{tpu_custom_call.1} parent=67 // pred_fallthru
          _
        %s556 = sand.u32 %s57, 1
        %s557 = scalar_lea.sflag [#allocation3], %s556
        %s558 = sand.u32 %s57, 1
        %s559 = smul.addr %s558, 8
        %s560 = scalar_lea.vmem [#allocation2], %s559
        %p561 = pneg %p70
        %p562 = pneg %p67
        %s563 = sand.u32 %s83, 1
        %s564 = scalar_lea.sflag [#allocation6], %s563
        %s565 = sand.u32 %s83, 1
        %s566 = scalar_lea.vmem [#allocation5], %s565
        %p567 = pneg %p96
        %p568 = pneg %p93
        %p569 = scmp.lt.s32.totalorder %s42, 1
        %s570 = scalar_select %p569, %s42, 1
        %s571 = scalar_lea.vmem %s2, %s570
        %p572 = pneg %p122
        %p573 = pneg %p119
        %p574 = scmp.lt.s32.totalorder %s42, 1
        %s575 = scalar_select %p574, %s42, 1
        %s576 = smul.addr %s575, 4
        %s577 = smul.addr %s576, 4
        %s578 = scalar_lea.vmem %s3, %s577
        %p579 = pneg %p148
        %p580 = pneg %p145
        %p581 = scmp.lt.s32.totalorder %s42, 1
        %s582 = scalar_select %p581, %s42, 1
        %s583 = smul.addr %s582, 4
        %s584 = smul.addr %s583, 4
        %s585 = scalar_lea.vmem %s4, %s584
        %p586 = pneg %p174
        %p587 = pneg %p171
        %p588 = scmp.lt.s32.totalorder %s42, 1
        %s589 = scalar_select %p588, %s42, 1
        %s590 = scalar_lea.vmem %s5, %s589
        %p591 = pneg %p200
        %p592 = pneg %p197
        %p593 = scmp.lt.s32.totalorder %s42, 1
        %s594 = scalar_select %p593, %s42, 1
        %s595 = scalar_lea.vmem %s6, %s594
        %p596 = pneg %p226
        %p597 = pneg %p223
        %p598 = scmp.lt.s32.totalorder %s42, 1
        %s599 = scalar_select %p598, %s42, 1
        %s600 = scalar_lea.vmem %s7, %s599
        %p601 = pneg %p252
        %p602 = pneg %p249
        %p603 = scmp.lt.s32.totalorder %s42, 1
        %s604 = scalar_select %p603, %s42, 1
        %s605 = smul.addr %s604, 4
        %s606 = smul.addr %s605, 4
        %s607 = scalar_lea.vmem %s8, %s606
        %p608 = pneg %p278
        %p609 = pneg %p275
        %p610 = scmp.lt.s32.totalorder %s42, 1
        %s611 = scalar_select %p610, %s42, 1
        %s612 = scalar_lea.vmem %s9, %s611
        %p613 = pneg %p304
        %p614 = pneg %p301
        %p615 = scmp.lt.s32.totalorder %s42, 1
        %s616 = scalar_select %p615, %s42, 1
        %s617 = smul.addr %s616, 8
        %s618 = smul.addr %s617, 4
        %s619 = scalar_lea.vmem %s10, %s618
        %p620 = pneg %p330
        %p621 = pneg %p327
        %p622 = scmp.lt.s32.totalorder %s42, 1
        %s623 = scalar_select %p622, %s42, 1
        %s624 = scalar_lea.vmem %s11, %s623
        %p625 = pneg %p356
        %p626 = pneg %p353
        %p627 = pneg %p382
        %p628 = pneg %p379
        %s629 = sand.u32 %s369, 1
        %s630 = scalar_lea.sflag [#allocation4], %s629
        %s631 = sand.u32 %s369, 1
        %s632 = smul.addr %s631, 8
        %s633 = scalar_lea.vmem [#allocation7], %s632
        %p634 = pneg %p410
        %p635 = pneg %p407
        %s636 = sand.u32 %s397, 1
        %s637 = scalar_lea.sflag [#allocation9], %s636
        %s638 = sand.u32 %s397, 1
        %s639 = scalar_lea.vmem [#allocation8], %s638
        %p640 = scmp.lt.s32.totalorder %s42, 1
        %s641 = scalar_select %p640, %s42, 1
        %s642 = scalar_lea.vmem %s2, %s641
        %p643 = scmp.lt.s32.totalorder %s42, 1
        %s644 = scalar_select %p643, %s42, 1
        %s645 = smul.addr %s644, 4
        %s646 = smul.addr %s645, 4
        %s647 = scalar_lea.vmem %s3, %s646
        %p648 = scmp.lt.s32.totalorder %s42, 1
        %s649 = scalar_select %p648, %s42, 1
        %s650 = smul.addr %s649, 4
        %s651 = smul.addr %s650, 4
        %s652 = scalar_lea.vmem %s4, %s651
        %p653 = scmp.lt.s32.totalorder %s42, 1
        %s654 = scalar_select %p653, %s42, 1
        %s655 = scalar_lea.vmem %s5, %s654
        %p656 = scmp.lt.s32.totalorder %s42, 1
        %s657 = scalar_select %p656, %s42, 1
        %s658 = scalar_lea.vmem %s6, %s657
        %p659 = scmp.lt.s32.totalorder %s42, 1
        %s660 = scalar_select %p659, %s42, 1
        %s661 = scalar_lea.vmem %s7, %s660
        %p662 = scmp.lt.s32.totalorder %s42, 1
        %s663 = scalar_select %p662, %s42, 1
        %s664 = smul.addr %s663, 4
        %s665 = smul.addr %s664, 4
        %s666 = scalar_lea.vmem %s8, %s665
        %p667 = scmp.lt.s32.totalorder %s42, 1
        %s668 = scalar_select %p667, %s42, 1
        %s669 = scalar_lea.vmem %s9, %s668
        %p670 = scmp.lt.s32.totalorder %s42, 1
        %s671 = scalar_select %p670, %s42, 1
        %s672 = smul.addr %s671, 8
        %s673 = smul.addr %s672, 4
        %s674 = scalar_lea.vmem %s10, %s673
        %p675 = scmp.lt.s32.totalorder %s42, 1
        %s676 = scalar_select %p675, %s42, 1
        %s677 = scalar_lea.vmem %s11, %s676
        %p679 = scmp.eq.s32.totalorder %s42, 0
        // Predicated region
        $region77: #{tpu_custom_call.1} parent=67 // pred_check
          %p680 = pneg %p679
        $region78: #{tpu_custom_call.1} parent=67 // pred_check_branch
          %682 = sbr.rel (%p680) target = $region80
        $region79: #{tpu_custom_call.1} parent=67 // pred_region
          %v683 = vld [vmem:[%s543] sm:$0xff]
          %vm684 = vcmask 261120
          %685 = vst.msk [vmem:[%s633] sm:$0xff] %vm684, %v683
        $region80: #{tpu_custom_call.1} parent=67 // pred_fallthru
          _
        %v686 = vld [vmem:[%s633] sm:$0xff]
        %v687 = vld [vmem:[%s551] sm:$0x1]
        %v688 = vld [vmem:[%s642] sm:$0x1]
        %vm689 = vcmask 261120
        %v690 = vsel %vm689, %v686, 0.0
        %691 = vadd.xlane.f32.xlu0 %v690
        %v692 = vpop.xlane.xlu0 %691
        %v693 = vrcp.pop 32.0
        %v694 = vmul.f32 %v692, %v693
        %v695 = vsub.f32 %v686, %v694
        %v696 = vmul.f32 %v695, %v695
        %v697 = vsel %vm689, %v696, 0.0
        %698 = vadd.xlane.f32.xlu0 %v697
        %v699 = vpop.xlane.xlu0 %698
        %v700 = vmul.f32 %v699, %v693
        %v701 = vadd.f32 %v700, 1e-05
        %v702 = vrsqrt.pop %v701
        %v703 = vmul.f32 %v695, %v702
        %v705 = vlaneseq
        %v706 = vshrl.u32 %v705, 7
        %v707 = vsub.s32 0, %v706
        %v708 = vrot.slane %v687, %v707
        %v710 = vmul.f32 %v703, %v708
        %v712 = vlaneseq
        %v713 = vshrl.u32 %v712, 7
        %v714 = vsub.s32 0, %v713
        %v715 = vrot.slane %v688, %v714
        %v717 = vadd.f32 %v710, %v715
        %v718 = vpack.c.bf16 %v717, %v717
        %v719 = vld [vmem:[%s647] sm:$0xf]
        %v720 = vld [vmem:[%s647 + $0x4] sm:$0xf]
        %v721 = vld [vmem:[%s647 + $0x8] sm:$0xf]
        %v722 = vld [vmem:[%s647 + $0xc] sm:$0xf]
        %v727 = vunpack.c.l.b16 %v719
        %v728 = vunpack.c.l.b16 %v720
        %v729 = vunpack.c.l.b16 %v721
        %v730 = vunpack.c.l.b16 %v722
        %v731 = vpack.c.b16 %v728, %v727
        %v732 = vpack.c.b16 %v730, %v729
        %v736 = vsel %vm689, %v718, 0
        %738 = vmatprep.subr.bf16.mxu0 0
        %739 = vmatpush1.bf16.msra.mxu0 0
        %740 = vmatprep.subr.bf16.mxu0 0
        %741 = vmatpush1.bf16.msra.mxu0 0
        %742 = vmatprep.subr.bf16.mxu0 0
        %743 = vmatpush1.bf16.msra.mxu0 0
        %744 = vmatprep.subr.bf16.mxu0 0
        %745 = vmatpush1.bf16.msra.mxu0 0
        %746 = vmatprep.subr.bf16.mxu0 0
        %747 = vmatpush1.bf16.msra.mxu0 0
        %748 = vmatprep.subr.bf16.mxu0 0
        %749 = vmatpush1.bf16.msra.mxu0 0
        %750 = vmatprep.subr.bf16.mxu0 0
        %751 = vmatpush1.bf16.msra.mxu0 %v732
        %752 = vmatprep.subr.bf16.mxu0 0
        %753 = vmatpush1.bf16.msra.mxu0 %v731
        %754 = vmatprep.subr.bf16.mxu0 0
        %755 = vmatpush2.bf16.msra.mxu0 0
        %756 = vmatprep.subr.bf16.mxu0 0
        %757 = vmatpush2.bf16.msra.mxu0 0
        %758 = vmatprep.subr.bf16.mxu0 0
        %759 = vmatpush2.bf16.msra.mxu0 0
        %760 = vmatprep.subr.bf16.mxu0 0
        %761 = vmatpush2.bf16.msra.mxu0 0
        %762 = vmatprep.subr.bf16.mxu0 0
        %763 = vmatpush2.bf16.msra.mxu0 0
        %764 = vmatprep.subr.bf16.mxu0 0
        %765 = vmatpush2.bf16.msra.mxu0 0
        %766 = vmatprep.subr.bf16.mxu0 0
        %767 = vmatpush2.bf16.msra.mxu0 0
        %768 = vmatprep.subr.bf16.mxu0 0
        %769 = vmatpush2.bf16.msra.mxu0 0
        %770 = vmatprep.mubr.bf16.mxu0 0
        %771 = vmatmul.mubr.bf16.gmra.mxu0 %v736
        %v772 = vpop.f32.mrf.mxu0
        %v773 = vadd.f32 0.0, %v772
        %v774 = vpop.f32.mrf.mxu0
        %v775 = vpop.f32.mrf.mxu0
        %v776 = vpop.f32.mrf.mxu0
        %777 = vdwg.mxu0
        %v778 = vpack.c.bf16 %v773, %v773
        %780 = vrot.lane.b32.xlu0 %v778, 120
        %v781 = vpop.permute.xlu0 %780
        %783 = vrot.lane.b32.xlu0 %v778, 112
        %v784 = vpop.permute.xlu0 %783
        %786 = vrot.lane.b32.xlu0 %v778, 104
        %v787 = vpop.permute.xlu0 %786
        %789 = vrot.lane.b32.xlu0 %v778, 96
        %v790 = vpop.permute.xlu0 %789
        %792 = vrot.lane.b32.xlu0 %v778, 88
        %v793 = vpop.permute.xlu0 %792
        %795 = vrot.lane.b32.xlu0 %v778, 80
        %v796 = vpop.permute.xlu0 %795
        %798 = vrot.lane.b32.xlu0 %v778, 72
        %v799 = vpop.permute.xlu0 %798
        %801 = vrot.lane.b32.xlu0 %v778, 64
        %v802 = vpop.permute.xlu0 %801
        %803 = vrot.lane.b32.xlu0 %v778, 56
        %v804 = vpop.permute.xlu0 %803
        %805 = vrot.lane.b32.xlu0 %v778, 48
        %v806 = vpop.permute.xlu0 %805
        %807 = vrot.lane.b32.xlu0 %v778, 40
        %v808 = vpop.permute.xlu0 %807
        %v809 = vcombine.low %v778, %v790
        %v811 = vunpack.c.l.s4 1983009808
        %v812 = vunpack.c.0.s8 %v811
        %v813 = vlaneseq
        %v814 = vshrl.u32 %v813, 7
        %v815 = vsub.s32 %v812, %v814
        %v816 = vrot.slane %v809, %v815
        %v817 = vcombine.low %v784, %v796
        %v819 = vunpack.c.l.s4 1983009808
        %v820 = vunpack.c.0.s8 %v819
        %v821 = vlaneseq
        %v822 = vshrl.u32 %v821, 7
        %v823 = vsub.s32 %v820, %v822
        %v824 = vrot.slane %v817, %v823
        %v827 = vunpack.c.l.s4 1983009808
        %v828 = vunpack.c.0.s8 %v827
        %v829 = vlaneseq
        %v830 = vshrl.u32 %v829, 7
        %v831 = vsub.s32 %v828, %v830
        %v832 = vrot.slane %v802, %v831
        %v835 = vunpack.c.l.s4 1983009808
        %v836 = vunpack.c.0.s8 %v835
        %v837 = vlaneseq
        %v838 = vshrl.u32 %v837, 7
        %v839 = vsub.s32 %v836, %v838
        %v840 = vrot.slane %v806, %v839
        %v841 = vcombine.low %v816, %v824
        %v842 = vcombine.high %v816, %v824
        %v844 = vunpack.c.l.s4 1934713408
        %v845 = vunpack.c.0.s8 %v844
        %v846 = vlaneseq
        %v847 = vshrl.u32 %v846, 7
        %v848 = vsub.s32 %v845, %v847
        %v849 = vrot.slane %v841, %v848
        %v851 = vunpack.c.l.s4 1934713408
        %v852 = vunpack.c.0.s8 %v851
        %v853 = vlaneseq
        %v854 = vshrl.u32 %v853, 7
        %v855 = vsub.s32 %v852, %v854
        %v856 = vrot.slane %v842, %v855
        %v857 = vcombine.low %v832, %v840
        %v858 = vcombine.high %v832, %v840
        %v860 = vunpack.c.l.s4 1934713408
        %v861 = vunpack.c.0.s8 %v860
        %v862 = vlaneseq
        %v863 = vshrl.u32 %v862, 7
        %v864 = vsub.s32 %v861, %v863
        %v865 = vrot.slane %v857, %v864
        %v867 = vunpack.c.l.s4 1934713408
        %v868 = vunpack.c.0.s8 %v867
        %v869 = vlaneseq
        %v870 = vshrl.u32 %v869, 7
        %v871 = vsub.s32 %v868, %v870
        %v872 = vrot.slane %v858, %v871
        %v873 = vcombine.low %v849, %v865
        %v874 = vcombine.high %v849, %v865
        %v875 = vcombine.low %v856, %v872
        %v876 = vcombine.high %v856, %v872
        %v877 = vcombine.low %v781, %v793
        %v879 = vunpack.c.l.s4 1983009808
        %v880 = vunpack.c.0.s8 %v879
        %v881 = vlaneseq
        %v882 = vshrl.u32 %v881, 7
        %v883 = vsub.s32 %v880, %v882
        %v884 = vrot.slane %v877, %v883
        %v885 = vcombine.low %v787, %v799
        %v887 = vunpack.c.l.s4 1983009808
        %v888 = vunpack.c.0.s8 %v887
        %v889 = vlaneseq
        %v890 = vshrl.u32 %v889, 7
        %v891 = vsub.s32 %v888, %v890
        %v892 = vrot.slane %v885, %v891
        %v895 = vunpack.c.l.s4 1983009808
        %v896 = vunpack.c.0.s8 %v895
        %v897 = vlaneseq
        %v898 = vshrl.u32 %v897, 7
        %v899 = vsub.s32 %v896, %v898
        %v900 = vrot.slane %v804, %v899
        %v903 = vunpack.c.l.s4 1983009808
        %v904 = vunpack.c.0.s8 %v903
        %v905 = vlaneseq
        %v906 = vshrl.u32 %v905, 7
        %v907 = vsub.s32 %v904, %v906
        %v908 = vrot.slane %v808, %v907
        %v909 = vcombine.low %v884, %v892
        %v910 = vcombine.high %v884, %v892
        %v912 = vunpack.c.l.s4 1934713408
        %v913 = vunpack.c.0.s8 %v912
        %v914 = vlaneseq
        %v915 = vshrl.u32 %v914, 7
        %v916 = vsub.s32 %v913, %v915
        %v917 = vrot.slane %v909, %v916
        %v919 = vunpack.c.l.s4 1934713408
        %v920 = vunpack.c.0.s8 %v919
        %v921 = vlaneseq
        %v922 = vshrl.u32 %v921, 7
        %v923 = vsub.s32 %v920, %v922
        %v924 = vrot.slane %v910, %v923
        %v925 = vcombine.low %v900, %v908
        %v926 = vcombine.high %v900, %v908
        %v928 = vunpack.c.l.s4 1934713408
        %v929 = vunpack.c.0.s8 %v928
        %v930 = vlaneseq
        %v931 = vshrl.u32 %v930, 7
        %v932 = vsub.s32 %v929, %v931
        %v933 = vrot.slane %v925, %v932
        %v935 = vunpack.c.l.s4 1934713408
        %v936 = vunpack.c.0.s8 %v935
        %v937 = vlaneseq
        %v938 = vshrl.u32 %v937, 7
        %v939 = vsub.s32 %v936, %v938
        %v940 = vrot.slane %v926, %v939
        %v941 = vcombine.low %v917, %v933
        %v942 = vcombine.high %v917, %v933
        %v943 = vcombine.low %v924, %v940
        %v944 = vcombine.high %v924, %v940
        %v947 = vpack.i.b16 %v941, %v873
        %v949 = vshrl.u32 %v873, 16
        %v950 = vshrl.u32 %v941, 16
        %v951 = vpack.i.b16 %v950, %v949
        %v955 = vpack.i.b16 %v942, %v874
        %v957 = vshrl.u32 %v874, 16
        %v958 = vshrl.u32 %v942, 16
        %v959 = vpack.i.b16 %v958, %v957
        %v963 = vpack.i.b16 %v943, %v875
        %v965 = vshrl.u32 %v875, 16
        %v966 = vshrl.u32 %v943, 16
        %v967 = vpack.i.b16 %v966, %v965
        %v971 = vpack.i.b16 %v944, %v876
        %v973 = vshrl.u32 %v876, 16
        %v974 = vshrl.u32 %v944, 16
        %v975 = vpack.i.b16 %v974, %v973
        %v977 = vcombine.low %v947, %v963
        %v978 = vcombine.high %v947, %v963
        %v980 = vunpack.c.l.s4 1983009808
        %v981 = vunpack.c.0.s8 %v980
        %v982 = vlaneseq
        %v983 = vshrl.u32 %v982, 7
        %v984 = vsub.s32 %v981, %v983
        %v985 = vrot.slane %v977, %v984
        %v987 = vunpack.c.l.s4 1983009808
        %v988 = vunpack.c.0.s8 %v987
        %v989 = vlaneseq
        %v990 = vshrl.u32 %v989, 7
        %v991 = vsub.s32 %v988, %v990
        %v992 = vrot.slane %v978, %v991
        %v993 = vcombine.low %v955, %v971
        %v994 = vcombine.high %v955, %v971
        %v996 = vunpack.c.l.s4 1983009808
        %v997 = vunpack.c.0.s8 %v996
        %v998 = vlaneseq
        %v999 = vshrl.u32 %v998, 7
        %v1000 = vsub.s32 %v997, %v999
        %v1001 = vrot.slane %v993, %v1000
        %v1003 = vunpack.c.l.s4 1983009808
        %v1004 = vunpack.c.0.s8 %v1003
        %v1005 = vlaneseq
        %v1006 = vshrl.u32 %v1005, 7
        %v1007 = vsub.s32 %v1004, %v1006
        %v1008 = vrot.slane %v994, %v1007
        %v1009 = vcombine.low %v985, %v1001
        %v1010 = vcombine.high %v985, %v1001
        %v1012 = vunpack.c.l.s4 1934713408
        %v1013 = vunpack.c.0.s8 %v1012
        %v1014 = vlaneseq
        %v1015 = vshrl.u32 %v1014, 7
        %v1016 = vsub.s32 %v1013, %v1015
        %v1017 = vrot.slane %v1009, %v1016
        %v1019 = vunpack.c.l.s4 1934713408
        %v1020 = vunpack.c.0.s8 %v1019
        %v1021 = vlaneseq
        %v1022 = vshrl.u32 %v1021, 7
        %v1023 = vsub.s32 %v1020, %v1022
        %v1024 = vrot.slane %v1010, %v1023
        %v1025 = vcombine.low %v992, %v1008
        %v1027 = vunpack.c.l.s4 1934713408
        %v1028 = vunpack.c.0.s8 %v1027
        %v1029 = vlaneseq
        %v1030 = vshrl.u32 %v1029, 7
        %v1031 = vsub.s32 %v1028, %v1030
        %v1032 = vrot.slane %v1025, %v1031
        %v1033 = vcombine.high %v1017, 0
        %v1034 = vcombine.high %v1024, 0
        %v1035 = vcombine.high %v1032, 0
        %v1036 = vcombine.low %v951, %v967
        %v1037 = vcombine.high %v951, %v967
        %v1039 = vunpack.c.l.s4 1983009808
        %v1040 = vunpack.c.0.s8 %v1039
        %v1041 = vlaneseq
        %v1042 = vshrl.u32 %v1041, 7
        %v1043 = vsub.s32 %v1040, %v1042
        %v1044 = vrot.slane %v1036, %v1043
        %v1046 = vunpack.c.l.s4 1983009808
        %v1047 = vunpack.c.0.s8 %v1046
        %v1048 = vlaneseq
        %v1049 = vshrl.u32 %v1048, 7
        %v1050 = vsub.s32 %v1047, %v1049
        %v1051 = vrot.slane %v1037, %v1050
        %v1052 = vcombine.low %v959, %v975
        %v1053 = vcombine.high %v959, %v975
        %v1055 = vunpack.c.l.s4 1983009808
        %v1056 = vunpack.c.0.s8 %v1055
        %v1057 = vlaneseq
        %v1058 = vshrl.u32 %v1057, 7
        %v1059 = vsub.s32 %v1056, %v1058
        %v1060 = vrot.slane %v1052, %v1059
        %v1062 = vunpack.c.l.s4 1983009808
        %v1063 = vunpack.c.0.s8 %v1062
        %v1064 = vlaneseq
        %v1065 = vshrl.u32 %v1064, 7
        %v1066 = vsub.s32 %v1063, %v1065
        %v1067 = vrot.slane %v1053, %v1066
        %v1068 = vcombine.low %v1044, %v1060
        %v1069 = vcombine.high %v1044, %v1060
        %v1071 = vunpack.c.l.s4 1934713408
        %v1072 = vunpack.c.0.s8 %v1071
        %v1073 = vlaneseq
        %v1074 = vshrl.u32 %v1073, 7
        %v1075 = vsub.s32 %v1072, %v1074
        %v1076 = vrot.slane %v1068, %v1075
        %v1078 = vunpack.c.l.s4 1934713408
        %v1079 = vunpack.c.0.s8 %v1078
        %v1080 = vlaneseq
        %v1081 = vshrl.u32 %v1080, 7
        %v1082 = vsub.s32 %v1079, %v1081
        %v1083 = vrot.slane %v1069, %v1082
        %v1084 = vcombine.low %v1051, %v1067
        %v1086 = vunpack.c.l.s4 1934713408
        %v1087 = vunpack.c.0.s8 %v1086
        %v1088 = vlaneseq
        %v1089 = vshrl.u32 %v1088, 7
        %v1090 = vsub.s32 %v1087, %v1089
        %v1091 = vrot.slane %v1084, %v1090
        %v1092 = vcombine.high %v1076, 0
        %v1093 = vcombine.high %v1083, 0
        %v1094 = vcombine.high %v1091, 0
        %v1097 = vpack.i.b16 %v1076, %v1017
        %v1098 = vshrl.u32 %v1017, 16
        %v1099 = vshrl.u32 %v1076, 16
        %v1100 = vpack.i.b16 %v1099, %v1098
        %v1103 = vpack.i.b16 %v1092, %v1033
        %v1104 = vshrl.u32 %v1033, 16
        %v1105 = vshrl.u32 %v1092, 16
        %v1106 = vpack.i.b16 %v1105, %v1104
        %v1109 = vpack.i.b16 %v1083, %v1024
        %v1110 = vshrl.u32 %v1024, 16
        %v1111 = vshrl.u32 %v1083, 16
        %v1112 = vpack.i.b16 %v1111, %v1110
        %v1115 = vpack.i.b16 %v1093, %v1034
        %v1116 = vshrl.u32 %v1034, 16
        %v1117 = vshrl.u32 %v1093, 16
        %v1118 = vpack.i.b16 %v1117, %v1116
        %v1121 = vpack.i.b16 %v1091, %v1032
        %v1122 = vshrl.u32 %v1032, 16
        %v1123 = vshrl.u32 %v1091, 16
        %v1124 = vpack.i.b16 %v1123, %v1122
        %v1127 = vpack.i.b16 %v1094, %v1035
        %v1128 = vshrl.u32 %v1035, 16
        %v1129 = vshrl.u32 %v1094, 16
        %v1130 = vpack.i.b16 %v1129, %v1128
        %vm1131 = vcmask 64512
        %v1133 = vsel %vm1131, %v1097, 0
        %v1136 = vsel %vm1131, %v1109, 0
        %1138 = vmatprep.subr.bf16.mxu0 0
        %1139 = vmatpush1.bf16.xpose.msra.mxu0 0
        %1140 = vmatprep.subr.bf16.mxu0 0
        %1141 = vmatpush1.bf16.xpose.msra.mxu0 0
        %1142 = vmatprep.subr.bf16.mxu0 0
        %1143 = vmatpush1.bf16.xpose.msra.mxu0 0
        %1144 = vmatprep.subr.bf16.mxu0 0
        %1145 = vmatpush1.bf16.xpose.msra.mxu0 0
        %1146 = vmatprep.subr.bf16.mxu0 0
        %1147 = vmatpush1.bf16.xpose.msra.mxu0 0
        %1148 = vmatprep.subr.bf16.mxu0 0
        %1149 = vmatpush1.bf16.xpose.msra.mxu0 0
        %1150 = vmatprep.subr.bf16.mxu0 0
        %1151 = vmatpush1.bf16.xpose.msra.mxu0 0
        %1152 = vmatprep.subr.bf16.mxu0 0
        %1153 = vmatpush1.bf16.xpose.msra.mxu0 %v1136
        %1154 = vmatprep.subr.bf16.mxu0 0
        %1155 = vmatpush2.bf16.xpose.msra.mxu0 0
        %1156 = vmatprep.subr.bf16.mxu0 0
        %1157 = vmatpush2.bf16.xpose.msra.mxu0 0
        %1158 = vmatprep.subr.bf16.mxu0 0
        %1159 = vmatpush2.bf16.xpose.msra.mxu0 0
        %1160 = vmatprep.subr.bf16.mxu0 0
        %1161 = vmatpush2.bf16.xpose.msra.mxu0 0
        %1162 = vmatprep.subr.bf16.mxu0 0
        %1163 = vmatpush2.bf16.xpose.msra.mxu0 0
        %1164 = vmatprep.subr.bf16.mxu0 0
        %1165 = vmatpush2.bf16.xpose.msra.mxu0 0
        %1166 = vmatprep.subr.bf16.mxu0 0
        %1167 = vmatpush2.bf16.xpose.msra.mxu0 0
        %1168 = vmatprep.subr.bf16.mxu0 0
        %1169 = vmatpush2.bf16.xpose.msra.mxu0 0
        %1170 = vmatprep.mubr.bf16.mxu0 0
        %1171 = vmatmul.mubr.bf16.gmra.mxu0 %v1133
        %v1172 = vpop.f32.mrf.mxu0
        %v1173 = vadd.f32 0.0, %v1172
        %v1174 = vpop.f32.mrf.mxu0
        %v1175 = vpop.f32.mrf.mxu0
        %v1176 = vpop.f32.mrf.mxu0
        %1177 = vdwg.mxu0
        %v1179 = vsel %vm1131, %v1100, 0
        %v1182 = vsel %vm1131, %v1112, 0
        %1184 = vmatprep.subr.bf16.mxu0 0
        %1185 = vmatpush1.bf16.xpose.msra.mxu0 0
        %1186 = vmatprep.subr.bf16.mxu0 0
        %1187 = vmatpush1.bf16.xpose.msra.mxu0 0
        %1188 = vmatprep.subr.bf16.mxu0 0
        %1189 = vmatpush1.bf16.xpose.msra.mxu0 0
        %1190 = vmatprep.subr.bf16.mxu0 0
        %1191 = vmatpush1.bf16.xpose.msra.mxu0 0
        %1192 = vmatprep.subr.bf16.mxu0 0
        %1193 = vmatpush1.bf16.xpose.msra.mxu0 0
        %1194 = vmatprep.subr.bf16.mxu0 0
        %1195 = vmatpush1.bf16.xpose.msra.mxu0 0
        %1196 = vmatprep.subr.bf16.mxu0 0
        %1197 = vmatpush1.bf16.xpose.msra.mxu0 0
        %1198 = vmatprep.subr.bf16.mxu0 0
        %1199 = vmatpush1.bf16.xpose.msra.mxu0 %v1182
        %1200 = vmatprep.subr.bf16.mxu0 0
        %1201 = vmatpush2.bf16.xpose.msra.mxu0 0
        %1202 = vmatprep.subr.bf16.mxu0 0
        %1203 = vmatpush2.bf16.xpose.msra.mxu0 0
        %1204 = vmatprep.subr.bf16.mxu0 0
        %1205 = vmatpush2.bf16.xpose.msra.mxu0 0
        %1206 = vmatprep.subr.bf16.mxu0 0
        %1207 = vmatpush2.bf16.xpose.msra.mxu0 0
        %1208 = vmatprep.subr.bf16.mxu0 0
        %1209 = vmatpush2.bf16.xpose.msra.mxu0 0
        %1210 = vmatprep.subr.bf16.mxu0 0
        %1211 = vmatpush2.bf16.xpose.msra.mxu0 0
        %1212 = vmatprep.subr.bf16.mxu0 0
        %1213 = vmatpush2.bf16.xpose.msra.mxu0 0
        %1214 = vmatprep.subr.bf16.mxu0 0
        %1215 = vmatpush2.bf16.xpose.msra.mxu0 0
        %1216 = vmatprep.mubr.bf16.mxu0 0
        %1217 = vmatmul.mubr.bf16.gmra.mxu0 %v1179
        %v1218 = vpop.f32.mrf.mxu0
        %v1219 = vadd.f32 0.0, %v1218
        %v1220 = vpop.f32.mrf.mxu0
        %v1221 = vpop.f32.mrf.mxu0
        %v1222 = vpop.f32.mrf.mxu0
        %1223 = vdwg.mxu0
        %v1225 = vsel %vm1131, %v1103, 0
        %v1228 = vsel %vm1131, %v1115, 0
        %1230 = vmatprep.subr.bf16.mxu0 0
        %1231 = vmatpush1.bf16.xpose.msra.mxu0 0
        %1232 = vmatprep.subr.bf16.mxu0 0
        %1233 = vmatpush1.bf16.xpose.msra.mxu0 0
        %1234 = vmatprep.subr.bf16.mxu0 0
        %1235 = vmatpush1.bf16.xpose.msra.mxu0 0
        %1236 = vmatprep.subr.bf16.mxu0 0
        %1237 = vmatpush1.bf16.xpose.msra.mxu0 0
        %1238 = vmatprep.subr.bf16.mxu0 0
        %1239 = vmatpush1.bf16.xpose.msra.mxu0 0
        %1240 = vmatprep.subr.bf16.mxu0 0
        %1241 = vmatpush1.bf16.xpose.msra.mxu0 0
        %1242 = vmatprep.subr.bf16.mxu0 0
        %1243 = vmatpush1.bf16.xpose.msra.mxu0 0
        %1244 = vmatprep.subr.bf16.mxu0 0
        %1245 = vmatpush1.bf16.xpose.msra.mxu0 %v1228
        %1246 = vmatprep.subr.bf16.mxu0 0
        %1247 = vmatpush2.bf16.xpose.msra.mxu0 0
        %1248 = vmatprep.subr.bf16.mxu0 0
        %1249 = vmatpush2.bf16.xpose.msra.mxu0 0
        %1250 = vmatprep.subr.bf16.mxu0 0
        %1251 = vmatpush2.bf16.xpose.msra.mxu0 0
        %1252 = vmatprep.subr.bf16.mxu0 0
        %1253 = vmatpush2.bf16.xpose.msra.mxu0 0
        %1254 = vmatprep.subr.bf16.mxu0 0
        %1255 = vmatpush2.bf16.xpose.msra.mxu0 0
        %1256 = vmatprep.subr.bf16.mxu0 0
        %1257 = vmatpush2.bf16.xpose.msra.mxu0 0
        %1258 = vmatprep.subr.bf16.mxu0 0
        %1259 = vmatpush2.bf16.xpose.msra.mxu0 0
        %1260 = vmatprep.subr.bf16.mxu0 0
        %1261 = vmatpush2.bf16.xpose.msra.mxu0 0
        %1262 = vmatprep.mubr.bf16.mxu0 0
        %1263 = vmatmul.mubr.bf16.gmra.mxu0 %v1225
        %v1264 = vpop.f32.mrf.mxu0
        %v1265 = vadd.f32 0.0, %v1264
        %v1266 = vpop.f32.mrf.mxu0
        %v1267 = vpop.f32.mrf.mxu0
        %v1268 = vpop.f32.mrf.mxu0
        %1269 = vdwg.mxu0
        %v1271 = vsel %vm1131, %v1106, 0
        %v1274 = vsel %vm1131, %v1118, 0
        %1276 = vmatprep.subr.bf16.mxu0 0
        %1277 = vmatpush1.bf16.xpose.msra.mxu0 0
        %1278 = vmatprep.subr.bf16.mxu0 0
        %1279 = vmatpush1.bf16.xpose.msra.mxu0 0
        %1280 = vmatprep.subr.bf16.mxu0 0
        %1281 = vmatpush1.bf16.xpose.msra.mxu0 0
        %1282 = vmatprep.subr.bf16.mxu0 0
        %1283 = vmatpush1.bf16.xpose.msra.mxu0 0
        %1284 = vmatprep.subr.bf16.mxu0 0
        %1285 = vmatpush1.bf16.xpose.msra.mxu0 0
        %1286 = vmatprep.subr.bf16.mxu0 0
        %1287 = vmatpush1.bf16.xpose.msra.mxu0 0
        %1288 = vmatprep.subr.bf16.mxu0 0
        %1289 = vmatpush1.bf16.xpose.msra.mxu0 0
        %1290 = vmatprep.subr.bf16.mxu0 0
        %1291 = vmatpush1.bf16.xpose.msra.mxu0 %v1274
        %1292 = vmatprep.subr.bf16.mxu0 0
        %1293 = vmatpush2.bf16.xpose.msra.mxu0 0
        %1294 = vmatprep.subr.bf16.mxu0 0
        %1295 = vmatpush2.bf16.xpose.msra.mxu0 0
        %1296 = vmatprep.subr.bf16.mxu0 0
        %1297 = vmatpush2.bf16.xpose.msra.mxu0 0
        %1298 = vmatprep.subr.bf16.mxu0 0
        %1299 = vmatpush2.bf16.xpose.msra.mxu0 0
        %1300 = vmatprep.subr.bf16.mxu0 0
        %1301 = vmatpush2.bf16.xpose.msra.mxu0 0
        %1302 = vmatprep.subr.bf16.mxu0 0
        %1303 = vmatpush2.bf16.xpose.msra.mxu0 0
        %1304 = vmatprep.subr.bf16.mxu0 0
        %1305 = vmatpush2.bf16.xpose.msra.mxu0 0
        %1306 = vmatprep.subr.bf16.mxu0 0
        %1307 = vmatpush2.bf16.xpose.msra.mxu0 0
        %1308 = vmatprep.mubr.bf16.mxu0 0
        %1309 = vmatmul.mubr.bf16.gmra.mxu0 %v1271
        %v1310 = vpop.f32.mrf.mxu0
        %v1311 = vadd.f32 0.0, %v1310
        %v1312 = vpop.f32.mrf.mxu0
        %v1313 = vpop.f32.mrf.mxu0
        %v1314 = vpop.f32.mrf.mxu0
        %1315 = vdwg.mxu0
        %v1316 = vsel %vm1131, %v1173, -inf
        %1317 = vmax.xlane.f32.xlu0 %v1316
        %v1318 = vpop.xlane.xlu0 %1317
        %v1319 = vsel %vm1131, %v1219, -inf
        %1320 = vmax.xlane.f32.xlu0 %v1319
        %v1321 = vpop.xlane.xlu0 %1320
        %v1322 = vsel %vm1131, %v1265, -inf
        %1323 = vmax.xlane.f32.xlu0 %v1322
        %v1324 = vpop.xlane.xlu0 %1323
        %v1325 = vsel %vm1131, %v1311, -inf
        %1326 = vmax.xlane.f32.xlu0 %v1325
        %v1327 = vpop.xlane.xlu0 %1326
        %v1328 = vsel %vm1131, %v1173, inf
        %1329 = vmin.xlane.f32.xlu0 %v1328
        %v1330 = vpop.xlane.xlu0 %1329
        %v1331 = vsel %vm1131, %v1219, inf
        %1332 = vmin.xlane.f32.xlu0 %v1331
        %v1333 = vpop.xlane.xlu0 %1332
        %v1334 = vsel %vm1131, %v1265, inf
        %1335 = vmin.xlane.f32.xlu0 %v1334
        %v1336 = vpop.xlane.xlu0 %1335
        %v1337 = vsel %vm1131, %v1311, inf
        %1338 = vmin.xlane.f32.xlu0 %v1337
        %v1339 = vpop.xlane.xlu0 %1338
        %v1340 = vsub.f32 %v1330, 1.0
        %v1341 = vsub.f32 %v1333, 1.0
        %v1342 = vsub.f32 %v1336, 1.0
        %v1343 = vsub.f32 %v1339, 1.0
        %v1344 = vadd.f32 %v1340, %v1318
        %v1345 = vadd.f32 %v1341, %v1321
        %v1346 = vadd.f32 %v1342, %v1324
        %v1347 = vadd.f32 %v1343, %v1327
        %v1348 = vmul.f32 %v1344, 0.5
        %v1349 = vmul.f32 %v1345, 0.5
        %v1350 = vmul.f32 %v1346, 0.5
        %v1351 = vmul.f32 %v1347, 0.5
        %vm1352 = vcmp.gt.f32.partialorder %v1173, %v1348
        %vm1353 = vcmp.gt.f32.partialorder %v1219, %v1349
        %vm1354 = vcmp.gt.f32.partialorder %v1265, %v1350
        %vm1355 = vcmp.gt.f32.partialorder %v1311, %v1351
        %v1356 = vsel %vm1352, 1, 0
        %v1357 = vsel %vm1353, 1, 0
        %v1358 = vsel %vm1354, 1, 0
        %v1359 = vsel %vm1355, 1, 0
        %v1360 = vcvt.s32.f32 %v1356
        %v1361 = vcvt.s32.f32 %v1357
        %v1362 = vcvt.s32.f32 %v1358
        %v1363 = vcvt.s32.f32 %v1359
        %v1364 = vsel %vm1131, %v1360, 0.0
        %1365 = vadd.xlane.f32.xlu0 %v1364
        %v1366 = vpop.xlane.xlu0 %1365
        %v1367 = vsel %vm1131, %v1361, 0.0
        %1368 = vadd.xlane.f32.xlu0 %v1367
        %v1369 = vpop.xlane.xlu0 %1368
        %v1370 = vsel %vm1131, %v1362, 0.0
        %1371 = vadd.xlane.f32.xlu0 %v1370
        %v1372 = vpop.xlane.xlu0 %1371
        %v1373 = vsel %vm1131, %v1363, 0.0
        %1374 = vadd.xlane.f32.xlu0 %v1373
        %v1375 = vpop.xlane.xlu0 %1374
        %vm1376 = vcmp.ge.f32.partialorder %v1366, 5.0
        %vm1377 = vcmp.ge.f32.partialorder %v1369, 5.0
        %vm1378 = vcmp.ge.f32.partialorder %v1372, 5.0
        %vm1379 = vcmp.ge.f32.partialorder %v1375, 5.0
        %v1380 = vsel %vm1376, %v1348, %v1340
        %v1381 = vsel %vm1377, %v1349, %v1341
        %v1382 = vsel %vm1378, %v1350, %v1342
        %v1383 = vsel %vm1379, %v1351, %v1343
        %v1384 = vsel %vm1376, %v1318, %v1348
        %v1385 = vsel %vm1377, %v1321, %v1349
        %v1386 = vsel %vm1378, %v1324, %v1350
        %v1387 = vsel %vm1379, %v1327, %v1351
        %v1388 = vadd.f32 %v1380, %v1384
        %v1389 = vadd.f32 %v1381, %v1385
        %v1390 = vadd.f32 %v1382, %v1386
        %v1391 = vadd.f32 %v1383, %v1387
        %v1392 = vmul.f32 %v1388, 0.5
        %v1393 = vmul.f32 %v1389, 0.5
        %v1394 = vmul.f32 %v1390, 0.5
        %v1395 = vmul.f32 %v1391, 0.5
        %vm1396 = vcmp.gt.f32.partialorder %v1173, %v1392
        %vm1397 = vcmp.gt.f32.partialorder %v1219, %v1393
        %vm1398 = vcmp.gt.f32.partialorder %v1265, %v1394
        %vm1399 = vcmp.gt.f32.partialorder %v1311, %v1395
        %v1400 = vsel %vm1396, 1, 0
        %v1401 = vsel %vm1397, 1, 0
        %v1402 = vsel %vm1398, 1, 0
        %v1403 = vsel %vm1399, 1, 0
        %v1404 = vcvt.s32.f32 %v1400
        %v1405 = vcvt.s32.f32 %v1401
        %v1406 = vcvt.s32.f32 %v1402
        %v1407 = vcvt.s32.f32 %v1403
        %v1408 = vsel %vm1131, %v1404, 0.0
        %1409 = vadd.xlane.f32.xlu0 %v1408
        %v1410 = vpop.xlane.xlu0 %1409
        %v1411 = vsel %vm1131, %v1405, 0.0
        %1412 = vadd.xlane.f32.xlu0 %v1411
        %v1413 = vpop.xlane.xlu0 %1412
        %v1414 = vsel %vm1131, %v1406, 0.0
        %1415 = vadd.xlane.f32.xlu0 %v1414
        %v1416 = vpop.xlane.xlu0 %1415
        %v1417 = vsel %vm1131, %v1407, 0.0
        %1418 = vadd.xlane.f32.xlu0 %v1417
        %v1419 = vpop.xlane.xlu0 %1418
        %vm1420 = vcmp.ge.f32.partialorder %v1410, 5.0
        %vm1421 = vcmp.ge.f32.partialorder %v1413, 5.0
        %vm1422 = vcmp.ge.f32.partialorder %v1416, 5.0
        %vm1423 = vcmp.ge.f32.partialorder %v1419, 5.0
        %v1424 = vsel %vm1420, %v1392, %v1380
        %v1425 = vsel %vm1421, %v1393, %v1381
        %v1426 = vsel %vm1422, %v1394, %v1382
        %v1427 = vsel %vm1423, %v1395, %v1383
        %v1428 = vsel %vm1420, %v1384, %v1392
        %v1429 = vsel %vm1421, %v1385, %v1393
        %v1430 = vsel %vm1422, %v1386, %v1394
        %v1431 = vsel %vm1423, %v1387, %v1395
        %v1432 = vadd.f32 %v1424, %v1428
        %v1433 = vadd.f32 %v1425, %v1429
        %v1434 = vadd.f32 %v1426, %v1430
        %v1435 = vadd.f32 %v1427, %v1431
        %v1436 = vmul.f32 %v1432, 0.5
        %v1437 = vmul.f32 %v1433, 0.5
        %v1438 = vmul.f32 %v1434, 0.5
        %v1439 = vmul.f32 %v1435, 0.5
        %vm1440 = vcmp.gt.f32.partialorder %v1173, %v1436
        %vm1441 = vcmp.gt.f32.partialorder %v1219, %v1437
        %vm1442 = vcmp.gt.f32.partialorder %v1265, %v1438
        %vm1443 = vcmp.gt.f32.partialorder %v1311, %v1439
        %v1444 = vsel %vm1440, 1, 0
        %v1445 = vsel %vm1441, 1, 0
        %v1446 = vsel %vm1442, 1, 0
        %v1447 = vsel %vm1443, 1, 0
        %v1448 = vcvt.s32.f32 %v1444
        %v1449 = vcvt.s32.f32 %v1445
        %v1450 = vcvt.s32.f32 %v1446
        %v1451 = vcvt.s32.f32 %v1447
        %v1452 = vsel %vm1131, %v1448, 0.0
        %1453 = vadd.xlane.f32.xlu0 %v1452
        %v1454 = vpop.xlane.xlu0 %1453
        %v1455 = vsel %vm1131, %v1449, 0.0
        %1456 = vadd.xlane.f32.xlu0 %v1455
        %v1457 = vpop.xlane.xlu0 %1456
        %v1458 = vsel %vm1131, %v1450, 0.0
        %1459 = vadd.xlane.f32.xlu0 %v1458
        %v1460 = vpop.xlane.xlu0 %1459
        %v1461 = vsel %vm1131, %v1451, 0.0
        %1462 = vadd.xlane.f32.xlu0 %v1461
        %v1463 = vpop.xlane.xlu0 %1462
        %vm1464 = vcmp.ge.f32.partialorder %v1454, 5.0
        %vm1465 = vcmp.ge.f32.partialorder %v1457, 5.0
        %vm1466 = vcmp.ge.f32.partialorder %v1460, 5.0
        %vm1467 = vcmp.ge.f32.partialorder %v1463, 5.0
        %v1468 = vsel %vm1464, %v1436, %v1424
        %v1469 = vsel %vm1465, %v1437, %v1425
        %v1470 = vsel %vm1466, %v1438, %v1426
        %v1471 = vsel %vm1467, %v1439, %v1427
        %v1472 = vsel %vm1464, %v1428, %v1436
        %v1473 = vsel %vm1465, %v1429, %v1437
        %v1474 = vsel %vm1466, %v1430, %v1438
        %v1475 = vsel %vm1467, %v1431, %v1439
        %v1476 = vadd.f32 %v1468, %v1472
        %v1477 = vadd.f32 %v1469, %v1473
        %v1478 = vadd.f32 %v1470, %v1474
        %v1479 = vadd.f32 %v1471, %v1475
        %v1480 = vmul.f32 %v1476, 0.5
        %v1481 = vmul.f32 %v1477, 0.5
        %v1482 = vmul.f32 %v1478, 0.5
        %v1483 = vmul.f32 %v1479, 0.5
        %vm1484 = vcmp.gt.f32.partialorder %v1173, %v1480
        %vm1485 = vcmp.gt.f32.partialorder %v1219, %v1481
        %vm1486 = vcmp.gt.f32.partialorder %v1265, %v1482
        %vm1487 = vcmp.gt.f32.partialorder %v1311, %v1483
        %v1488 = vsel %vm1484, 1, 0
        %v1489 = vsel %vm1485, 1, 0
        %v1490 = vsel %vm1486, 1, 0
        %v1491 = vsel %vm1487, 1, 0
        %v1492 = vcvt.s32.f32 %v1488
        %v1493 = vcvt.s32.f32 %v1489
        %v1494 = vcvt.s32.f32 %v1490
        %v1495 = vcvt.s32.f32 %v1491
        %v1496 = vsel %vm1131, %v1492, 0.0
        %1497 = vadd.xlane.f32.xlu0 %v1496
        %v1498 = vpop.xlane.xlu0 %1497
        %v1499 = vsel %vm1131, %v1493, 0.0
        %1500 = vadd.xlane.f32.xlu0 %v1499
        %v1501 = vpop.xlane.xlu0 %1500
        %v1502 = vsel %vm1131, %v1494, 0.0
        %1503 = vadd.xlane.f32.xlu0 %v1502
        %v1504 = vpop.xlane.xlu0 %1503
        %v1505 = vsel %vm1131, %v1495, 0.0
        %1506 = vadd.xlane.f32.xlu0 %v1505
        %v1507 = vpop.xlane.xlu0 %1506
        %vm1508 = vcmp.ge.f32.partialorder %v1498, 5.0
        %vm1509 = vcmp.ge.f32.partialorder %v1501, 5.0
        %vm1510 = vcmp.ge.f32.partialorder %v1504, 5.0
        %vm1511 = vcmp.ge.f32.partialorder %v1507, 5.0
        %v1512 = vsel %vm1508, %v1480, %v1468
        %v1513 = vsel %vm1509, %v1481, %v1469
        %v1514 = vsel %vm1510, %v1482, %v1470
        %v1515 = vsel %vm1511, %v1483, %v1471
        %v1516 = vsel %vm1508, %v1472, %v1480
        %v1517 = vsel %vm1509, %v1473, %v1481
        %v1518 = vsel %vm1510, %v1474, %v1482
        %v1519 = vsel %vm1511, %v1475, %v1483
        %v1520 = vadd.f32 %v1512, %v1516
        %v1521 = vadd.f32 %v1513, %v1517
        %v1522 = vadd.f32 %v1514, %v1518
        %v1523 = vadd.f32 %v1515, %v1519
        %v1524 = vmul.f32 %v1520, 0.5
        %v1525 = vmul.f32 %v1521, 0.5
        %v1526 = vmul.f32 %v1522, 0.5
        %v1527 = vmul.f32 %v1523, 0.5
        %vm1528 = vcmp.gt.f32.partialorder %v1173, %v1524
        %vm1529 = vcmp.gt.f32.partialorder %v1219, %v1525
        %vm1530 = vcmp.gt.f32.partialorder %v1265, %v1526
        %vm1531 = vcmp.gt.f32.partialorder %v1311, %v1527
        %v1532 = vsel %vm1528, 1, 0
        %v1533 = vsel %vm1529, 1, 0
        %v1534 = vsel %vm1530, 1, 0
        %v1535 = vsel %vm1531, 1, 0
        %v1536 = vcvt.s32.f32 %v1532
        %v1537 = vcvt.s32.f32 %v1533
        %v1538 = vcvt.s32.f32 %v1534
        %v1539 = vcvt.s32.f32 %v1535
        %v1540 = vsel %vm1131, %v1536, 0.0
        %1541 = vadd.xlane.f32.xlu0 %v1540
        %v1542 = vpop.xlane.xlu0 %1541
        %v1543 = vsel %vm1131, %v1537, 0.0
        %1544 = vadd.xlane.f32.xlu0 %v1543
        %v1545 = vpop.xlane.xlu0 %1544
        %v1546 = vsel %vm1131, %v1538, 0.0
        %1547 = vadd.xlane.f32.xlu0 %v1546
        %v1548 = vpop.xlane.xlu0 %1547
        %v1549 = vsel %vm1131, %v1539, 0.0
        %1550 = vadd.xlane.f32.xlu0 %v1549
        %v1551 = vpop.xlane.xlu0 %1550
        %vm1552 = vcmp.ge.f32.partialorder %v1542, 5.0
        %vm1553 = vcmp.ge.f32.partialorder %v1545, 5.0
        %vm1554 = vcmp.ge.f32.partialorder %v1548, 5.0
        %vm1555 = vcmp.ge.f32.partialorder %v1551, 5.0
        %v1556 = vsel %vm1552, %v1524, %v1512
        %v1557 = vsel %vm1553, %v1525, %v1513
        %v1558 = vsel %vm1554, %v1526, %v1514
        %v1559 = vsel %vm1555, %v1527, %v1515
        %v1560 = vsel %vm1552, %v1516, %v1524
        %v1561 = vsel %vm1553, %v1517, %v1525
        %v1562 = vsel %vm1554, %v1518, %v1526
        %v1563 = vsel %vm1555, %v1519, %v1527
        %v1564 = vadd.f32 %v1556, %v1560
        %v1565 = vadd.f32 %v1557, %v1561
        %v1566 = vadd.f32 %v1558, %v1562
        %v1567 = vadd.f32 %v1559, %v1563
        %v1568 = vmul.f32 %v1564, 0.5
        %v1569 = vmul.f32 %v1565, 0.5
        %v1570 = vmul.f32 %v1566, 0.5
        %v1571 = vmul.f32 %v1567, 0.5
        %vm1572 = vcmp.gt.f32.partialorder %v1173, %v1568
        %vm1573 = vcmp.gt.f32.partialorder %v1219, %v1569
        %vm1574 = vcmp.gt.f32.partialorder %v1265, %v1570
        %vm1575 = vcmp.gt.f32.partialorder %v1311, %v1571
        %v1576 = vsel %vm1572, 1, 0
        %v1577 = vsel %vm1573, 1, 0
        %v1578 = vsel %vm1574, 1, 0
        %v1579 = vsel %vm1575, 1, 0
        %v1580 = vcvt.s32.f32 %v1576
        %v1581 = vcvt.s32.f32 %v1577
        %v1582 = vcvt.s32.f32 %v1578
        %v1583 = vcvt.s32.f32 %v1579
        %v1584 = vsel %vm1131, %v1580, 0.0
        %1585 = vadd.xlane.f32.xlu0 %v1584
        %v1586 = vpop.xlane.xlu0 %1585
        %v1587 = vsel %vm1131, %v1581, 0.0
        %1588 = vadd.xlane.f32.xlu0 %v1587
        %v1589 = vpop.xlane.xlu0 %1588
        %v1590 = vsel %vm1131, %v1582, 0.0
        %1591 = vadd.xlane.f32.xlu0 %v1590
        %v1592 = vpop.xlane.xlu0 %1591
        %v1593 = vsel %vm1131, %v1583, 0.0
        %1594 = vadd.xlane.f32.xlu0 %v1593
        %v1595 = vpop.xlane.xlu0 %1594
        %vm1596 = vcmp.ge.f32.partialorder %v1586, 5.0
        %vm1597 = vcmp.ge.f32.partialorder %v1589, 5.0
        %vm1598 = vcmp.ge.f32.partialorder %v1592, 5.0
        %vm1599 = vcmp.ge.f32.partialorder %v1595, 5.0
        %v1600 = vsel %vm1596, %v1568, %v1556
        %v1601 = vsel %vm1597, %v1569, %v1557
        %v1602 = vsel %vm1598, %v1570, %v1558
        %v1603 = vsel %vm1599, %v1571, %v1559
        %v1604 = vsel %vm1596, %v1560, %v1568
        %v1605 = vsel %vm1597, %v1561, %v1569
        %v1606 = vsel %vm1598, %v1562, %v1570
        %v1607 = vsel %vm1599, %v1563, %v1571
        %v1608 = vadd.f32 %v1600, %v1604
        %v1609 = vadd.f32 %v1601, %v1605
        %v1610 = vadd.f32 %v1602, %v1606
        %v1611 = vadd.f32 %v1603, %v1607
        %v1612 = vmul.f32 %v1608, 0.5
        %v1613 = vmul.f32 %v1609, 0.5
        %v1614 = vmul.f32 %v1610, 0.5
        %v1615 = vmul.f32 %v1611, 0.5
        %vm1616 = vcmp.gt.f32.partialorder %v1173, %v1612
        %vm1617 = vcmp.gt.f32.partialorder %v1219, %v1613
        %vm1618 = vcmp.gt.f32.partialorder %v1265, %v1614
        %vm1619 = vcmp.gt.f32.partialorder %v1311, %v1615
        %v1620 = vsel %vm1616, 1, 0
        %v1621 = vsel %vm1617, 1, 0
        %v1622 = vsel %vm1618, 1, 0
        %v1623 = vsel %vm1619, 1, 0
        %v1624 = vcvt.s32.f32 %v1620
        %v1625 = vcvt.s32.f32 %v1621
        %v1626 = vcvt.s32.f32 %v1622
        %v1627 = vcvt.s32.f32 %v1623
        %v1628 = vsel %vm1131, %v1624, 0.0
        %1629 = vadd.xlane.f32.xlu0 %v1628
        %v1630 = vpop.xlane.xlu0 %1629
        %v1631 = vsel %vm1131, %v1625, 0.0
        %1632 = vadd.xlane.f32.xlu0 %v1631
        %v1633 = vpop.xlane.xlu0 %1632
        %v1634 = vsel %vm1131, %v1626, 0.0
        %1635 = vadd.xlane.f32.xlu0 %v1634
        %v1636 = vpop.xlane.xlu0 %1635
        %v1637 = vsel %vm1131, %v1627, 0.0
        %1638 = vadd.xlane.f32.xlu0 %v1637
        %v1639 = vpop.xlane.xlu0 %1638
        %vm1640 = vcmp.ge.f32.partialorder %v1630, 5.0
        %vm1641 = vcmp.ge.f32.partialorder %v1633, 5.0
        %vm1642 = vcmp.ge.f32.partialorder %v1636, 5.0
        %vm1643 = vcmp.ge.f32.partialorder %v1639, 5.0
        %v1644 = vsel %vm1640, %v1612, %v1600
        %v1645 = vsel %vm1641, %v1613, %v1601
        %v1646 = vsel %vm1642, %v1614, %v1602
        %v1647 = vsel %vm1643, %v1615, %v1603
        %v1648 = vsel %vm1640, %v1604, %v1612
        %v1649 = vsel %vm1641, %v1605, %v1613
        %v1650 = vsel %vm1642, %v1606, %v1614
        %v1651 = vsel %vm1643, %v1607, %v1615
        %v1652 = vadd.f32 %v1644, %v1648
        %v1653 = vadd.f32 %v1645, %v1649
        %v1654 = vadd.f32 %v1646, %v1650
        %v1655 = vadd.f32 %v1647, %v1651
        %v1656 = vmul.f32 %v1652, 0.5
        %v1657 = vmul.f32 %v1653, 0.5
        %v1658 = vmul.f32 %v1654, 0.5
        %v1659 = vmul.f32 %v1655, 0.5
        %vm1660 = vcmp.gt.f32.partialorder %v1173, %v1656
        %vm1661 = vcmp.gt.f32.partialorder %v1219, %v1657
        %vm1662 = vcmp.gt.f32.partialorder %v1265, %v1658
        %vm1663 = vcmp.gt.f32.partialorder %v1311, %v1659
        %v1664 = vsel %vm1660, 1, 0
        %v1665 = vsel %vm1661, 1, 0
        %v1666 = vsel %vm1662, 1, 0
        %v1667 = vsel %vm1663, 1, 0
        %v1668 = vcvt.s32.f32 %v1664
        %v1669 = vcvt.s32.f32 %v1665
        %v1670 = vcvt.s32.f32 %v1666
        %v1671 = vcvt.s32.f32 %v1667
        %v1672 = vsel %vm1131, %v1668, 0.0
        %1673 = vadd.xlane.f32.xlu0 %v1672
        %v1674 = vpop.xlane.xlu0 %1673
        %v1675 = vsel %vm1131, %v1669, 0.0
        %1676 = vadd.xlane.f32.xlu0 %v1675
        %v1677 = vpop.xlane.xlu0 %1676
        %v1678 = vsel %vm1131, %v1670, 0.0
        %1679 = vadd.xlane.f32.xlu0 %v1678
        %v1680 = vpop.xlane.xlu0 %1679
        %v1681 = vsel %vm1131, %v1671, 0.0
        %1682 = vadd.xlane.f32.xlu0 %v1681
        %v1683 = vpop.xlane.xlu0 %1682
        %vm1684 = vcmp.ge.f32.partialorder %v1674, 5.0
        %vm1685 = vcmp.ge.f32.partialorder %v1677, 5.0
        %vm1686 = vcmp.ge.f32.partialorder %v1680, 5.0
        %vm1687 = vcmp.ge.f32.partialorder %v1683, 5.0
        %v1688 = vsel %vm1684, %v1656, %v1644
        %v1689 = vsel %vm1685, %v1657, %v1645
        %v1690 = vsel %vm1686, %v1658, %v1646
        %v1691 = vsel %vm1687, %v1659, %v1647
        %v1692 = vsel %vm1684, %v1648, %v1656
        %v1693 = vsel %vm1685, %v1649, %v1657
        %v1694 = vsel %vm1686, %v1650, %v1658
        %v1695 = vsel %vm1687, %v1651, %v1659
        %v1696 = vadd.f32 %v1688, %v1692
        %v1697 = vadd.f32 %v1689, %v1693
        %v1698 = vadd.f32 %v1690, %v1694
        %v1699 = vadd.f32 %v1691, %v1695
        %v1700 = vmul.f32 %v1696, 0.5
        %v1701 = vmul.f32 %v1697, 0.5
        %v1702 = vmul.f32 %v1698, 0.5
        %v1703 = vmul.f32 %v1699, 0.5
        %vm1704 = vcmp.gt.f32.partialorder %v1173, %v1700
        %vm1705 = vcmp.gt.f32.partialorder %v1219, %v1701
        %vm1706 = vcmp.gt.f32.partialorder %v1265, %v1702
        %vm1707 = vcmp.gt.f32.partialorder %v1311, %v1703
        %v1708 = vsel %vm1704, 1, 0
        %v1709 = vsel %vm1705, 1, 0
        %v1710 = vsel %vm1706, 1, 0
        %v1711 = vsel %vm1707, 1, 0
        %v1712 = vcvt.s32.f32 %v1708
        %v1713 = vcvt.s32.f32 %v1709
        %v1714 = vcvt.s32.f32 %v1710
        %v1715 = vcvt.s32.f32 %v1711
        %v1716 = vsel %vm1131, %v1712, 0.0
        %1717 = vadd.xlane.f32.xlu0 %v1716
        %v1718 = vpop.xlane.xlu0 %1717
        %v1719 = vsel %vm1131, %v1713, 0.0
        %1720 = vadd.xlane.f32.xlu0 %v1719
        %v1721 = vpop.xlane.xlu0 %1720
        %v1722 = vsel %vm1131, %v1714, 0.0
        %1723 = vadd.xlane.f32.xlu0 %v1722
        %v1724 = vpop.xlane.xlu0 %1723
        %v1725 = vsel %vm1131, %v1715, 0.0
        %1726 = vadd.xlane.f32.xlu0 %v1725
        %v1727 = vpop.xlane.xlu0 %1726
        %vm1728 = vcmp.ge.f32.partialorder %v1718, 5.0
        %vm1729 = vcmp.ge.f32.partialorder %v1721, 5.0
        %vm1730 = vcmp.ge.f32.partialorder %v1724, 5.0
        %vm1731 = vcmp.ge.f32.partialorder %v1727, 5.0
        %v1732 = vsel %vm1728, %v1700, %v1688
        %v1733 = vsel %vm1729, %v1701, %v1689
        %v1734 = vsel %vm1730, %v1702, %v1690
        %v1735 = vsel %vm1731, %v1703, %v1691
        %v1736 = vsel %vm1728, %v1692, %v1700
        %v1737 = vsel %vm1729, %v1693, %v1701
        %v1738 = vsel %vm1730, %v1694, %v1702
        %v1739 = vsel %vm1731, %v1695, %v1703
        %v1740 = vadd.f32 %v1732, %v1736
        %v1741 = vadd.f32 %v1733, %v1737
        %v1742 = vadd.f32 %v1734, %v1738
        %v1743 = vadd.f32 %v1735, %v1739
        %v1744 = vmul.f32 %v1740, 0.5
        %v1745 = vmul.f32 %v1741, 0.5
        %v1746 = vmul.f32 %v1742, 0.5
        %v1747 = vmul.f32 %v1743, 0.5
        %vm1748 = vcmp.gt.f32.partialorder %v1173, %v1744
        %vm1749 = vcmp.gt.f32.partialorder %v1219, %v1745
        %vm1750 = vcmp.gt.f32.partialorder %v1265, %v1746
        %vm1751 = vcmp.gt.f32.partialorder %v1311, %v1747
        %v1752 = vsel %vm1748, 1, 0
        %v1753 = vsel %vm1749, 1, 0
        %v1754 = vsel %vm1750, 1, 0
        %v1755 = vsel %vm1751, 1, 0
        %v1756 = vcvt.s32.f32 %v1752
        %v1757 = vcvt.s32.f32 %v1753
        %v1758 = vcvt.s32.f32 %v1754
        %v1759 = vcvt.s32.f32 %v1755
        %v1760 = vsel %vm1131, %v1756, 0.0
        %1761 = vadd.xlane.f32.xlu0 %v1760
        %v1762 = vpop.xlane.xlu0 %1761
        %v1763 = vsel %vm1131, %v1757, 0.0
        %1764 = vadd.xlane.f32.xlu0 %v1763
        %v1765 = vpop.xlane.xlu0 %1764
        %v1766 = vsel %vm1131, %v1758, 0.0
        %1767 = vadd.xlane.f32.xlu0 %v1766
        %v1768 = vpop.xlane.xlu0 %1767
        %v1769 = vsel %vm1131, %v1759, 0.0
        %1770 = vadd.xlane.f32.xlu0 %v1769
        %v1771 = vpop.xlane.xlu0 %1770
        %vm1772 = vcmp.ge.f32.partialorder %v1762, 5.0
        %vm1773 = vcmp.ge.f32.partialorder %v1765, 5.0
        %vm1774 = vcmp.ge.f32.partialorder %v1768, 5.0
        %vm1775 = vcmp.ge.f32.partialorder %v1771, 5.0
        %v1776 = vsel %vm1772, %v1744, %v1732
        %v1777 = vsel %vm1773, %v1745, %v1733
        %v1778 = vsel %vm1774, %v1746, %v1734
        %v1779 = vsel %vm1775, %v1747, %v1735
        %v1780 = vsel %vm1772, %v1736, %v1744
        %v1781 = vsel %vm1773, %v1737, %v1745
        %v1782 = vsel %vm1774, %v1738, %v1746
        %v1783 = vsel %vm1775, %v1739, %v1747
        %v1784 = vadd.f32 %v1776, %v1780
        %v1785 = vadd.f32 %v1777, %v1781
        %v1786 = vadd.f32 %v1778, %v1782
        %v1787 = vadd.f32 %v1779, %v1783
        %v1788 = vmul.f32 %v1784, 0.5
        %v1789 = vmul.f32 %v1785, 0.5
        %v1790 = vmul.f32 %v1786, 0.5
        %v1791 = vmul.f32 %v1787, 0.5
        %vm1792 = vcmp.gt.f32.partialorder %v1173, %v1788
        %vm1793 = vcmp.gt.f32.partialorder %v1219, %v1789
        %vm1794 = vcmp.gt.f32.partialorder %v1265, %v1790
        %vm1795 = vcmp.gt.f32.partialorder %v1311, %v1791
        %v1796 = vsel %vm1792, 1, 0
        %v1797 = vsel %vm1793, 1, 0
        %v1798 = vsel %vm1794, 1, 0
        %v1799 = vsel %vm1795, 1, 0
        %v1800 = vcvt.s32.f32 %v1796
        %v1801 = vcvt.s32.f32 %v1797
        %v1802 = vcvt.s32.f32 %v1798
        %v1803 = vcvt.s32.f32 %v1799
        %v1804 = vsel %vm1131, %v1800, 0.0
        %1805 = vadd.xlane.f32.xlu0 %v1804
        %v1806 = vpop.xlane.xlu0 %1805
        %v1807 = vsel %vm1131, %v1801, 0.0
        %1808 = vadd.xlane.f32.xlu0 %v1807
        %v1809 = vpop.xlane.xlu0 %1808
        %v1810 = vsel %vm1131, %v1802, 0.0
        %1811 = vadd.xlane.f32.xlu0 %v1810
        %v1812 = vpop.xlane.xlu0 %1811
        %v1813 = vsel %vm1131, %v1803, 0.0
        %1814 = vadd.xlane.f32.xlu0 %v1813
        %v1815 = vpop.xlane.xlu0 %1814
        %vm1816 = vcmp.ge.f32.partialorder %v1806, 5.0
        %vm1817 = vcmp.ge.f32.partialorder %v1809, 5.0
        %vm1818 = vcmp.ge.f32.partialorder %v1812, 5.0
        %vm1819 = vcmp.ge.f32.partialorder %v1815, 5.0
        %v1820 = vsel %vm1816, %v1788, %v1776
        %v1821 = vsel %vm1817, %v1789, %v1777
        %v1822 = vsel %vm1818, %v1790, %v1778
        %v1823 = vsel %vm1819, %v1791, %v1779
        %v1824 = vsel %vm1816, %v1780, %v1788
        %v1825 = vsel %vm1817, %v1781, %v1789
        %v1826 = vsel %vm1818, %v1782, %v1790
        %v1827 = vsel %vm1819, %v1783, %v1791
        %v1828 = vadd.f32 %v1820, %v1824
        %v1829 = vadd.f32 %v1821, %v1825
        %v1830 = vadd.f32 %v1822, %v1826
        %v1831 = vadd.f32 %v1823, %v1827
        %v1832 = vmul.f32 %v1828, 0.5
        %v1833 = vmul.f32 %v1829, 0.5
        %v1834 = vmul.f32 %v1830, 0.5
        %v1835 = vmul.f32 %v1831, 0.5
        %vm1836 = vcmp.gt.f32.partialorder %v1173, %v1832
        %vm1837 = vcmp.gt.f32.partialorder %v1219, %v1833
        %vm1838 = vcmp.gt.f32.partialorder %v1265, %v1834
        %vm1839 = vcmp.gt.f32.partialorder %v1311, %v1835
        %v1840 = vsel %vm1836, 1, 0
        %v1841 = vsel %vm1837, 1, 0
        %v1842 = vsel %vm1838, 1, 0
        %v1843 = vsel %vm1839, 1, 0
        %v1844 = vcvt.s32.f32 %v1840
        %v1845 = vcvt.s32.f32 %v1841
        %v1846 = vcvt.s32.f32 %v1842
        %v1847 = vcvt.s32.f32 %v1843
        %v1848 = vsel %vm1131, %v1844, 0.0
        %1849 = vadd.xlane.f32.xlu0 %v1848
        %v1850 = vpop.xlane.xlu0 %1849
        %v1851 = vsel %vm1131, %v1845, 0.0
        %1852 = vadd.xlane.f32.xlu0 %v1851
        %v1853 = vpop.xlane.xlu0 %1852
        %v1854 = vsel %vm1131, %v1846, 0.0
        %1855 = vadd.xlane.f32.xlu0 %v1854
        %v1856 = vpop.xlane.xlu0 %1855
        %v1857 = vsel %vm1131, %v1847, 0.0
        %1858 = vadd.xlane.f32.xlu0 %v1857
        %v1859 = vpop.xlane.xlu0 %1858
        %vm1860 = vcmp.ge.f32.partialorder %v1850, 5.0
        %vm1861 = vcmp.ge.f32.partialorder %v1853, 5.0
        %vm1862 = vcmp.ge.f32.partialorder %v1856, 5.0
        %vm1863 = vcmp.ge.f32.partialorder %v1859, 5.0
        %v1864 = vsel %vm1860, %v1832, %v1820
        %v1865 = vsel %vm1861, %v1833, %v1821
        %v1866 = vsel %vm1862, %v1834, %v1822
        %v1867 = vsel %vm1863, %v1835, %v1823
        %v1868 = vsel %vm1860, %v1824, %v1832
        %v1869 = vsel %vm1861, %v1825, %v1833
        %v1870 = vsel %vm1862, %v1826, %v1834
        %v1871 = vsel %vm1863, %v1827, %v1835
        %v1872 = vadd.f32 %v1864, %v1868
        %v1873 = vadd.f32 %v1865, %v1869
        %v1874 = vadd.f32 %v1866, %v1870
        %v1875 = vadd.f32 %v1867, %v1871
        %v1876 = vmul.f32 %v1872, 0.5
        %v1877 = vmul.f32 %v1873, 0.5
        %v1878 = vmul.f32 %v1874, 0.5
        %v1879 = vmul.f32 %v1875, 0.5
        %vm1880 = vcmp.gt.f32.partialorder %v1173, %v1876
        %vm1881 = vcmp.gt.f32.partialorder %v1219, %v1877
        %vm1882 = vcmp.gt.f32.partialorder %v1265, %v1878
        %vm1883 = vcmp.gt.f32.partialorder %v1311, %v1879
        %v1884 = vsel %vm1880, 1, 0
        %v1885 = vsel %vm1881, 1, 0
        %v1886 = vsel %vm1882, 1, 0
        %v1887 = vsel %vm1883, 1, 0
        %v1888 = vcvt.s32.f32 %v1884
        %v1889 = vcvt.s32.f32 %v1885
        %v1890 = vcvt.s32.f32 %v1886
        %v1891 = vcvt.s32.f32 %v1887
        %v1892 = vsel %vm1131, %v1888, 0.0
        %1893 = vadd.xlane.f32.xlu0 %v1892
        %v1894 = vpop.xlane.xlu0 %1893
        %v1895 = vsel %vm1131, %v1889, 0.0
        %1896 = vadd.xlane.f32.xlu0 %v1895
        %v1897 = vpop.xlane.xlu0 %1896
        %v1898 = vsel %vm1131, %v1890, 0.0
        %1899 = vadd.xlane.f32.xlu0 %v1898
        %v1900 = vpop.xlane.xlu0 %1899
        %v1901 = vsel %vm1131, %v1891, 0.0
        %1902 = vadd.xlane.f32.xlu0 %v1901
        %v1903 = vpop.xlane.xlu0 %1902
        %vm1904 = vcmp.ge.f32.partialorder %v1894, 5.0
        %vm1905 = vcmp.ge.f32.partialorder %v1897, 5.0
        %vm1906 = vcmp.ge.f32.partialorder %v1900, 5.0
        %vm1907 = vcmp.ge.f32.partialorder %v1903, 5.0
        %v1908 = vsel %vm1904, %v1876, %v1864
        %v1909 = vsel %vm1905, %v1877, %v1865
        %v1910 = vsel %vm1906, %v1878, %v1866
        %v1911 = vsel %vm1907, %v1879, %v1867
        %v1912 = vsel %vm1904, %v1868, %v1876
        %v1913 = vsel %vm1905, %v1869, %v1877
        %v1914 = vsel %vm1906, %v1870, %v1878
        %v1915 = vsel %vm1907, %v1871, %v1879
        %v1916 = vadd.f32 %v1908, %v1912
        %v1917 = vadd.f32 %v1909, %v1913
        %v1918 = vadd.f32 %v1910, %v1914
        %v1919 = vadd.f32 %v1911, %v1915
        %v1920 = vmul.f32 %v1916, 0.5
        %v1921 = vmul.f32 %v1917, 0.5
        %v1922 = vmul.f32 %v1918, 0.5
        %v1923 = vmul.f32 %v1919, 0.5
        %vm1924 = vcmp.gt.f32.partialorder %v1173, %v1920
        %vm1925 = vcmp.gt.f32.partialorder %v1219, %v1921
        %vm1926 = vcmp.gt.f32.partialorder %v1265, %v1922
        %vm1927 = vcmp.gt.f32.partialorder %v1311, %v1923
        %v1928 = vsel %vm1924, 1, 0
        %v1929 = vsel %vm1925, 1, 0
        %v1930 = vsel %vm1926, 1, 0
        %v1931 = vsel %vm1927, 1, 0
        %v1932 = vcvt.s32.f32 %v1928
        %v1933 = vcvt.s32.f32 %v1929
        %v1934 = vcvt.s32.f32 %v1930
        %v1935 = vcvt.s32.f32 %v1931
        %v1936 = vsel %vm1131, %v1932, 0.0
        %1937 = vadd.xlane.f32.xlu0 %v1936
        %v1938 = vpop.xlane.xlu0 %1937
        %v1939 = vsel %vm1131, %v1933, 0.0
        %1940 = vadd.xlane.f32.xlu0 %v1939
        %v1941 = vpop.xlane.xlu0 %1940
        %v1942 = vsel %vm1131, %v1934, 0.0
        %1943 = vadd.xlane.f32.xlu0 %v1942
        %v1944 = vpop.xlane.xlu0 %1943
        %v1945 = vsel %vm1131, %v1935, 0.0
        %1946 = vadd.xlane.f32.xlu0 %v1945
        %v1947 = vpop.xlane.xlu0 %1946
        %vm1948 = vcmp.ge.f32.partialorder %v1938, 5.0
        %vm1949 = vcmp.ge.f32.partialorder %v1941, 5.0
        %vm1950 = vcmp.ge.f32.partialorder %v1944, 5.0
        %vm1951 = vcmp.ge.f32.partialorder %v1947, 5.0
        %v1952 = vsel %vm1948, %v1920, %v1908
        %v1953 = vsel %vm1949, %v1921, %v1909
        %v1954 = vsel %vm1950, %v1922, %v1910
        %v1955 = vsel %vm1951, %v1923, %v1911
        %v1956 = vsel %vm1948, %v1912, %v1920
        %v1957 = vsel %vm1949, %v1913, %v1921
        %v1958 = vsel %vm1950, %v1914, %v1922
        %v1959 = vsel %vm1951, %v1915, %v1923
        %v1960 = vadd.f32 %v1952, %v1956
        %v1961 = vadd.f32 %v1953, %v1957
        %v1962 = vadd.f32 %v1954, %v1958
        %v1963 = vadd.f32 %v1955, %v1959
        %v1964 = vmul.f32 %v1960, 0.5
        %v1965 = vmul.f32 %v1961, 0.5
        %v1966 = vmul.f32 %v1962, 0.5
        %v1967 = vmul.f32 %v1963, 0.5
        %vm1968 = vcmp.gt.f32.partialorder %v1173, %v1964
        %vm1969 = vcmp.gt.f32.partialorder %v1219, %v1965
        %vm1970 = vcmp.gt.f32.partialorder %v1265, %v1966
        %vm1971 = vcmp.gt.f32.partialorder %v1311, %v1967
        %v1972 = vsel %vm1968, 1, 0
        %v1973 = vsel %vm1969, 1, 0
        %v1974 = vsel %vm1970, 1, 0
        %v1975 = vsel %vm1971, 1, 0
        %v1976 = vcvt.s32.f32 %v1972
        %v1977 = vcvt.s32.f32 %v1973
        %v1978 = vcvt.s32.f32 %v1974
        %v1979 = vcvt.s32.f32 %v1975
        %v1980 = vsel %vm1131, %v1976, 0.0
        %1981 = vadd.xlane.f32.xlu0 %v1980
        %v1982 = vpop.xlane.xlu0 %1981
        %v1983 = vsel %vm1131, %v1977, 0.0
        %1984 = vadd.xlane.f32.xlu0 %v1983
        %v1985 = vpop.xlane.xlu0 %1984
        %v1986 = vsel %vm1131, %v1978, 0.0
        %1987 = vadd.xlane.f32.xlu0 %v1986
        %v1988 = vpop.xlane.xlu0 %1987
        %v1989 = vsel %vm1131, %v1979, 0.0
        %1990 = vadd.xlane.f32.xlu0 %v1989
        %v1991 = vpop.xlane.xlu0 %1990
        %vm1992 = vcmp.ge.f32.partialorder %v1982, 5.0
        %vm1993 = vcmp.ge.f32.partialorder %v1985, 5.0
        %vm1994 = vcmp.ge.f32.partialorder %v1988, 5.0
        %vm1995 = vcmp.ge.f32.partialorder %v1991, 5.0
        %v1996 = vsel %vm1992, %v1964, %v1952
        %v1997 = vsel %vm1993, %v1965, %v1953
        %v1998 = vsel %vm1994, %v1966, %v1954
        %v1999 = vsel %vm1995, %v1967, %v1955
        %v2000 = vsel %vm1992, %v1956, %v1964
        %v2001 = vsel %vm1993, %v1957, %v1965
        %v2002 = vsel %vm1994, %v1958, %v1966
        %v2003 = vsel %vm1995, %v1959, %v1967
        %v2004 = vadd.f32 %v1996, %v2000
        %v2005 = vadd.f32 %v1997, %v2001
        %v2006 = vadd.f32 %v1998, %v2002
        %v2007 = vadd.f32 %v1999, %v2003
        %v2008 = vmul.f32 %v2004, 0.5
        %v2009 = vmul.f32 %v2005, 0.5
        %v2010 = vmul.f32 %v2006, 0.5
        %v2011 = vmul.f32 %v2007, 0.5
        %vm2012 = vcmp.gt.f32.partialorder %v1173, %v2008
        %vm2013 = vcmp.gt.f32.partialorder %v1219, %v2009
        %vm2014 = vcmp.gt.f32.partialorder %v1265, %v2010
        %vm2015 = vcmp.gt.f32.partialorder %v1311, %v2011
        %v2016 = vsel %vm2012, 1, 0
        %v2017 = vsel %vm2013, 1, 0
        %v2018 = vsel %vm2014, 1, 0
        %v2019 = vsel %vm2015, 1, 0
        %v2020 = vcvt.s32.f32 %v2016
        %v2021 = vcvt.s32.f32 %v2017
        %v2022 = vcvt.s32.f32 %v2018
        %v2023 = vcvt.s32.f32 %v2019
        %v2024 = vsel %vm1131, %v2020, 0.0
        %2025 = vadd.xlane.f32.xlu0 %v2024
        %v2026 = vpop.xlane.xlu0 %2025
        %v2027 = vsel %vm1131, %v2021, 0.0
        %2028 = vadd.xlane.f32.xlu0 %v2027
        %v2029 = vpop.xlane.xlu0 %2028
        %v2030 = vsel %vm1131, %v2022, 0.0
        %2031 = vadd.xlane.f32.xlu0 %v2030
        %v2032 = vpop.xlane.xlu0 %2031
        %v2033 = vsel %vm1131, %v2023, 0.0
        %2034 = vadd.xlane.f32.xlu0 %v2033
        %v2035 = vpop.xlane.xlu0 %2034
        %vm2036 = vcmp.ge.f32.partialorder %v2026, 5.0
        %vm2037 = vcmp.ge.f32.partialorder %v2029, 5.0
        %vm2038 = vcmp.ge.f32.partialorder %v2032, 5.0
        %vm2039 = vcmp.ge.f32.partialorder %v2035, 5.0
        %v2040 = vsel %vm2036, %v2008, %v1996
        %v2041 = vsel %vm2037, %v2009, %v1997
        %v2042 = vsel %vm2038, %v2010, %v1998
        %v2043 = vsel %vm2039, %v2011, %v1999
        %v2044 = vsel %vm2036, %v2000, %v2008
        %v2045 = vsel %vm2037, %v2001, %v2009
        %v2046 = vsel %vm2038, %v2002, %v2010
        %v2047 = vsel %vm2039, %v2003, %v2011
        %v2048 = vadd.f32 %v2040, %v2044
        %v2049 = vadd.f32 %v2041, %v2045
        %v2050 = vadd.f32 %v2042, %v2046
        %v2051 = vadd.f32 %v2043, %v2047
        %v2052 = vmul.f32 %v2048, 0.5
        %v2053 = vmul.f32 %v2049, 0.5
        %v2054 = vmul.f32 %v2050, 0.5
        %v2055 = vmul.f32 %v2051, 0.5
        %vm2056 = vcmp.gt.f32.partialorder %v1173, %v2052
        %vm2057 = vcmp.gt.f32.partialorder %v1219, %v2053
        %vm2058 = vcmp.gt.f32.partialorder %v1265, %v2054
        %vm2059 = vcmp.gt.f32.partialorder %v1311, %v2055
        %v2060 = vsel %vm2056, 1, 0
        %v2061 = vsel %vm2057, 1, 0
        %v2062 = vsel %vm2058, 1, 0
        %v2063 = vsel %vm2059, 1, 0
        %v2064 = vcvt.s32.f32 %v2060
        %v2065 = vcvt.s32.f32 %v2061
        %v2066 = vcvt.s32.f32 %v2062
        %v2067 = vcvt.s32.f32 %v2063
        %v2068 = vsel %vm1131, %v2064, 0.0
        %2069 = vadd.xlane.f32.xlu0 %v2068
        %v2070 = vpop.xlane.xlu0 %2069
        %v2071 = vsel %vm1131, %v2065, 0.0
        %2072 = vadd.xlane.f32.xlu0 %v2071
        %v2073 = vpop.xlane.xlu0 %2072
        %v2074 = vsel %vm1131, %v2066, 0.0
        %2075 = vadd.xlane.f32.xlu0 %v2074
        %v2076 = vpop.xlane.xlu0 %2075
        %v2077 = vsel %vm1131, %v2067, 0.0
        %2078 = vadd.xlane.f32.xlu0 %v2077
        %v2079 = vpop.xlane.xlu0 %2078
        %vm2080 = vcmp.ge.f32.partialorder %v2070, 5.0
        %vm2081 = vcmp.ge.f32.partialorder %v2073, 5.0
        %vm2082 = vcmp.ge.f32.partialorder %v2076, 5.0
        %vm2083 = vcmp.ge.f32.partialorder %v2079, 5.0
        %v2084 = vsel %vm2080, %v2052, %v2040
        %v2085 = vsel %vm2081, %v2053, %v2041
        %v2086 = vsel %vm2082, %v2054, %v2042
        %v2087 = vsel %vm2083, %v2055, %v2043
        %v2088 = vsel %vm2080, %v2044, %v2052
        %v2089 = vsel %vm2081, %v2045, %v2053
        %v2090 = vsel %vm2082, %v2046, %v2054
        %v2091 = vsel %vm2083, %v2047, %v2055
        %v2092 = vadd.f32 %v2084, %v2088
        %v2093 = vadd.f32 %v2085, %v2089
        %v2094 = vadd.f32 %v2086, %v2090
        %v2095 = vadd.f32 %v2087, %v2091
        %v2096 = vmul.f32 %v2092, 0.5
        %v2097 = vmul.f32 %v2093, 0.5
        %v2098 = vmul.f32 %v2094, 0.5
        %v2099 = vmul.f32 %v2095, 0.5
        %vm2100 = vcmp.gt.f32.partialorder %v1173, %v2096
        %vm2101 = vcmp.gt.f32.partialorder %v1219, %v2097
        %vm2102 = vcmp.gt.f32.partialorder %v1265, %v2098
        %vm2103 = vcmp.gt.f32.partialorder %v1311, %v2099
        %v2104 = vsel %vm2100, 1, 0
        %v2105 = vsel %vm2101, 1, 0
        %v2106 = vsel %vm2102, 1, 0
        %v2107 = vsel %vm2103, 1, 0
        %v2108 = vcvt.s32.f32 %v2104
        %v2109 = vcvt.s32.f32 %v2105
        %v2110 = vcvt.s32.f32 %v2106
        %v2111 = vcvt.s32.f32 %v2107
        %v2112 = vsel %vm1131, %v2108, 0.0
        %2113 = vadd.xlane.f32.xlu0 %v2112
        %v2114 = vpop.xlane.xlu0 %2113
        %v2115 = vsel %vm1131, %v2109, 0.0
        %2116 = vadd.xlane.f32.xlu0 %v2115
        %v2117 = vpop.xlane.xlu0 %2116
        %v2118 = vsel %vm1131, %v2110, 0.0
        %2119 = vadd.xlane.f32.xlu0 %v2118
        %v2120 = vpop.xlane.xlu0 %2119
        %v2121 = vsel %vm1131, %v2111, 0.0
        %2122 = vadd.xlane.f32.xlu0 %v2121
        %v2123 = vpop.xlane.xlu0 %2122
        %vm2124 = vcmp.ge.f32.partialorder %v2114, 5.0
        %vm2125 = vcmp.ge.f32.partialorder %v2117, 5.0
        %vm2126 = vcmp.ge.f32.partialorder %v2120, 5.0
        %vm2127 = vcmp.ge.f32.partialorder %v2123, 5.0
        %v2128 = vsel %vm2124, %v2096, %v2084
        %v2129 = vsel %vm2125, %v2097, %v2085
        %v2130 = vsel %vm2126, %v2098, %v2086
        %v2131 = vsel %vm2127, %v2099, %v2087
        %v2132 = vsel %vm2124, %v2088, %v2096
        %v2133 = vsel %vm2125, %v2089, %v2097
        %v2134 = vsel %vm2126, %v2090, %v2098
        %v2135 = vsel %vm2127, %v2091, %v2099
        %v2136 = vadd.f32 %v2128, %v2132
        %v2137 = vadd.f32 %v2129, %v2133
        %v2138 = vadd.f32 %v2130, %v2134
        %v2139 = vadd.f32 %v2131, %v2135
        %v2140 = vmul.f32 %v2136, 0.5
        %v2141 = vmul.f32 %v2137, 0.5
        %v2142 = vmul.f32 %v2138, 0.5
        %v2143 = vmul.f32 %v2139, 0.5
        %vm2144 = vcmp.gt.f32.partialorder %v1173, %v2140
        %vm2145 = vcmp.gt.f32.partialorder %v1219, %v2141
        %vm2146 = vcmp.gt.f32.partialorder %v1265, %v2142
        %vm2147 = vcmp.gt.f32.partialorder %v1311, %v2143
        %v2148 = vsel %vm2144, 1, 0
        %v2149 = vsel %vm2145, 1, 0
        %v2150 = vsel %vm2146, 1, 0
        %v2151 = vsel %vm2147, 1, 0
        %v2152 = vcvt.s32.f32 %v2148
        %v2153 = vcvt.s32.f32 %v2149
        %v2154 = vcvt.s32.f32 %v2150
        %v2155 = vcvt.s32.f32 %v2151
        %v2156 = vsel %vm1131, %v2152, 0.0
        %2157 = vadd.xlane.f32.xlu0 %v2156
        %v2158 = vpop.xlane.xlu0 %2157
        %v2159 = vsel %vm1131, %v2153, 0.0
        %2160 = vadd.xlane.f32.xlu0 %v2159
        %v2161 = vpop.xlane.xlu0 %2160
        %v2162 = vsel %vm1131, %v2154, 0.0
        %2163 = vadd.xlane.f32.xlu0 %v2162
        %v2164 = vpop.xlane.xlu0 %2163
        %v2165 = vsel %vm1131, %v2155, 0.0
        %2166 = vadd.xlane.f32.xlu0 %v2165
        %v2167 = vpop.xlane.xlu0 %2166
        %vm2168 = vcmp.ge.f32.partialorder %v2158, 5.0
        %vm2169 = vcmp.ge.f32.partialorder %v2161, 5.0
        %vm2170 = vcmp.ge.f32.partialorder %v2164, 5.0
        %vm2171 = vcmp.ge.f32.partialorder %v2167, 5.0
        %v2172 = vsel %vm2168, %v2140, %v2128
        %v2173 = vsel %vm2169, %v2141, %v2129
        %v2174 = vsel %vm2170, %v2142, %v2130
        %v2175 = vsel %vm2171, %v2143, %v2131
        %v2176 = vsel %vm2168, %v2132, %v2140
        %v2177 = vsel %vm2169, %v2133, %v2141
        %v2178 = vsel %vm2170, %v2134, %v2142
        %v2179 = vsel %vm2171, %v2135, %v2143
        %v2180 = vadd.f32 %v2172, %v2176
        %v2181 = vadd.f32 %v2173, %v2177
        %v2182 = vadd.f32 %v2174, %v2178
        %v2183 = vadd.f32 %v2175, %v2179
        %v2184 = vmul.f32 %v2180, 0.5
        %v2185 = vmul.f32 %v2181, 0.5
        %v2186 = vmul.f32 %v2182, 0.5
        %v2187 = vmul.f32 %v2183, 0.5
        %vm2188 = vcmp.gt.f32.partialorder %v1173, %v2184
        %vm2189 = vcmp.gt.f32.partialorder %v1219, %v2185
        %vm2190 = vcmp.gt.f32.partialorder %v1265, %v2186
        %vm2191 = vcmp.gt.f32.partialorder %v1311, %v2187
        %v2192 = vsel %vm2188, 1, 0
        %v2193 = vsel %vm2189, 1, 0
        %v2194 = vsel %vm2190, 1, 0
        %v2195 = vsel %vm2191, 1, 0
        %v2196 = vcvt.s32.f32 %v2192
        %v2197 = vcvt.s32.f32 %v2193
        %v2198 = vcvt.s32.f32 %v2194
        %v2199 = vcvt.s32.f32 %v2195
        %v2200 = vsel %vm1131, %v2196, 0.0
        %2201 = vadd.xlane.f32.xlu0 %v2200
        %v2202 = vpop.xlane.xlu0 %2201
        %v2203 = vsel %vm1131, %v2197, 0.0
        %2204 = vadd.xlane.f32.xlu0 %v2203
        %v2205 = vpop.xlane.xlu0 %2204
        %v2206 = vsel %vm1131, %v2198, 0.0
        %2207 = vadd.xlane.f32.xlu0 %v2206
        %v2208 = vpop.xlane.xlu0 %2207
        %v2209 = vsel %vm1131, %v2199, 0.0
        %2210 = vadd.xlane.f32.xlu0 %v2209
        %v2211 = vpop.xlane.xlu0 %2210
        %vm2212 = vcmp.ge.f32.partialorder %v2202, 5.0
        %vm2213 = vcmp.ge.f32.partialorder %v2205, 5.0
        %vm2214 = vcmp.ge.f32.partialorder %v2208, 5.0
        %vm2215 = vcmp.ge.f32.partialorder %v2211, 5.0
        %v2216 = vsel %vm2212, %v2184, %v2172
        %v2217 = vsel %vm2213, %v2185, %v2173
        %v2218 = vsel %vm2214, %v2186, %v2174
        %v2219 = vsel %vm2215, %v2187, %v2175
        %v2220 = vsel %vm2212, %v2176, %v2184
        %v2221 = vsel %vm2213, %v2177, %v2185
        %v2222 = vsel %vm2214, %v2178, %v2186
        %v2223 = vsel %vm2215, %v2179, %v2187
        %v2224 = vadd.f32 %v2216, %v2220
        %v2225 = vadd.f32 %v2217, %v2221
        %v2226 = vadd.f32 %v2218, %v2222
        %v2227 = vadd.f32 %v2219, %v2223
        %v2228 = vmul.f32 %v2224, 0.5
        %v2229 = vmul.f32 %v2225, 0.5
        %v2230 = vmul.f32 %v2226, 0.5
        %v2231 = vmul.f32 %v2227, 0.5
        %vm2232 = vcmp.gt.f32.partialorder %v1173, %v2228
        %vm2233 = vcmp.gt.f32.partialorder %v1219, %v2229
        %vm2234 = vcmp.gt.f32.partialorder %v1265, %v2230
        %vm2235 = vcmp.gt.f32.partialorder %v1311, %v2231
        %v2236 = vsel %vm2232, 1, 0
        %v2237 = vsel %vm2233, 1, 0
        %v2238 = vsel %vm2234, 1, 0
        %v2239 = vsel %vm2235, 1, 0
        %v2240 = vcvt.s32.f32 %v2236
        %v2241 = vcvt.s32.f32 %v2237
        %v2242 = vcvt.s32.f32 %v2238
        %v2243 = vcvt.s32.f32 %v2239
        %v2244 = vsel %vm1131, %v2240, 0.0
        %2245 = vadd.xlane.f32.xlu0 %v2244
        %v2246 = vpop.xlane.xlu0 %2245
        %v2247 = vsel %vm1131, %v2241, 0.0
        %2248 = vadd.xlane.f32.xlu0 %v2247
        %v2249 = vpop.xlane.xlu0 %2248
        %v2250 = vsel %vm1131, %v2242, 0.0
        %2251 = vadd.xlane.f32.xlu0 %v2250
        %v2252 = vpop.xlane.xlu0 %2251
        %v2253 = vsel %vm1131, %v2243, 0.0
        %2254 = vadd.xlane.f32.xlu0 %v2253
        %v2255 = vpop.xlane.xlu0 %2254
        %vm2256 = vcmp.ge.f32.partialorder %v2246, 5.0
        %vm2257 = vcmp.ge.f32.partialorder %v2249, 5.0
        %vm2258 = vcmp.ge.f32.partialorder %v2252, 5.0
        %vm2259 = vcmp.ge.f32.partialorder %v2255, 5.0
        %v2260 = vsel %vm2256, %v2228, %v2216
        %v2261 = vsel %vm2257, %v2229, %v2217
        %v2262 = vsel %vm2258, %v2230, %v2218
        %v2263 = vsel %vm2259, %v2231, %v2219
        %v2264 = vsel %vm2256, %v2220, %v2228
        %v2265 = vsel %vm2257, %v2221, %v2229
        %v2266 = vsel %vm2258, %v2222, %v2230
        %v2267 = vsel %vm2259, %v2223, %v2231
        %v2268 = vadd.f32 %v2260, %v2264
        %v2269 = vadd.f32 %v2261, %v2265
        %v2270 = vadd.f32 %v2262, %v2266
        %v2271 = vadd.f32 %v2263, %v2267
        %v2272 = vmul.f32 %v2268, 0.5
        %v2273 = vmul.f32 %v2269, 0.5
        %v2274 = vmul.f32 %v2270, 0.5
        %v2275 = vmul.f32 %v2271, 0.5
        %vm2276 = vcmp.gt.f32.partialorder %v1173, %v2272
        %vm2277 = vcmp.gt.f32.partialorder %v1219, %v2273
        %vm2278 = vcmp.gt.f32.partialorder %v1265, %v2274
        %vm2279 = vcmp.gt.f32.partialorder %v1311, %v2275
        %v2280 = vsel %vm2276, 1, 0
        %v2281 = vsel %vm2277, 1, 0
        %v2282 = vsel %vm2278, 1, 0
        %v2283 = vsel %vm2279, 1, 0
        %v2284 = vcvt.s32.f32 %v2280
        %v2285 = vcvt.s32.f32 %v2281
        %v2286 = vcvt.s32.f32 %v2282
        %v2287 = vcvt.s32.f32 %v2283
        %v2288 = vsel %vm1131, %v2284, 0.0
        %2289 = vadd.xlane.f32.xlu0 %v2288
        %v2290 = vpop.xlane.xlu0 %2289
        %v2291 = vsel %vm1131, %v2285, 0.0
        %2292 = vadd.xlane.f32.xlu0 %v2291
        %v2293 = vpop.xlane.xlu0 %2292
        %v2294 = vsel %vm1131, %v2286, 0.0
        %2295 = vadd.xlane.f32.xlu0 %v2294
        %v2296 = vpop.xlane.xlu0 %2295
        %v2297 = vsel %vm1131, %v2287, 0.0
        %2298 = vadd.xlane.f32.xlu0 %v2297
        %v2299 = vpop.xlane.xlu0 %2298
        %vm2300 = vcmp.ge.f32.partialorder %v2290, 5.0
        %vm2301 = vcmp.ge.f32.partialorder %v2293, 5.0
        %vm2302 = vcmp.ge.f32.partialorder %v2296, 5.0
        %vm2303 = vcmp.ge.f32.partialorder %v2299, 5.0
        %v2304 = vsel %vm2300, %v2272, %v2260
        %v2305 = vsel %vm2301, %v2273, %v2261
        %v2306 = vsel %vm2302, %v2274, %v2262
        %v2307 = vsel %vm2303, %v2275, %v2263
        %v2308 = vsel %vm2300, %v2264, %v2272
        %v2309 = vsel %vm2301, %v2265, %v2273
        %v2310 = vsel %vm2302, %v2266, %v2274
        %v2311 = vsel %vm2303, %v2267, %v2275
        %v2312 = vadd.f32 %v2304, %v2308
        %v2313 = vadd.f32 %v2305, %v2309
        %v2314 = vadd.f32 %v2306, %v2310
        %v2315 = vadd.f32 %v2307, %v2311
        %v2316 = vmul.f32 %v2312, 0.5
        %v2317 = vmul.f32 %v2313, 0.5
        %v2318 = vmul.f32 %v2314, 0.5
        %v2319 = vmul.f32 %v2315, 0.5
        %vm2320 = vcmp.gt.f32.partialorder %v1173, %v2316
        %vm2321 = vcmp.gt.f32.partialorder %v1219, %v2317
        %vm2322 = vcmp.gt.f32.partialorder %v1265, %v2318
        %vm2323 = vcmp.gt.f32.partialorder %v1311, %v2319
        %v2324 = vsel %vm2320, 1, 0
        %v2325 = vsel %vm2321, 1, 0
        %v2326 = vsel %vm2322, 1, 0
        %v2327 = vsel %vm2323, 1, 0
        %v2328 = vcvt.s32.f32 %v2324
        %v2329 = vcvt.s32.f32 %v2325
        %v2330 = vcvt.s32.f32 %v2326
        %v2331 = vcvt.s32.f32 %v2327
        %v2332 = vsel %vm1131, %v2328, 0.0
        %2333 = vadd.xlane.f32.xlu0 %v2332
        %v2334 = vpop.xlane.xlu0 %2333
        %v2335 = vsel %vm1131, %v2329, 0.0
        %2336 = vadd.xlane.f32.xlu0 %v2335
        %v2337 = vpop.xlane.xlu0 %2336
        %v2338 = vsel %vm1131, %v2330, 0.0
        %2339 = vadd.xlane.f32.xlu0 %v2338
        %v2340 = vpop.xlane.xlu0 %2339
        %v2341 = vsel %vm1131, %v2331, 0.0
        %2342 = vadd.xlane.f32.xlu0 %v2341
        %v2343 = vpop.xlane.xlu0 %2342
        %vm2344 = vcmp.ge.f32.partialorder %v2334, 5.0
        %vm2345 = vcmp.ge.f32.partialorder %v2337, 5.0
        %vm2346 = vcmp.ge.f32.partialorder %v2340, 5.0
        %vm2347 = vcmp.ge.f32.partialorder %v2343, 5.0
        %v2348 = vsel %vm2344, %v2316, %v2304
        %v2349 = vsel %vm2345, %v2317, %v2305
        %v2350 = vsel %vm2346, %v2318, %v2306
        %v2351 = vsel %vm2347, %v2319, %v2307
        %v2352 = vsel %vm2344, %v2308, %v2316
        %v2353 = vsel %vm2345, %v2309, %v2317
        %v2354 = vsel %vm2346, %v2310, %v2318
        %v2355 = vsel %vm2347, %v2311, %v2319
        %v2356 = vadd.f32 %v2348, %v2352
        %v2357 = vadd.f32 %v2349, %v2353
        %v2358 = vadd.f32 %v2350, %v2354
        %v2359 = vadd.f32 %v2351, %v2355
        %v2360 = vmul.f32 %v2356, 0.5
        %v2361 = vmul.f32 %v2357, 0.5
        %v2362 = vmul.f32 %v2358, 0.5
        %v2363 = vmul.f32 %v2359, 0.5
        %vm2364 = vcmp.gt.f32.partialorder %v1173, %v2360
        %vm2365 = vcmp.gt.f32.partialorder %v1219, %v2361
        %vm2366 = vcmp.gt.f32.partialorder %v1265, %v2362
        %vm2367 = vcmp.gt.f32.partialorder %v1311, %v2363
        %v2368 = vsel %vm2364, 1, 0
        %v2369 = vsel %vm2365, 1, 0
        %v2370 = vsel %vm2366, 1, 0
        %v2371 = vsel %vm2367, 1, 0
        %v2372 = vcvt.s32.f32 %v2368
        %v2373 = vcvt.s32.f32 %v2369
        %v2374 = vcvt.s32.f32 %v2370
        %v2375 = vcvt.s32.f32 %v2371
        %v2376 = vsel %vm1131, %v2372, 0.0
        %2377 = vadd.xlane.f32.xlu0 %v2376
        %v2378 = vpop.xlane.xlu0 %2377
        %v2379 = vsel %vm1131, %v2373, 0.0
        %2380 = vadd.xlane.f32.xlu0 %v2379
        %v2381 = vpop.xlane.xlu0 %2380
        %v2382 = vsel %vm1131, %v2374, 0.0
        %2383 = vadd.xlane.f32.xlu0 %v2382
        %v2384 = vpop.xlane.xlu0 %2383
        %v2385 = vsel %vm1131, %v2375, 0.0
        %2386 = vadd.xlane.f32.xlu0 %v2385
        %v2387 = vpop.xlane.xlu0 %2386
        %vm2388 = vcmp.ge.f32.partialorder %v2378, 5.0
        %vm2389 = vcmp.ge.f32.partialorder %v2381, 5.0
        %vm2390 = vcmp.ge.f32.partialorder %v2384, 5.0
        %vm2391 = vcmp.ge.f32.partialorder %v2387, 5.0
        %v2392 = vsel %vm2388, %v2360, %v2348
        %v2393 = vsel %vm2389, %v2361, %v2349
        %v2394 = vsel %vm2390, %v2362, %v2350
        %v2395 = vsel %vm2391, %v2363, %v2351
        %vm2396 = vcmp.gt.f32.partialorder %v1173, %v2392
        %vm2397 = vcmp.gt.f32.partialorder %v1219, %v2393
        %vm2398 = vcmp.gt.f32.partialorder %v1265, %v2394
        %vm2399 = vcmp.gt.f32.partialorder %v1311, %v2395
        %v2400 = vsub.f32 %v1173, %v1318
        %v2401 = vsub.f32 %v1219, %v1321
        %v2402 = vsub.f32 %v1265, %v1324
        %v2403 = vsub.f32 %v1311, %v1327
        %v2404 = vmul.f32 %v2400, 1.442695
        %v2405 = vpow.pop %v2404
        %v2406 = vmul.f32 %v2401, 1.442695
        %v2407 = vpow.pop %v2406
        %v2408 = vmul.f32 %v2402, 1.442695
        %v2409 = vpow.pop %v2408
        %v2410 = vmul.f32 %v2403, 1.442695
        %v2411 = vpow.pop %v2410
        %v2412 = vsel %vm2396, %v2405, 0.0
        %v2413 = vsel %vm2397, %v2407, 0.0
        %v2414 = vsel %vm2398, %v2409, 0.0
        %v2415 = vsel %vm2399, %v2411, 0.0
        %v2416 = vsel %vm1131, %v2412, 0.0
        %2417 = vadd.xlane.f32.xlu0 %v2416
        %v2418 = vpop.xlane.xlu0 %2417
        %v2419 = vsel %vm1131, %v2413, 0.0
        %2420 = vadd.xlane.f32.xlu0 %v2419
        %v2421 = vpop.xlane.xlu0 %2420
        %v2422 = vsel %vm1131, %v2414, 0.0
        %2423 = vadd.xlane.f32.xlu0 %v2422
        %v2424 = vpop.xlane.xlu0 %2423
        %v2425 = vsel %vm1131, %v2415, 0.0
        %2426 = vadd.xlane.f32.xlu0 %v2425
        %v2427 = vpop.xlane.xlu0 %2426
        %v2428 = vpack.c.bf16 %v2412, %v2412
        %v2429 = vpack.c.bf16 %v2413, %v2413
        %v2430 = vpack.c.bf16 %v2414, %v2414
        %v2431 = vpack.c.bf16 %v2415, %v2415
        %v2433 = vsel %vm1131, %v2428, 0
        %vm2435 = vcmask 1043456
        %v2437 = vsel %vm2435, %v1121, 0
        %2439 = vmatprep.subr.bf16.mxu0 0
        %2440 = vmatpush1.bf16.msra.mxu0 0
        %2441 = vmatprep.subr.bf16.mxu0 0
        %2442 = vmatpush1.bf16.msra.mxu0 0
        %2443 = vmatprep.subr.bf16.mxu0 0
        %2444 = vmatpush1.bf16.msra.mxu0 0
        %2445 = vmatprep.subr.bf16.mxu0 0
        %2446 = vmatpush1.bf16.msra.mxu0 0
        %2447 = vmatprep.subr.bf16.mxu0 0
        %2448 = vmatpush1.bf16.msra.mxu0 0
        %2449 = vmatprep.subr.bf16.mxu0 0
        %2450 = vmatpush1.bf16.msra.mxu0 0
        %2451 = vmatprep.subr.bf16.mxu0 0
        %2452 = vmatpush1.bf16.msra.mxu0 0
        %2453 = vmatprep.subr.bf16.mxu0 0
        %2454 = vmatpush1.bf16.msra.mxu0 %v2437
        %2455 = vmatprep.subr.bf16.mxu0 0
        %2456 = vmatpush2.bf16.msra.mxu0 0
        %2457 = vmatprep.subr.bf16.mxu0 0
        %2458 = vmatpush2.bf16.msra.mxu0 0
        %2459 = vmatprep.subr.bf16.mxu0 0
        %2460 = vmatpush2.bf16.msra.mxu0 0
        %2461 = vmatprep.subr.bf16.mxu0 0
        %2462 = vmatpush2.bf16.msra.mxu0 0
        %2463 = vmatprep.subr.bf16.mxu0 0
        %2464 = vmatpush2.bf16.msra.mxu0 0
        %2465 = vmatprep.subr.bf16.mxu0 0
        %2466 = vmatpush2.bf16.msra.mxu0 0
        %2467 = vmatprep.subr.bf16.mxu0 0
        %2468 = vmatpush2.bf16.msra.mxu0 0
        %2469 = vmatprep.subr.bf16.mxu0 0
        %2470 = vmatpush2.bf16.msra.mxu0 0
        %2471 = vmatprep.mubr.bf16.mxu0 0
        %2472 = vmatmul.mubr.bf16.gmra.mxu0 %v2433
        %v2473 = vpop.f32.mrf.mxu0
        %v2474 = vadd.f32 0.0, %v2473
        %v2475 = vpop.f32.mrf.mxu0
        %v2476 = vpop.f32.mrf.mxu0
        %v2477 = vpop.f32.mrf.mxu0
        %2478 = vdwg.mxu0
        %v2480 = vsel %vm1131, %v2429, 0
        %v2483 = vsel %vm2435, %v1124, 0
        %2485 = vmatprep.subr.bf16.mxu0 0
        %2486 = vmatpush1.bf16.msra.mxu0 0
        %2487 = vmatprep.subr.bf16.mxu0 0
        %2488 = vmatpush1.bf16.msra.mxu0 0
        %2489 = vmatprep.subr.bf16.mxu0 0
        %2490 = vmatpush1.bf16.msra.mxu0 0
        %2491 = vmatprep.subr.bf16.mxu0 0
        %2492 = vmatpush1.bf16.msra.mxu0 0
        %2493 = vmatprep.subr.bf16.mxu0 0
        %2494 = vmatpush1.bf16.msra.mxu0 0
        %2495 = vmatprep.subr.bf16.mxu0 0
        %2496 = vmatpush1.bf16.msra.mxu0 0
        %2497 = vmatprep.subr.bf16.mxu0 0
        %2498 = vmatpush1.bf16.msra.mxu0 0
        %2499 = vmatprep.subr.bf16.mxu0 0
        %2500 = vmatpush1.bf16.msra.mxu0 %v2483
        %2501 = vmatprep.subr.bf16.mxu0 0
        %2502 = vmatpush2.bf16.msra.mxu0 0
        %2503 = vmatprep.subr.bf16.mxu0 0
        %2504 = vmatpush2.bf16.msra.mxu0 0
        %2505 = vmatprep.subr.bf16.mxu0 0
        %2506 = vmatpush2.bf16.msra.mxu0 0
        %2507 = vmatprep.subr.bf16.mxu0 0
        %2508 = vmatpush2.bf16.msra.mxu0 0
        %2509 = vmatprep.subr.bf16.mxu0 0
        %2510 = vmatpush2.bf16.msra.mxu0 0
        %2511 = vmatprep.subr.bf16.mxu0 0
        %2512 = vmatpush2.bf16.msra.mxu0 0
        %2513 = vmatprep.subr.bf16.mxu0 0
        %2514 = vmatpush2.bf16.msra.mxu0 0
        %2515 = vmatprep.subr.bf16.mxu0 0
        %2516 = vmatpush2.bf16.msra.mxu0 0
        %2517 = vmatprep.mubr.bf16.mxu0 0
        %2518 = vmatmul.mubr.bf16.gmra.mxu0 %v2480
        %v2519 = vpop.f32.mrf.mxu0
        %v2520 = vadd.f32 0.0, %v2519
        %v2521 = vpop.f32.mrf.mxu0
        %v2522 = vpop.f32.mrf.mxu0
        %v2523 = vpop.f32.mrf.mxu0
        %2524 = vdwg.mxu0
        %v2526 = vsel %vm1131, %v2430, 0
        %v2529 = vsel %vm2435, %v1127, 0
        %2531 = vmatprep.subr.bf16.mxu0 0
        %2532 = vmatpush1.bf16.msra.mxu0 0
        %2533 = vmatprep.subr.bf16.mxu0 0
        %2534 = vmatpush1.bf16.msra.mxu0 0
        %2535 = vmatprep.subr.bf16.mxu0 0
        %2536 = vmatpush1.bf16.msra.mxu0 0
        %2537 = vmatprep.subr.bf16.mxu0 0
        %2538 = vmatpush1.bf16.msra.mxu0 0
        %2539 = vmatprep.subr.bf16.mxu0 0
        %2540 = vmatpush1.bf16.msra.mxu0 0
        %2541 = vmatprep.subr.bf16.mxu0 0
        %2542 = vmatpush1.bf16.msra.mxu0 0
        %2543 = vmatprep.subr.bf16.mxu0 0
        %2544 = vmatpush1.bf16.msra.mxu0 0
        %2545 = vmatprep.subr.bf16.mxu0 0
        %2546 = vmatpush1.bf16.msra.mxu0 %v2529
        %2547 = vmatprep.subr.bf16.mxu0 0
        %2548 = vmatpush2.bf16.msra.mxu0 0
        %2549 = vmatprep.subr.bf16.mxu0 0
        %2550 = vmatpush2.bf16.msra.mxu0 0
        %2551 = vmatprep.subr.bf16.mxu0 0
        %2552 = vmatpush2.bf16.msra.mxu0 0
        %2553 = vmatprep.subr.bf16.mxu0 0
        %2554 = vmatpush2.bf16.msra.mxu0 0
        %2555 = vmatprep.subr.bf16.mxu0 0
        %2556 = vmatpush2.bf16.msra.mxu0 0
        %2557 = vmatprep.subr.bf16.mxu0 0
        %2558 = vmatpush2.bf16.msra.mxu0 0
        %2559 = vmatprep.subr.bf16.mxu0 0
        %2560 = vmatpush2.bf16.msra.mxu0 0
        %2561 = vmatprep.subr.bf16.mxu0 0
        %2562 = vmatpush2.bf16.msra.mxu0 0
        %2563 = vmatprep.mubr.bf16.mxu0 0
        %2564 = vmatmul.mubr.bf16.gmra.mxu0 %v2526
        %v2565 = vpop.f32.mrf.mxu0
        %v2566 = vadd.f32 0.0, %v2565
        %v2567 = vpop.f32.mrf.mxu0
        %v2568 = vpop.f32.mrf.mxu0
        %v2569 = vpop.f32.mrf.mxu0
        %2570 = vdwg.mxu0
        %v2572 = vsel %vm1131, %v2431, 0
        %v2575 = vsel %vm2435, %v1130, 0
        %2577 = vmatprep.subr.bf16.mxu0 0
        %2578 = vmatpush1.bf16.msra.mxu0 0
        %2579 = vmatprep.subr.bf16.mxu0 0
        %2580 = vmatpush1.bf16.msra.mxu0 0
        %2581 = vmatprep.subr.bf16.mxu0 0
        %2582 = vmatpush1.bf16.msra.mxu0 0
        %2583 = vmatprep.subr.bf16.mxu0 0
        %2584 = vmatpush1.bf16.msra.mxu0 0
        %2585 = vmatprep.subr.bf16.mxu0 0
        %2586 = vmatpush1.bf16.msra.mxu0 0
        %2587 = vmatprep.subr.bf16.mxu0 0
        %2588 = vmatpush1.bf16.msra.mxu0 0
        %2589 = vmatprep.subr.bf16.mxu0 0
        %2590 = vmatpush1.bf16.msra.mxu0 0
        %2591 = vmatprep.subr.bf16.mxu0 0
        %2592 = vmatpush1.bf16.msra.mxu0 %v2575
        %2593 = vmatprep.subr.bf16.mxu0 0
        %2594 = vmatpush2.bf16.msra.mxu0 0
        %2595 = vmatprep.subr.bf16.mxu0 0
        %2596 = vmatpush2.bf16.msra.mxu0 0
        %2597 = vmatprep.subr.bf16.mxu0 0
        %2598 = vmatpush2.bf16.msra.mxu0 0
        %2599 = vmatprep.subr.bf16.mxu0 0
        %2600 = vmatpush2.bf16.msra.mxu0 0
        %2601 = vmatprep.subr.bf16.mxu0 0
        %2602 = vmatpush2.bf16.msra.mxu0 0
        %2603 = vmatprep.subr.bf16.mxu0 0
        %2604 = vmatpush2.bf16.msra.mxu0 0
        %2605 = vmatprep.subr.bf16.mxu0 0
        %2606 = vmatpush2.bf16.msra.mxu0 0
        %2607 = vmatprep.subr.bf16.mxu0 0
        %2608 = vmatpush2.bf16.msra.mxu0 0
        %2609 = vmatprep.mubr.bf16.mxu0 0
        %2610 = vmatmul.mubr.bf16.gmra.mxu0 %v2572
        %v2611 = vpop.f32.mrf.mxu0
        %v2612 = vadd.f32 0.0, %v2611
        %v2613 = vpop.f32.mrf.mxu0
        %v2614 = vpop.f32.mrf.mxu0
        %v2615 = vpop.f32.mrf.mxu0
        %2616 = vdwg.mxu0
        %v2617 = vrcp.pop %v2418
        %v2618 = vrcp.pop %v2421
        %v2619 = vrcp.pop %v2424
        %v2620 = vrcp.pop %v2427
        %v2621 = vmul.f32 %v2474, %v2617
        %v2622 = vmul.f32 %v2520, %v2618
        %v2623 = vmul.f32 %v2566, %v2619
        %v2624 = vmul.f32 %v2612, %v2620
        %v2625 = vcombine.low %v2621, %v2623
        %v2626 = vcombine.high %v2621, %v2623
        %v2628 = vunpack.c.l.s4 1983009808
        %v2629 = vunpack.c.0.s8 %v2628
        %v2630 = vlaneseq
        %v2631 = vshrl.u32 %v2630, 7
        %v2632 = vsub.s32 %v2629, %v2631
        %v2633 = vrot.slane %v2625, %v2632
        %v2635 = vunpack.c.l.s4 1983009808
        %v2636 = vunpack.c.0.s8 %v2635
        %v2637 = vlaneseq
        %v2638 = vshrl.u32 %v2637, 7
        %v2639 = vsub.s32 %v2636, %v2638
        %v2640 = vrot.slane %v2626, %v2639
        %v2641 = vcombine.low %v2622, %v2624
        %v2642 = vcombine.high %v2622, %v2624
        %v2644 = vunpack.c.l.s4 1983009808
        %v2645 = vunpack.c.0.s8 %v2644
        %v2646 = vlaneseq
        %v2647 = vshrl.u32 %v2646, 7
        %v2648 = vsub.s32 %v2645, %v2647
        %v2649 = vrot.slane %v2641, %v2648
        %v2651 = vunpack.c.l.s4 1983009808
        %v2652 = vunpack.c.0.s8 %v2651
        %v2653 = vlaneseq
        %v2654 = vshrl.u32 %v2653, 7
        %v2655 = vsub.s32 %v2652, %v2654
        %v2656 = vrot.slane %v2642, %v2655
        %v2657 = vcombine.low %v2633, %v2649
        %v2658 = vcombine.high %v2633, %v2649
        %v2660 = vunpack.c.l.s4 1934713408
        %v2661 = vunpack.c.0.s8 %v2660
        %v2662 = vlaneseq
        %v2663 = vshrl.u32 %v2662, 7
        %v2664 = vsub.s32 %v2661, %v2663
        %v2665 = vrot.slane %v2657, %v2664
        %v2667 = vunpack.c.l.s4 1934713408
        %v2668 = vunpack.c.0.s8 %v2667
        %v2669 = vlaneseq
        %v2670 = vshrl.u32 %v2669, 7
        %v2671 = vsub.s32 %v2668, %v2670
        %v2672 = vrot.slane %v2658, %v2671
        %v2673 = vcombine.low %v2640, %v2656
        %v2674 = vcombine.high %v2640, %v2656
        %v2676 = vunpack.c.l.s4 1934713408
        %v2677 = vunpack.c.0.s8 %v2676
        %v2678 = vlaneseq
        %v2679 = vshrl.u32 %v2678, 7
        %v2680 = vsub.s32 %v2677, %v2679
        %v2681 = vrot.slane %v2673, %v2680
        %v2683 = vunpack.c.l.s4 1934713408
        %v2684 = vunpack.c.0.s8 %v2683
        %v2685 = vlaneseq
        %v2686 = vshrl.u32 %v2685, 7
        %v2687 = vsub.s32 %v2684, %v2686
        %v2688 = vrot.slane %v2674, %v2687
        %v2689 = vcombine.high %v2665, 0.0
        %v2690 = vcombine.high %v2672, 0.0
        %v2691 = vcombine.high %v2681, 0.0
        %v2692 = vcombine.high %v2688, 0.0
        %v2693 = vcombine.low %v2665, %v2672
        %v2695 = vunpack.c.l.s4 1983009808
        %v2696 = vunpack.c.0.s8 %v2695
        %v2697 = vlaneseq
        %v2698 = vshrl.u32 %v2697, 7
        %v2699 = vsub.s32 %v2696, %v2698
        %v2700 = vrot.slane %v2693, %v2699
        %v2701 = vcombine.low %v2689, %v2690
        %v2703 = vunpack.c.l.s4 1983009808
        %v2704 = vunpack.c.0.s8 %v2703
        %v2705 = vlaneseq
        %v2706 = vshrl.u32 %v2705, 7
        %v2707 = vsub.s32 %v2704, %v2706
        %v2708 = vrot.slane %v2701, %v2707
        %v2709 = vcombine.low %v2681, %v2688
        %v2711 = vunpack.c.l.s4 1983009808
        %v2712 = vunpack.c.0.s8 %v2711
        %v2713 = vlaneseq
        %v2714 = vshrl.u32 %v2713, 7
        %v2715 = vsub.s32 %v2712, %v2714
        %v2716 = vrot.slane %v2709, %v2715
        %v2717 = vcombine.low %v2691, %v2692
        %v2719 = vunpack.c.l.s4 1983009808
        %v2720 = vunpack.c.0.s8 %v2719
        %v2721 = vlaneseq
        %v2722 = vshrl.u32 %v2721, 7
        %v2723 = vsub.s32 %v2720, %v2722
        %v2724 = vrot.slane %v2717, %v2723
        %v2725 = vcombine.low %v2700, %v2708
        %v2726 = vcombine.high %v2700, %v2708
        %v2728 = vunpack.c.l.s4 1934713408
        %v2729 = vunpack.c.0.s8 %v2728
        %v2730 = vlaneseq
        %v2731 = vshrl.u32 %v2730, 7
        %v2732 = vsub.s32 %v2729, %v2731
        %v2733 = vrot.slane %v2725, %v2732
        %v2735 = vunpack.c.l.s4 1934713408
        %v2736 = vunpack.c.0.s8 %v2735
        %v2737 = vlaneseq
        %v2738 = vshrl.u32 %v2737, 7
        %v2739 = vsub.s32 %v2736, %v2738
        %v2740 = vrot.slane %v2726, %v2739
        %v2741 = vcombine.low %v2716, %v2724
        %v2742 = vcombine.high %v2716, %v2724
        %v2744 = vunpack.c.l.s4 1934713408
        %v2745 = vunpack.c.0.s8 %v2744
        %v2746 = vlaneseq
        %v2747 = vshrl.u32 %v2746, 7
        %v2748 = vsub.s32 %v2745, %v2747
        %v2749 = vrot.slane %v2741, %v2748
        %v2751 = vunpack.c.l.s4 1934713408
        %v2752 = vunpack.c.0.s8 %v2751
        %v2753 = vlaneseq
        %v2754 = vshrl.u32 %v2753, 7
        %v2755 = vsub.s32 %v2752, %v2754
        %v2756 = vrot.slane %v2742, %v2755
        %v2757 = vcombine.low %v2733, %v2749
        %v2758 = vcombine.high %v2733, %v2749
        %v2759 = vcombine.low %v2740, %v2756
        %v2760 = vcombine.high %v2740, %v2756
        %2762 = vrot.lane.b32.xlu0 %v2758, 8
        %v2763 = vpop.permute.xlu0 %2762
        %2766 = vrot.lane.b32.xlu0 %v2759, 16
        %v2767 = vpop.permute.xlu0 %2766
        %2770 = vrot.lane.b32.xlu0 %v2760, 24
        %v2771 = vpop.permute.xlu0 %2770
        %v2773 = vsel %vm1131, %v2757, %v2763
        %vm2774 = vcmask 130048
        %v2775 = vsel %vm2774, %v2773, %v2767
        %vm2776 = vcmask 195584
        %v2777 = vsel %vm2776, %v2775, %v2771
        %v2778 = vpack.c.bf16 %v2777, %v2777
        %v2779 = vld [vmem:[%s652] sm:$0xf]
        %v2780 = vld [vmem:[%s652 + $0x4] sm:$0xf]
        %v2781 = vld [vmem:[%s652 + $0x8] sm:$0xf]
        %v2782 = vld [vmem:[%s652 + $0xc] sm:$0xf]
        %v2783 = vld [vmem:[%s655] sm:$0x1]
        %v2785 = vlaneseq
        %v2786 = vshrl.u32 %v2785, 7
        %v2787 = vsub.s32 0, %v2786
        %v2788 = vrot.slane %v2783, %v2787
        %v2794 = vunpack.c.l.b16 %v2779
        %v2795 = vunpack.c.l.b16 %v2780
        %v2796 = vunpack.c.l.b16 %v2781
        %v2797 = vunpack.c.l.b16 %v2782
        %v2798 = vpack.c.b16 %v2795, %v2794
        %v2799 = vpack.c.b16 %v2797, %v2796
        %v2803 = vsel %vm689, %v2778, 0
        %2805 = vmatprep.subr.bf16.mxu0 0
        %2806 = vmatpush1.bf16.msra.mxu0 0
        %2807 = vmatprep.subr.bf16.mxu0 0
        %2808 = vmatpush1.bf16.msra.mxu0 0
        %2809 = vmatprep.subr.bf16.mxu0 0
        %2810 = vmatpush1.bf16.msra.mxu0 0
        %2811 = vmatprep.subr.bf16.mxu0 0
        %2812 = vmatpush1.bf16.msra.mxu0 0
        %2813 = vmatprep.subr.bf16.mxu0 0
        %2814 = vmatpush1.bf16.msra.mxu0 0
        %2815 = vmatprep.subr.bf16.mxu0 0
        %2816 = vmatpush1.bf16.msra.mxu0 0
        %2817 = vmatprep.subr.bf16.mxu0 0
        %2818 = vmatpush1.bf16.msra.mxu0 %v2799
        %2819 = vmatprep.subr.bf16.mxu0 0
        %2820 = vmatpush1.bf16.msra.mxu0 %v2798
        %2821 = vmatprep.subr.bf16.mxu0 0
        %2822 = vmatpush2.bf16.msra.mxu0 0
        %2823 = vmatprep.subr.bf16.mxu0 0
        %2824 = vmatpush2.bf16.msra.mxu0 0
        %2825 = vmatprep.subr.bf16.mxu0 0
        %2826 = vmatpush2.bf16.msra.mxu0 0
        %2827 = vmatprep.subr.bf16.mxu0 0
        %2828 = vmatpush2.bf16.msra.mxu0 0
        %2829 = vmatprep.subr.bf16.mxu0 0
        %2830 = vmatpush2.bf16.msra.mxu0 0
        %2831 = vmatprep.subr.bf16.mxu0 0
        %2832 = vmatpush2.bf16.msra.mxu0 0
        %2833 = vmatprep.subr.bf16.mxu0 0
        %2834 = vmatpush2.bf16.msra.mxu0 0
        %2835 = vmatprep.subr.bf16.mxu0 0
        %2836 = vmatpush2.bf16.msra.mxu0 0
        %2837 = vmatprep.mubr.bf16.mxu0 0
        %2838 = vmatmul.mubr.bf16.gmra.mxu0 %v2803
        %v2839 = vpop.f32.mrf.mxu0
        %v2840 = vadd.f32 %v2788, %v2839
        %v2841 = vpop.f32.mrf.mxu0
        %v2842 = vpop.f32.mrf.mxu0
        %v2843 = vpop.f32.mrf.mxu0
        %2844 = vdwg.mxu0
        %v2845 = vadd.f32 %v686, %v2840
        %v2846 = vld [vmem:[%s658] sm:$0x1]
        %v2847 = vld [vmem:[%s661] sm:$0x1]
        %v2848 = vsel %vm689, %v2845, 0.0
        %2849 = vadd.xlane.f32.xlu0 %v2848
        %v2850 = vpop.xlane.xlu0 %2849
        %v2851 = vmul.f32 %v2850, %v693
        %v2852 = vsub.f32 %v2845, %v2851
        %v2853 = vmul.f32 %v2852, %v2852
        %v2854 = vsel %vm689, %v2853, 0.0
        %2855 = vadd.xlane.f32.xlu0 %v2854
        %v2856 = vpop.xlane.xlu0 %2855
        %v2857 = vmul.f32 %v2856, %v693
        %v2858 = vadd.f32 %v2857, 1e-05
        %v2859 = vrsqrt.pop %v2858
        %v2860 = vmul.f32 %v2852, %v2859
        %v2862 = vlaneseq
        %v2863 = vshrl.u32 %v2862, 7
        %v2864 = vsub.s32 0, %v2863
        %v2865 = vrot.slane %v2846, %v2864
        %v2867 = vmul.f32 %v2860, %v2865
        %v2869 = vlaneseq
        %v2870 = vshrl.u32 %v2869, 7
        %v2871 = vsub.s32 0, %v2870
        %v2872 = vrot.slane %v2847, %v2871
        %v2874 = vadd.f32 %v2867, %v2872
        %v2875 = vpack.c.bf16 %v2874, %v2874
        %v2876 = vld [vmem:[%s666] sm:$0xf]
        %v2877 = vld [vmem:[%s666 + $0x4] sm:$0xf]
        %v2878 = vld [vmem:[%s666 + $0x8] sm:$0xf]
        %v2879 = vld [vmem:[%s666 + $0xc] sm:$0xf]
        %v2880 = vld [vmem:[%s669] sm:$0x1]
        %v2882 = vlaneseq
        %v2883 = vshrl.u32 %v2882, 7
        %v2884 = vsub.s32 0, %v2883
        %v2885 = vrot.slane %v2880, %v2884
        %v2891 = vunpack.c.l.b16 %v2876
        %v2892 = vunpack.c.l.b16 %v2877
        %v2893 = vunpack.c.l.b16 %v2878
        %v2894 = vunpack.c.l.b16 %v2879
        %v2895 = vpack.c.b16 %v2892, %v2891
        %v2896 = vpack.c.b16 %v2894, %v2893
        %v2900 = vsel %vm689, %v2875, 0
        %2902 = vmatprep.subr.bf16.mxu0 0
        %2903 = vmatpush1.bf16.msra.mxu0 0
        %2904 = vmatprep.subr.bf16.mxu0 0
        %2905 = vmatpush1.bf16.msra.mxu0 0
        %2906 = vmatprep.subr.bf16.mxu0 0
        %2907 = vmatpush1.bf16.msra.mxu0 0
        %2908 = vmatprep.subr.bf16.mxu0 0
        %2909 = vmatpush1.bf16.msra.mxu0 0
        %2910 = vmatprep.subr.bf16.mxu0 0
        %2911 = vmatpush1.bf16.msra.mxu0 0
        %2912 = vmatprep.subr.bf16.mxu0 0
        %2913 = vmatpush1.bf16.msra.mxu0 0
        %2914 = vmatprep.subr.bf16.mxu0 0
        %2915 = vmatpush1.bf16.msra.mxu0 %v2896
        %2916 = vmatprep.subr.bf16.mxu0 0
        %2917 = vmatpush1.bf16.msra.mxu0 %v2895
        %2918 = vmatprep.subr.bf16.mxu0 0
        %2919 = vmatpush2.bf16.msra.mxu0 0
        %2920 = vmatprep.subr.bf16.mxu0 0
        %2921 = vmatpush2.bf16.msra.mxu0 0
        %2922 = vmatprep.subr.bf16.mxu0 0
        %2923 = vmatpush2.bf16.msra.mxu0 0
        %2924 = vmatprep.subr.bf16.mxu0 0
        %2925 = vmatpush2.bf16.msra.mxu0 0
        %2926 = vmatprep.subr.bf16.mxu0 0
        %2927 = vmatpush2.bf16.msra.mxu0 0
        %2928 = vmatprep.subr.bf16.mxu0 0
        %2929 = vmatpush2.bf16.msra.mxu0 0
        %2930 = vmatprep.subr.bf16.mxu0 0
        %2931 = vmatpush2.bf16.msra.mxu0 0
        %2932 = vmatprep.subr.bf16.mxu0 0
        %2933 = vmatpush2.bf16.msra.mxu0 0
        %2934 = vmatprep.mubr.bf16.mxu0 0
        %2935 = vmatmul.mubr.bf16.gmra.mxu0 %v2900
        %v2936 = vpop.f32.mrf.mxu0
        %v2937 = vadd.f32 %v2885, %v2936
        %v2938 = vpop.f32.mrf.mxu0
        %v2939 = vpop.f32.mrf.mxu0
        %v2940 = vpop.f32.mrf.mxu0
        %2941 = vdwg.mxu0
        %v2942 = vmul.f32 %v2937, %v2937
        %v2943 = vmul.f32 %v2937, %v2942
        %v2944 = vmul.f32 %v2943, 0.044715
        %v2945 = vadd.f32 %v2937, %v2944
        %v2946 = vmul.f32 %v2945, 0.7978846
        %v2947 = vtanh.pop %v2946
        %v2948 = vadd.f32 %v2947, 1.0
        %v2949 = vmul.f32 %v2948, 0.5
        %v2950 = vmul.f32 %v2937, %v2949
        %v2951 = vpack.c.bf16 %v2950, %v2950
        %v2952 = vld [vmem:[%s674] sm:$0xf]
        %v2953 = vld [vmem:[%s674 + $0x4] sm:$0xf]
        %v2954 = vld [vmem:[%s674 + $0x8] sm:$0xf]
        %v2955 = vld [vmem:[%s674 + $0xc] sm:$0xf]
        %v2956 = vld [vmem:[%s674 + $0x10] sm:$0xf]
        %v2957 = vld [vmem:[%s674 + $0x14] sm:$0xf]
        %v2958 = vld [vmem:[%s674 + $0x18] sm:$0xf]
        %v2959 = vld [vmem:[%s674 + $0x1c] sm:$0xf]
        %v2960 = vld [vmem:[%s677] sm:$0x1]
        %v2962 = vlaneseq
        %v2963 = vshrl.u32 %v2962, 7
        %v2964 = vsub.s32 0, %v2963
        %v2965 = vrot.slane %v2960, %v2964
        %v2975 = vunpack.c.l.b16 %v2952
        %v2976 = vunpack.c.l.b16 %v2953
        %v2977 = vunpack.c.l.b16 %v2954
        %v2978 = vunpack.c.l.b16 %v2955
        %v2979 = vunpack.c.l.b16 %v2956
        %v2980 = vunpack.c.l.b16 %v2957
        %v2981 = vunpack.c.l.b16 %v2958
        %v2982 = vunpack.c.l.b16 %v2959
        %v2983 = vpack.c.b16 %v2976, %v2975
        %v2984 = vpack.c.b16 %v2978, %v2977
        %v2985 = vpack.c.b16 %v2980, %v2979
        %v2986 = vpack.c.b16 %v2982, %v2981
        %vm2991 = vcmask 523264
        %v2993 = vsel %vm2991, %v2951, 0
        %2995 = vmatprep.subr.bf16.mxu0 0
        %2996 = vmatpush1.bf16.msra.mxu0 0
        %2997 = vmatprep.subr.bf16.mxu0 0
        %2998 = vmatpush1.bf16.msra.mxu0 0
        %2999 = vmatprep.subr.bf16.mxu0 0
        %3000 = vmatpush1.bf16.msra.mxu0 0
        %3001 = vmatprep.subr.bf16.mxu0 0
        %3002 = vmatpush1.bf16.msra.mxu0 0
        %3003 = vmatprep.subr.bf16.mxu0 0
        %3004 = vmatpush1.bf16.msra.mxu0 %v2986
        %3005 = vmatprep.subr.bf16.mxu0 0
        %3006 = vmatpush1.bf16.msra.mxu0 %v2985
        %3007 = vmatprep.subr.bf16.mxu0 0
        %3008 = vmatpush1.bf16.msra.mxu0 %v2984
        %3009 = vmatprep.subr.bf16.mxu0 0
        %3010 = vmatpush1.bf16.msra.mxu0 %v2983
        %3011 = vmatprep.subr.bf16.mxu0 0
        %3012 = vmatpush2.bf16.msra.mxu0 0
        %3013 = vmatprep.subr.bf16.mxu0 0
        %3014 = vmatpush2.bf16.msra.mxu0 0
        %3015 = vmatprep.subr.bf16.mxu0 0
        %3016 = vmatpush2.bf16.msra.mxu0 0
        %3017 = vmatprep.subr.bf16.mxu0 0
        %3018 = vmatpush2.bf16.msra.mxu0 0
        %3019 = vmatprep.subr.bf16.mxu0 0
        %3020 = vmatpush2.bf16.msra.mxu0 0
        %3021 = vmatprep.subr.bf16.mxu0 0
        %3022 = vmatpush2.bf16.msra.mxu0 0
        %3023 = vmatprep.subr.bf16.mxu0 0
        %3024 = vmatpush2.bf16.msra.mxu0 0
        %3025 = vmatprep.subr.bf16.mxu0 0
        %3026 = vmatpush2.bf16.msra.mxu0 0
        %3027 = vmatprep.mubr.bf16.mxu0 0
        %3028 = vmatmul.mubr.bf16.gmra.mxu0 %v2993
        %v3029 = vpop.f32.mrf.mxu0
        %v3030 = vadd.f32 %v2965, %v3029
        %v3031 = vpop.f32.mrf.mxu0
        %v3032 = vpop.f32.mrf.mxu0
        %v3033 = vpop.f32.mrf.mxu0
        %3034 = vdwg.mxu0
        %v3035 = vadd.f32 %v2845, %v3030
        %3036 = vst.msk [vmem:[%s633] sm:$0xff] %vm689, %v3035
        %vm3037 = vcmask 253952
        %3038 = vst.msk [vmem:[%s639] sm:$0x1] %vm3037, %v3035
        %s3039 = sand.u32 %s369, 1
        %s3040 = scalar_lea.sflag [#allocation4], %s3039
        %s3041 = sand.u32 %s369, 1
        %s3042 = smul.addr %s3041, 8
        %s3043 = scalar_lea.vmem [#allocation7], %s3042
        %s3044 = sand.u32 %s397, 1
        %s3045 = scalar_lea.sflag [#allocation9], %s3044
        %s3046 = sand.u32 %s397, 1
        %s3047 = scalar_lea.vmem [#allocation8], %s3046
        // Predicated region
        $region81: #{tpu_custom_call.1} parent=67 // pred_check
          %p3048 = pneg %p379
        $region82: #{tpu_custom_call.1} parent=67 // pred_check_branch
          %3050 = sbr.rel (%p3048) target = $region84
        $region83: #{tpu_custom_call.1} parent=67 // pred_region
          %s3052 = ssub.s32 128, 128
          %3053 = vsyncadd %s3040, %s3052
          %s3054 = smul.addr %s41, 128
          %s3055 = scalar_lea.hbm %s12, %s3054
          %s3057 = sshll.u32 %s3043, 4
          %s3058 = int_to_ptr.vmem [resolvable:$true] %s3057
          %3060 = dma.vmem_to_hbm [thread:$0]  %s3058, 128, %s3055, %s3040
        $region84: #{tpu_custom_call.1} parent=67 // pred_fallthru
          _
        // Predicated region
        $region85: #{tpu_custom_call.1} parent=67 // pred_check
          %p3061 = pneg %p407
        $region86: #{tpu_custom_call.1} parent=67 // pred_check_branch
          %3063 = sbr.rel (%p3061) target = $region88
        $region87: #{tpu_custom_call.1} parent=67 // pred_region
          %s3065 = ssub.s32 16, 16
          %3066 = vsyncadd %s3045, %s3065
          %s3067 = smul.addr %s41, 2
          %s3068 = sadd.s32 %s42, %s3067
          %s3069 = smul.addr %s3068, 16
          %s3070 = scalar_lea.hbm %s13, %s3069
          %s3072 = sshll.u32 %s3047, 4
          %s3073 = int_to_ptr.vmem [resolvable:$true] %s3072
          %3075 = dma.vmem_to_hbm [thread:$0]  %s3073, 16, %s3070, %s3045
        $region88: #{tpu_custom_call.1} parent=67 // pred_fallthru
          _
      $region68: #{tpu_custom_call.1} parent=5 // pred_fallthru
        _
      %p3076 = scmp.le.s32.totalorder 2, %s32
      // Predicated region
      $region89: #{tpu_custom_call.1} parent=5 // pred_check
        %p3077 = pneg %p3076
      $region90: #{tpu_custom_call.1} parent=5 // pred_check_branch
        %3079 = sbr.rel (%p3077) target = $region92
      $region91: #{tpu_custom_call.1} parent=5 // pred_region
        %s3080 = ssub.s32 %s32, 2
        // Predicated region
        $region93: #{tpu_custom_call.1} parent=91 // pred_check
          %p3081 = pneg %p385
        $region94: #{tpu_custom_call.1} parent=91 // pred_check_branch
          %3083 = sbr.rel (%p3081) target = $region96
        $region95: #{tpu_custom_call.1} parent=91 // pred_region
          %s3084 = sand.u32 %s370, 1
          %s3085 = scalar_lea.sflag [#allocation4], %s3084
          %s3086 = sand.u32 %s370, 1
          %s3087 = smul.addr %s3086, 8
          %s3088 = scalar_lea.vmem [#allocation7], %s3087
          %3089 = dma.done %s3085, 128
        $region96: #{tpu_custom_call.1} parent=91 // pred_fallthru
          _
        // Predicated region
        $region97: #{tpu_custom_call.1} parent=91 // pred_check
          %p3090 = pneg %p413
        $region98: #{tpu_custom_call.1} parent=91 // pred_check_branch
          %3092 = sbr.rel (%p3090) target = $region100
        $region99: #{tpu_custom_call.1} parent=91 // pred_region
          %s3093 = sand.u32 %s398, 1
          %s3094 = scalar_lea.sflag [#allocation9], %s3093
          %s3095 = sand.u32 %s398, 1
          %s3096 = scalar_lea.vmem [#allocation8], %s3095
          %3097 = dma.done %s3094, 16
        $region100: #{tpu_custom_call.1} parent=91 // pred_fallthru
          _
      $region92: #{tpu_custom_call.1} parent=5 // pred_fallthru
        _
    $region6: #{tpu_custom_call.1} parent=1 // loop_footer
      %s36 = sadd.s32 1, %s32
    $region7: #{tpu_custom_call.1} parent=1 // loop_footer_branch
      %31 = sbr.rel target = $region3
    $region8: #{tpu_custom_call.1} parent=1 // loop_exit
      _
    %3098 = vsyncpa [#allocation3], 1
    %s3099 = scalar_lea.sflag [#allocation3], 1
    %3100 = vsyncpa %s3099, 1
    %3101 = vsyncpa [#allocation6], 1
    %s3102 = scalar_lea.sflag [#allocation6], 1
    %3103 = vsyncpa %s3102, 1
    %3104 = vsyncpa [#allocation4], 1
    %s3105 = scalar_lea.sflag [#allocation4], 1
    %3106 = vsyncpa %s3105, 1
    %3107 = vsyncpa [#allocation9], 1
    %s3108 = scalar_lea.sflag [#allocation9], 1
    %3109 = vsyncpa %s3108, 1

</llo_original>
